<compile_context>
chip_gen: v7x
topology: tpu7x:2x2x1
jax: 0.10.0
libtpu: 0.0.40
codegen_flags: <defaults>
</compile_context>

<pallas_src>
import functools

import jax
import jax.numpy as jnp
from jax import lax
from jax.experimental import pallas as pl
from jax.experimental.pallas import tpu as pltpu

C_PAD = 128  # lane width: all channel axes are zero-padded to this in-kernel


def _gelu_exact(x):
    # PyTorch nn.GELU default is the exact erf formulation.
    return 0.5 * x * (1.0 + lax.erf(x * (2.0 ** -0.5)))


def double_conv_kernel(x_ref, w1_ref, g1_ref, b1_ref, w2_ref, g2_ref, b2_ref,
                       o_ref, *, H, W, in_c, mid_c, out_c, residual,
                       matmul_dtype):
    """One grid step = one batch element.

    GroupNorm(num_groups=1) is per-sample, so conv1 -> GN1 -> GELU -> conv2
    -> GN2 [-> gelu(x + .)] is fully fusible per sample with the intermediate
    kept on-chip.
    """
    x = x_ref[0].astype(jnp.float32)                           # (H, W, in_c)

    # Lane-pad the input once; every later tensor is lane-exact (last dim 128).
    if in_c < C_PAD:
        x_full = jnp.concatenate(
            [x, jnp.zeros((H, W, C_PAD - in_c), jnp.float32)], axis=-1)
    else:
        x_full = x                                             # (H, W, C_PAD)

    def conv3x3(h, w_slab_ref):
        """3x3 'same' conv as ONE im2col matmul on the MXU.

        h: (H, W, C_PAD) f32, lane-dense. Returns (H*W, C_PAD) f32.
        Padded channel rows/cols of the weight slab are zero, so padded
        output channels are exactly 0.
        """
        # In-kernel halo: pad the VMEM tile, not the HBM array.
        zrow = jnp.zeros((1, W, C_PAD), jnp.float32)
        hp = jnp.concatenate([zrow, h, zrow], axis=0)          # (H+2, W, 128)
        zcol = jnp.zeros((H + 2, 1, C_PAD), jnp.float32)
        hp = jnp.concatenate([zcol, hp, zcol], axis=1)         # (H+2, W+2, 128)
        taps = [hp[dy:dy + H, dx:dx + W, :]
                for dy in range(3) for dx in range(3)]         # 9 x (H, W, 128)
        # Lane-aligned concat + layout-free reshape (last dim stays 9*128).
        lhs = jnp.concatenate(taps, axis=-1).reshape(H * W, 9 * C_PAD)
        return jnp.dot(lhs.astype(matmul_dtype), w_slab_ref[...],
                       preferred_element_type=jnp.float32)     # (H*W, 128)

    def group_norm1(a, g_ref_, b_ref_, c_true):
        """GroupNorm(1) over the whole sample, one-pass stats.

        Padded channels of `a` are exactly zero, so they do not perturb the
        sums; divide by the true element count. gamma/beta are zero-padded,
        so padded channels stay exactly zero after the affine.
        """
        cnt = float(H * W * c_true)
        s1 = jnp.sum(a)
        s2 = jnp.sum(a * a)
        mean = s1 / cnt
        var = jnp.maximum(s2 / cnt - mean * mean, 0.0)         # biased, as PyTorch
        inv = lax.rsqrt(var + 1e-5)
        return (a - mean) * inv * g_ref_[...] + b_ref_[...]

    # ---- stage 1: conv3x3 -> GroupNorm(1) -> GELU (stays in VMEM) ----
    a1 = conv3x3(x_full, w1_ref)                               # (H*W, 128)
    y1 = _gelu_exact(group_norm1(a1, g1_ref, b1_ref, mid_c))   # padded ch == 0

    # ---- stage 2: conv3x3 -> GroupNorm(1) [-> gelu(x + .)] ----
    a2 = conv3x3(y1.reshape(H, W, C_PAD), w2_ref)              # lane-exact reshape
    z = group_norm1(a2, g2_ref, b2_ref, out_c)                 # (H*W, 128)

    if residual:
        # Residual reuses the already-resident lane-padded input (in_c == out_c).
        z = _gelu_exact(x_full.reshape(H * W, C_PAD) + z)

    # Lane-dense full-width store; wrapper slices the true out_c channels.
    o_ref[0] = z.astype(o_ref.dtype)


def _pack_conv_weight(w, dtype):
    # (3, 3, C_in, C_out) HWIO  ->  lane-dense (9*C_PAD, C_PAD) slab.
    # Rows for padded input channels and columns for padded output channels
    # are zero, so padded lanes never contaminate results.
    kh, kw, cin, cout = w.shape
    slab = jnp.zeros((kh * kw, C_PAD, C_PAD), jnp.float32)
    slab = slab.at[:, :cin, :cout].set(
        w.reshape(kh * kw, cin, cout).astype(jnp.float32))
    return slab.reshape(kh * kw * C_PAD, C_PAD).astype(dtype)


def _pack_affine(p):
    c = p.shape[0]
    return jnp.pad(p.reshape(1, c).astype(jnp.float32), ((0, 0), (0, C_PAD - c)))


def double_conv(x_nchw, params, residual=False, matmul_dtype=jnp.bfloat16):
    """Pallas implementation of DoubleConv.forward (NCHW in / NCHW out)."""
    w1, g1, b1, w2, g2, b2 = params
    N, in_c, H, W = x_nchw.shape
    mid_c = w1.shape[-1]
    out_c = w2.shape[-1]
    assert w1.shape[:3] == (3, 3, in_c) and w2.shape[:3] == (3, 3, mid_c)
    assert max(in_c, mid_c, out_c) <= C_PAD
    if residual:
        assert in_c == out_c, "residual DoubleConv requires in_c == out_c"

    x = jnp.transpose(x_nchw, (0, 2, 3, 1)).astype(jnp.float32)    # NCHW -> NHWC

    args = (
        x,
        _pack_conv_weight(w1, matmul_dtype), _pack_affine(g1), _pack_affine(b1),
        _pack_conv_weight(w2, matmul_dtype), _pack_affine(g2), _pack_affine(b2),
    )

    const = lambda n: (0, 0)
    in_specs = [
        pl.BlockSpec((1, H, W, in_c), lambda n: (n, 0, 0, 0)),
        pl.BlockSpec((9 * C_PAD, C_PAD), const),
        pl.BlockSpec((1, C_PAD), const),
        pl.BlockSpec((1, C_PAD), const),
        pl.BlockSpec((9 * C_PAD, C_PAD), const),
        pl.BlockSpec((1, C_PAD), const),
        pl.BlockSpec((1, C_PAD), const),
    ]

    kernel = functools.partial(
        double_conv_kernel, H=H, W=W, in_c=in_c, mid_c=mid_c, out_c=out_c,
        residual=residual, matmul_dtype=matmul_dtype)

    out = pl.pallas_call(
        kernel,
        out_shape=jax.ShapeDtypeStruct((N, H * W, C_PAD), jnp.float32),
        grid_spec=pltpu.PrefetchScalarGridSpec(
            num_scalar_prefetch=0,
            grid=(N,),                       # per-sample steps; parallel -> both TCs on v7x
            in_specs=in_specs,
            out_specs=pl.BlockSpec((1, H * W, C_PAD), lambda n: (n, 0, 0)),
        ),
        compiler_params=pltpu.CompilerParams(
            dimension_semantics=("parallel",),
            vmem_limit_bytes=32 * 1024 * 1024,   # peak live ~ a few MiB; generous headroom
        ),
    )(*args)

    out = out[:, :, :out_c].reshape(N, H, W, out_c)
    return jnp.transpose(out, (0, 3, 1, 2))                        # NHWC -> NCHW


# ---------------- pure-JAX reference (for correctness check) ----------------
def double_conv_ref(x_nchw, params, residual=False):
    w1, g1, b1, w2, g2, b2 = params
    x = jnp.transpose(x_nchw, (0, 2, 3, 1)).astype(jnp.float32)

    def conv(x, w):
        return lax.conv_general_dilated(
            x, w, window_strides=(1, 1), padding="SAME",
            dimension_numbers=("NHWC", "HWIO", "NHWC"))

    def gn(x, g, b, eps=1e-5):
        mean = jnp.mean(x, axis=(1, 2, 3), keepdims=True)
        var = jnp.mean((x - mean) ** 2, axis=(1, 2, 3), keepdims=True)
        return (x - mean) / jnp.sqrt(var + eps) * g + b

    y = conv(x, w1)
    y = gn(y, g1, b1)
    y = jax.nn.gelu(y, approximate=False)
    y = conv(y, w2)
    y = gn(y, g2, b2)
    if residual:
        y = jax.nn.gelu(x + y, approximate=False)
    return jnp.transpose(y, (0, 3, 1, 2))


if __name__ == "__main__":
    # Small shapes consistent with DoubleConv(in_c=4, out_c=4, mid_c=8)
    N, in_c, H, W = 2, 4, 16, 16
    mid_c, out_c = 8, 4

    key = jax.random.PRNGKey(0)
    k = jax.random.split(key, 7)
    x = jax.random.normal(k[0], (N, in_c, H, W), jnp.float32)
    # Conv2d weights stored HWIO (3, 3, C_in, C_out); GroupNorm affine per-channel.
    w1 = 0.1 * jax.random.normal(k[1], (3, 3, in_c, mid_c), jnp.float32)
    g1 = 1.0 + 0.05 * jax.random.normal(k[2], (mid_c,), jnp.float32)
    b1 = 0.05 * jax.random.normal(k[3], (mid_c,), jnp.float32)
    w2 = 0.1 * jax.random.normal(k[4], (3, 3, mid_c, out_c), jnp.float32)
    g2 = 1.0 + 0.05 * jax.random.normal(k[5], (out_c,), jnp.float32)
    b2 = 0.05 * jax.random.normal(k[6], (out_c,), jnp.float32)
    params = (w1, g1, b1, w2, g2, b2)

    for residual in (False, True):
        ref = double_conv_ref(x, params, residual=residual)

        # Exact-semantics path (f32 matmuls): strict parity with the reference.
        out_f32 = double_conv(x, params, residual=residual,
                              matmul_dtype=jnp.float32)
        jax.block_until_ready(out_f32)
        assert out_f32.shape == (N, out_c, H, W), out_f32.shape
        err_f32 = float(jnp.max(jnp.abs(out_f32 - ref)))
        assert err_f32 < 1e-4, (residual, err_f32)

        # MXU-native perf path (bf16 operands, f32 accumulation / GN / GELU).
        out_bf16 = double_conv(x, params, residual=residual,
                               matmul_dtype=jnp.bfloat16)
        jax.block_until_ready(out_bf16)
        err_bf16 = float(jnp.max(jnp.abs(out_bf16 - ref)))
        assert err_bf16 < 6e-2, (residual, err_bf16)

    print("KERNEL_OK")
</pallas_src>

<mosaic_0001>
module attributes {stable_mosaic.version = 11 : i64} {
  func.func @double_conv_kernel(%arg0: i32, %arg1: memref<1x16x16x4xf32, #tpu.memory_space<vmem>>, %arg2: memref<1152x128xf32, #tpu.memory_space<vmem>>, %arg3: memref<1x128xf32, #tpu.memory_space<vmem>>, %arg4: memref<1x128xf32, #tpu.memory_space<vmem>>, %arg5: memref<1152x128xf32, #tpu.memory_space<vmem>>, %arg6: memref<1x128xf32, #tpu.memory_space<vmem>>, %arg7: memref<1x128xf32, #tpu.memory_space<vmem>>, %arg8: memref<1x256x128xf32, #tpu.memory_space<vmem>>) attributes {dimension_semantics = [#tpu.dimension_semantics<parallel>], iteration_bounds = array<i64: 2>, scalar_prefetch = 0 : i64, scratch_operands = 0 : i64, tpu.core_type = #tpu.core_type<tc>, window_params = [{transform_indices = @transform_0, window_bounds = array<i64: 1, 16, 16, 4>}, {pipeline_mode = #tpu.pipeline_mode<synchronous>, transform_indices = @transform_1, window_bounds = array<i64: 1152, 128>}, {pipeline_mode = #tpu.pipeline_mode<synchronous>, transform_indices = @transform_2, window_bounds = array<i64: 1, 128>}, {pipeline_mode = #tpu.pipeline_mode<synchronous>, transform_indices = @transform_3, window_bounds = array<i64: 1, 128>}, {pipeline_mode = #tpu.pipeline_mode<synchronous>, transform_indices = @transform_4, window_bounds = array<i64: 1152, 128>}, {pipeline_mode = #tpu.pipeline_mode<synchronous>, transform_indices = @transform_5, window_bounds = array<i64: 1, 128>}, {pipeline_mode = #tpu.pipeline_mode<synchronous>, transform_indices = @transform_6, window_bounds = array<i64: 1, 128>}, {transform_indices = @transform_7, window_bounds = array<i64: 1, 256, 128>}]} {
    %c0 = arith.constant 0 : index
    %c0_0 = arith.constant 0 : index
    %c0_1 = arith.constant 0 : index
    %c0_2 = arith.constant 0 : index
    %0 = vector.load %arg1[%c0, %c0_0, %c0_1, %c0_2] : memref<1x16x16x4xf32, #tpu.memory_space<vmem>>, vector<1x16x16x4xf32>
    %1 = vector.shape_cast %0 : vector<1x16x16x4xf32> to vector<16x16x4xf32>
    %cst = arith.constant 0.000000e+00 : f32
    %2 = vector.broadcast %cst : f32 to vector<16x16x124xf32>
    %3 = tpu.concatenate %1, %2 in 2 : vector<16x16x4xf32>, vector<16x16x124xf32> -> vector<16x16x128xf32>
    %cst_3 = arith.constant 0.000000e+00 : f32
    %4 = vector.broadcast %cst_3 : f32 to vector<1x16x128xf32>
    %5 = tpu.concatenate %4, %3, %4 in 0 : vector<1x16x128xf32>, vector<16x16x128xf32>, vector<1x16x128xf32> -> vector<18x16x128xf32>
    %cst_4 = arith.constant 0.000000e+00 : f32
    %6 = vector.broadcast %cst_4 : f32 to vector<18x1x128xf32>
    %7 = tpu.concatenate %6, %5, %6 in 1 : vector<18x1x128xf32>, vector<18x16x128xf32>, vector<18x1x128xf32> -> vector<18x18x128xf32>
    %8 = vector.extract_strided_slice %7 {offsets = [0, 0, 0], sizes = [16, 16, 128], strides = [1, 1, 1]} : vector<18x18x128xf32> to vector<16x16x128xf32>
    %9 = vector.extract_strided_slice %7 {offsets = [0, 1, 0], sizes = [16, 16, 128], strides = [1, 1, 1]} : vector<18x18x128xf32> to vector<16x16x128xf32>
    %10 = vector.extract_strided_slice %7 {offsets = [0, 2, 0], sizes = [16, 16, 128], strides = [1, 1, 1]} : vector<18x18x128xf32> to vector<16x16x128xf32>
    %11 = vector.extract_strided_slice %7 {offsets = [1, 0, 0], sizes = [16, 16, 128], strides = [1, 1, 1]} : vector<18x18x128xf32> to vector<16x16x128xf32>
    %12 = vector.extract_strided_slice %7 {offsets = [1, 1, 0], sizes = [16, 16, 128], strides = [1, 1, 1]} : vector<18x18x128xf32> to vector<16x16x128xf32>
    %13 = vector.extract_strided_slice %7 {offsets = [1, 2, 0], sizes = [16, 16, 128], strides = [1, 1, 1]} : vector<18x18x128xf32> to vector<16x16x128xf32>
    %14 = vector.extract_strided_slice %7 {offsets = [2, 0, 0], sizes = [16, 16, 128], strides = [1, 1, 1]} : vector<18x18x128xf32> to vector<16x16x128xf32>
    %15 = vector.extract_strided_slice %7 {offsets = [2, 1, 0], sizes = [16, 16, 128], strides = [1, 1, 1]} : vector<18x18x128xf32> to vector<16x16x128xf32>
    %16 = vector.extract_strided_slice %7 {offsets = [2, 2, 0], sizes = [16, 16, 128], strides = [1, 1, 1]} : vector<18x18x128xf32> to vector<16x16x128xf32>
    %17 = tpu.concatenate %8, %9, %10, %11, %12, %13, %14, %15, %16 in 2 : vector<16x16x128xf32>, vector<16x16x128xf32>, vector<16x16x128xf32>, vector<16x16x128xf32>, vector<16x16x128xf32>, vector<16x16x128xf32>, vector<16x16x128xf32>, vector<16x16x128xf32>, vector<16x16x128xf32> -> vector<16x16x1152xf32>
    %18 = vector.shape_cast %17 : vector<16x16x1152xf32> to vector<256x1152xf32>
    %c0_5 = arith.constant 0 : index
    %c0_6 = arith.constant 0 : index
    %19 = vector.load %arg2[%c0_5, %c0_6] : memref<1152x128xf32, #tpu.memory_space<vmem>>, vector<1152x128xf32>
    %cst_7 = arith.constant dense<0.000000e+00> : vector<256x128xf32>
    %20 = tpu.matmul %18, %19, %cst_7 {dimension_numbers = #tpu.dot_dimension_numbers<[1], [0], [0], [1], [0, 0, 1, 1], [], []>} : vector<256x1152xf32>, vector<1152x128xf32>, vector<256x128xf32> -> vector<256x128xf32>
    %21 = vector.shape_cast %20 : vector<256x128xf32> to vector<1x256x128xf32>
    %cst_8 = arith.constant dense<0.000000e+00> : vector<1xf32>
    %22 = vector.multi_reduction <add>, %21, %cst_8 [1, 2] : vector<1x256x128xf32> to vector<1xf32>
    %23 = vector.shape_cast %22 : vector<1xf32> to vector<1x1x1xf32>
    %24 = vector.extract %23[0, 0, 0] : f32 from vector<1x1x1xf32>
    %25 = arith.mulf %20, %20 : vector<256x128xf32>
    %26 = vector.shape_cast %25 : vector<256x128xf32> to vector<1x256x128xf32>
    %cst_9 = arith.constant dense<0.000000e+00> : vector<1xf32>
    %27 = vector.multi_reduction <add>, %26, %cst_9 [1, 2] : vector<1x256x128xf32> to vector<1xf32>
    %28 = vector.shape_cast %27 : vector<1xf32> to vector<1x1x1xf32>
    %29 = vector.extract %28[0, 0, 0] : f32 from vector<1x1x1xf32>
    %cst_10 = arith.constant 2.048000e+03 : f32
    %30 = arith.divf %24, %cst_10 : f32
    %cst_11 = arith.constant 2.048000e+03 : f32
    %31 = arith.divf %29, %cst_11 : f32
    %32 = arith.mulf %30, %30 : f32
    %33 = arith.subf %31, %32 : f32
    %cst_12 = arith.constant 0.000000e+00 : f32
    %34 = arith.maximumf %33, %cst_12 : f32
    %cst_13 = arith.constant 9.99999974E-6 : f32
    %35 = arith.addf %34, %cst_13 : f32
    %36 = math.rsqrt %35 : f32
    %37 = vector.broadcast %30 : f32 to vector<256x128xf32>
    %38 = arith.subf %20, %37 : vector<256x128xf32>
    %39 = vector.broadcast %36 : f32 to vector<256x128xf32>
    %40 = arith.mulf %38, %39 : vector<256x128xf32>
    %c0_14 = arith.constant 0 : index
    %c0_15 = arith.constant 0 : index
    %41 = vector.load %arg3[%c0_14, %c0_15] : memref<1x128xf32, #tpu.memory_space<vmem>>, vector<1x128xf32>
    %42 = vector.broadcast %41 : vector<1x128xf32> to vector<256x128xf32>
    %43 = arith.mulf %40, %42 : vector<256x128xf32>
    %c0_16 = arith.constant 0 : index
    %c0_17 = arith.constant 0 : index
    %44 = vector.load %arg4[%c0_16, %c0_17] : memref<1x128xf32, #tpu.memory_space<vmem>>, vector<1x128xf32>
    %45 = vector.broadcast %44 : vector<1x128xf32> to vector<256x128xf32>
    %46 = arith.addf %43, %45 : vector<256x128xf32>
    %cst_18 = arith.constant 5.000000e-01 : f32
    %47 = vector.broadcast %cst_18 : f32 to vector<256x128xf32>
    %48 = arith.mulf %47, %46 : vector<256x128xf32>
    %cst_19 = arith.constant 0.707106769 : f32
    %49 = vector.broadcast %cst_19 : f32 to vector<256x128xf32>
    %50 = arith.mulf %46, %49 : vector<256x128xf32>
    %51 = math.erf %50 : vector<256x128xf32>
    %cst_20 = arith.constant 1.000000e+00 : f32
    %52 = vector.broadcast %cst_20 : f32 to vector<256x128xf32>
    %53 = arith.addf %52, %51 : vector<256x128xf32>
    %54 = arith.mulf %48, %53 : vector<256x128xf32>
    %55 = vector.shape_cast %54 : vector<256x128xf32> to vector<16x16x128xf32>
    %cst_21 = arith.constant 0.000000e+00 : f32
    %56 = vector.broadcast %cst_21 : f32 to vector<1x16x128xf32>
    %57 = tpu.concatenate %56, %55, %56 in 0 : vector<1x16x128xf32>, vector<16x16x128xf32>, vector<1x16x128xf32> -> vector<18x16x128xf32>
    %cst_22 = arith.constant 0.000000e+00 : f32
    %58 = vector.broadcast %cst_22 : f32 to vector<18x1x128xf32>
    %59 = tpu.concatenate %58, %57, %58 in 1 : vector<18x1x128xf32>, vector<18x16x128xf32>, vector<18x1x128xf32> -> vector<18x18x128xf32>
    %60 = vector.extract_strided_slice %59 {offsets = [0, 0, 0], sizes = [16, 16, 128], strides = [1, 1, 1]} : vector<18x18x128xf32> to vector<16x16x128xf32>
    %61 = vector.extract_strided_slice %59 {offsets = [0, 1, 0], sizes = [16, 16, 128], strides = [1, 1, 1]} : vector<18x18x128xf32> to vector<16x16x128xf32>
    %62 = vector.extract_strided_slice %59 {offsets = [0, 2, 0], sizes = [16, 16, 128], strides = [1, 1, 1]} : vector<18x18x128xf32> to vector<16x16x128xf32>
    %63 = vector.extract_strided_slice %59 {offsets = [1, 0, 0], sizes = [16, 16, 128], strides = [1, 1, 1]} : vector<18x18x128xf32> to vector<16x16x128xf32>
    %64 = vector.extract_strided_slice %59 {offsets = [1, 1, 0], sizes = [16, 16, 128], strides = [1, 1, 1]} : vector<18x18x128xf32> to vector<16x16x128xf32>
    %65 = vector.extract_strided_slice %59 {offsets = [1, 2, 0], sizes = [16, 16, 128], strides = [1, 1, 1]} : vector<18x18x128xf32> to vector<16x16x128xf32>
    %66 = vector.extract_strided_slice %59 {offsets = [2, 0, 0], sizes = [16, 16, 128], strides = [1, 1, 1]} : vector<18x18x128xf32> to vector<16x16x128xf32>
    %67 = vector.extract_strided_slice %59 {offsets = [2, 1, 0], sizes = [16, 16, 128], strides = [1, 1, 1]} : vector<18x18x128xf32> to vector<16x16x128xf32>
    %68 = vector.extract_strided_slice %59 {offsets = [2, 2, 0], sizes = [16, 16, 128], strides = [1, 1, 1]} : vector<18x18x128xf32> to vector<16x16x128xf32>
    %69 = tpu.concatenate %60, %61, %62, %63, %64, %65, %66, %67, %68 in 2 : vector<16x16x128xf32>, vector<16x16x128xf32>, vector<16x16x128xf32>, vector<16x16x128xf32>, vector<16x16x128xf32>, vector<16x16x128xf32>, vector<16x16x128xf32>, vector<16x16x128xf32>, vector<16x16x128xf32> -> vector<16x16x1152xf32>
    %70 = vector.shape_cast %69 : vector<16x16x1152xf32> to vector<256x1152xf32>
    %c0_23 = arith.constant 0 : index
    %c0_24 = arith.constant 0 : index
    %71 = vector.load %arg5[%c0_23, %c0_24] : memref<1152x128xf32, #tpu.memory_space<vmem>>, vector<1152x128xf32>
    %cst_25 = arith.constant dense<0.000000e+00> : vector<256x128xf32>
    %72 = tpu.matmul %70, %71, %cst_25 {dimension_numbers = #tpu.dot_dimension_numbers<[1], [0], [0], [1], [0, 0, 1, 1], [], []>} : vector<256x1152xf32>, vector<1152x128xf32>, vector<256x128xf32> -> vector<256x128xf32>
    %73 = vector.shape_cast %72 : vector<256x128xf32> to vector<1x256x128xf32>
    %cst_26 = arith.constant dense<0.000000e+00> : vector<1xf32>
    %74 = vector.multi_reduction <add>, %73, %cst_26 [1, 2] : vector<1x256x128xf32> to vector<1xf32>
    %75 = vector.shape_cast %74 : vector<1xf32> to vector<1x1x1xf32>
    %76 = vector.extract %75[0, 0, 0] : f32 from vector<1x1x1xf32>
    %77 = arith.mulf %72, %72 : vector<256x128xf32>
    %78 = vector.shape_cast %77 : vector<256x128xf32> to vector<1x256x128xf32>
    %cst_27 = arith.constant dense<0.000000e+00> : vector<1xf32>
    %79 = vector.multi_reduction <add>, %78, %cst_27 [1, 2] : vector<1x256x128xf32> to vector<1xf32>
    %80 = vector.shape_cast %79 : vector<1xf32> to vector<1x1x1xf32>
    %81 = vector.extract %80[0, 0, 0] : f32 from vector<1x1x1xf32>
    %cst_28 = arith.constant 1.024000e+03 : f32
    %82 = arith.divf %76, %cst_28 : f32
    %cst_29 = arith.constant 1.024000e+03 : f32
    %83 = arith.divf %81, %cst_29 : f32
    %84 = arith.mulf %82, %82 : f32
    %85 = arith.subf %83, %84 : f32
    %cst_30 = arith.constant 0.000000e+00 : f32
    %86 = arith.maximumf %85, %cst_30 : f32
    %cst_31 = arith.constant 9.99999974E-6 : f32
    %87 = arith.addf %86, %cst_31 : f32
    %88 = math.rsqrt %87 : f32
    %89 = vector.broadcast %82 : f32 to vector<256x128xf32>
    %90 = arith.subf %72, %89 : vector<256x128xf32>
    %91 = vector.broadcast %88 : f32 to vector<256x128xf32>
    %92 = arith.mulf %90, %91 : vector<256x128xf32>
    %c0_32 = arith.constant 0 : index
    %c0_33 = arith.constant 0 : index
    %93 = vector.load %arg6[%c0_32, %c0_33] : memref<1x128xf32, #tpu.memory_space<vmem>>, vector<1x128xf32>
    %94 = vector.broadcast %93 : vector<1x128xf32> to vector<256x128xf32>
    %95 = arith.mulf %92, %94 : vector<256x128xf32>
    %c0_34 = arith.constant 0 : index
    %c0_35 = arith.constant 0 : index
    %96 = vector.load %arg7[%c0_34, %c0_35] : memref<1x128xf32, #tpu.memory_space<vmem>>, vector<1x128xf32>
    %97 = vector.broadcast %96 : vector<1x128xf32> to vector<256x128xf32>
    %98 = arith.addf %95, %97 : vector<256x128xf32>
    %c0_36 = arith.constant 0 : index
    %c0_37 = arith.constant 0 : index
    %c0_38 = arith.constant 0 : index
    %99 = vector.load %arg8[%c0_36, %c0_37, %c0_38] : memref<1x256x128xf32, #tpu.memory_space<vmem>>, vector<1x256x128xf32>
    %100 = vector.shape_cast %99 : vector<1x256x128xf32> to vector<256x128xf32>
    %101 = vector.shape_cast %98 : vector<256x128xf32> to vector<1x256x128xf32>
    tpu.vector_store %arg8[%c0_36, %c0_37, %c0_38], %101 {strides = array<i32>} : memref<1x256x128xf32, #tpu.memory_space<vmem>>, vector<1x256x128xf32>,
    return
  }
  func.func @transform_0(%arg0: i32) -> (i32, i32, i32, i32) {
    %c0_i32 = arith.constant 0 : i32
    %c0_i32_0 = arith.constant 0 : i32
    %c0_i32_1 = arith.constant 0 : i32
    %c0_i32_2 = arith.constant 0 : i32
    return %arg0, %c0_i32, %c0_i32_0, %c0_i32_1 : i32, i32, i32, i32
  }
  func.func @transform_1(%arg0: i32) -> (i32, i32) {
    %c0_i32 = arith.constant 0 : i32
    %c0_i32_0 = arith.constant 0 : i32
    %c0_i32_1 = arith.constant 0 : i32
    return %c0_i32, %c0_i32_0 : i32, i32
  }
  func.func @transform_2(%arg0: i32) -> (i32, i32) {
    %c0_i32 = arith.constant 0 : i32
    %c0_i32_0 = arith.constant 0 : i32
    %c0_i32_1 = arith.constant 0 : i32
    return %c0_i32, %c0_i32_0 : i32, i32
  }
  func.func @transform_3(%arg0: i32) -> (i32, i32) {
    %c0_i32 = arith.constant 0 : i32
    %c0_i32_0 = arith.constant 0 : i32
    %c0_i32_1 = arith.constant 0 : i32
    return %c0_i32, %c0_i32_0 : i32, i32
  }
  func.func @transform_4(%arg0: i32) -> (i32, i32) {
    %c0_i32 = arith.constant 0 : i32
    %c0_i32_0 = arith.constant 0 : i32
    %c0_i32_1 = arith.constant 0 : i32
    return %c0_i32, %c0_i32_0 : i32, i32
  }
  func.func @transform_5(%arg0: i32) -> (i32, i32) {
    %c0_i32 = arith.constant 0 : i32
    %c0_i32_0 = arith.constant 0 : i32
    %c0_i32_1 = arith.constant 0 : i32
    return %c0_i32, %c0_i32_0 : i32, i32
  }
  func.func @transform_6(%arg0: i32) -> (i32, i32) {
    %c0_i32 = arith.constant 0 : i32
    %c0_i32_0 = arith.constant 0 : i32
    %c0_i32_1 = arith.constant 0 : i32
    return %c0_i32, %c0_i32_0 : i32, i32
  }
  func.func @transform_7(%arg0: i32) -> (i32, i32, i32) {
    %c0_i32 = arith.constant 0 : i32
    %c0_i32_0 = arith.constant 0 : i32
    %c0_i32_1 = arith.constant 0 : i32
    return %arg0, %c0_i32, %c0_i32_0 : i32, i32, i32
  }
}

</mosaic_0001>

<llo_original>
// kernel: tpu_custom_call.1
$region0: #{tpu_custom_call.1}
  #allocation0 [shape = 'u32[]', space=smem, size = 0x4, offset = 0x4, fixed_abs, tag = 'smem constant byte address 0x4 - core index']
  #allocation1 [shape = 'u32[144,128]{1,0:T(1,128)}', space=vmem, size = 0x12000, scoped, tag = 'internal scratch']
  %s0 = inlined_call_operand.vmem [shape: f32[2,16,16,4], index: 0, kind: input, shape index: {}]
  %s1 = inlined_call_operand.hbm [shape: f32[1152,128], index: 1, kind: input, shape index: {}]
  %s2 = inlined_call_operand.vmem [shape: f32[1,128], index: 2, kind: input, shape index: {}]
  %s3 = inlined_call_operand.vmem [shape: f32[1,128], index: 3, kind: input, shape index: {}]
  %s4 = inlined_call_operand.hbm [shape: f32[1152,128], index: 4, kind: input, shape index: {}]
  %s5 = inlined_call_operand.vmem [shape: f32[1,128], index: 5, kind: input, shape index: {}]
  %s6 = inlined_call_operand.vmem [shape: f32[1,128], index: 6, kind: input, shape index: {}]
  %s7 = inlined_call_operand.hbm [shape: f32[2,256,128], index: 7, kind: output, shape index: {}]
  %s8 = sld [smem:[#allocation0]]
  $region69: #{tpu_custom_call.1} parent=0
    _
  %s10 = ssub.s32 1, %s8
  %s11 = scalar_select 0, %s10, %s8
  $region1: #{tpu_custom_call.1} parent=0
    #allocation2 [shape = 'u8[589824]{0}', space=vmem, size = 0x90000, scoped, tag = 'input window, operand 1, single buffered']
    #allocation3 [shape = 's32[2]{0}', space=sflag, size = 0x8, scoped, tag = 'scoped memory for tpu_custom_call.1']
    #allocation4 [shape = 's32[2]{0}', space=sflag, size = 0x8, scoped, tag = 'scoped memory for tpu_custom_call.1']
    #allocation5 [shape = 'u8[589824]{0}', space=vmem, size = 0x90000, scoped, tag = 'input window, operand 4, single buffered']
    #allocation6 [shape = 's32[1]{0}', space=sflag, size = 0x4, scoped, tag = 'scoped memory for tpu_custom_call.1']
    #allocation7 [shape = 'u8[262144]{0}', space=vmem, size = 0x40000, scoped, tag = 'output window, operand 0']
    %12 = vsyncpa [#allocation3], 0
    %13 = vsyncpa [#allocation6], 0
    %14 = vsyncpa [#allocation4], 0
    %s15 = scalar_lea.sflag [#allocation4], 1
    %16 = vsyncpa %s15, 0
    loop: start=0, step=1, limit=4
    $region2: #{tpu_custom_call.1} parent=1 // loop_pre_header
      _
    $region3: #{tpu_custom_call.1} parent=1 // loop_header
      %s18 = sphi 0, %s22
      %p19 = scmp.ge.s32.totalorder %s18, 4
      %s28 = sphi 0, %s30
      %s31 = sphi 0, %s28
      %s32 = sphi 0, %s31
      %s48 = sphi 0, %s32
      %s52 = sphi 0, %s52
      %s54 = sphi 0, %s52
      %s55 = sphi 0, %s54
      %s69 = sphi 0, %s55
      %s73 = sphi 0, %s73
      %s75 = sphi 0, %s73
      %s76 = sphi 0, %s75
      %s90 = sphi 0, %s76
      %s94 = sphi 0, %s94
      %s96 = sphi 0, %s94
      %s97 = sphi 0, %s96
      %s111 = sphi 0, %s97
      %s115 = sphi 0, %s115
      %s117 = sphi 0, %s115
      %s118 = sphi 0, %s117
      %s132 = sphi 0, %s118
      %s136 = sphi 0, %s136
      %s138 = sphi 0, %s136
      %s139 = sphi 0, %s138
      %s153 = sphi 0, %s139
      %s157 = sphi 0, %s157
      %s159 = sphi 0, %s157
      %s160 = sphi 0, %s159
      %s174 = sphi 0, %s160
      %s180 = sphi 0, %s182
      %s183 = sphi 0, %s180
      %s184 = sphi 0, %s183
      %s200 = sphi 0, %s184
    $region4: #{tpu_custom_call.1} parent=1 // loop_header_branch
      %21 = sbr.rel (%p19) target = $region8
    $region5: #{tpu_custom_call.1} parent=1 // loop_body
      %s23 = ssub.s32 %s18, 1
      %s24 = ssub.s32 %s18, 2
      %s25 = sadd.s32 %s18, 1
      %s26 = ssub.s32 %s18, %s25
      %p27 = scmp.eq.s32.totalorder %s26, 0
      %s29 = sadd.s32 %s28, 1
      %s30 = scalar_select %p27, %s28, %s29
      %p33 = pneg %p27
      %p34 = scmp.eq.s32.totalorder %s18, 1
      %p35 = por %p33, %p34
      %p36 = scmp.ne.s32.totalorder %s28, %s31
      %p37 = scmp.eq.s32.totalorder %s18, 0
      %p38 = por %p36, %p37
      %p39 = scmp.ne.s32.totalorder %s28, %s31
      %p40 = scmp.eq.s32.totalorder %s23, 1
      %p41 = por %p39, %p40
      %p42 = scmp.ne.s32.totalorder %s31, %s32
      %p43 = scmp.eq.s32.totalorder %s23, 0
      %p44 = por %p42, %p43
      %p45 = scmp.ne.s32.totalorder %s31, %s32
      %p46 = scmp.eq.s32.totalorder %s24, 1
      %p47 = por %p45, %p46
      %p49 = scmp.ne.s32.totalorder %s32, %s48
      %p50 = scmp.eq.s32.totalorder %s24, 0
      %p51 = por %p49, %p50
      %s53 = sadd.s32 %s52, 1
      %p56 = scmp.eq.s32.totalorder %s18, 1
      %p57 = scmp.ne.s32.totalorder %s52, %s54
      %p58 = scmp.eq.s32.totalorder %s18, 0
      %p59 = por %p57, %p58
      %p60 = scmp.ne.s32.totalorder %s52, %s54
      %p61 = scmp.eq.s32.totalorder %s23, 1
      %p62 = por %p60, %p61
      %p63 = scmp.ne.s32.totalorder %s54, %s55
      %p64 = scmp.eq.s32.totalorder %s23, 0
      %p65 = por %p63, %p64
      %p66 = scmp.ne.s32.totalorder %s54, %s55
      %p67 = scmp.eq.s32.totalorder %s24, 1
      %p68 = por %p66, %p67
      %p70 = scmp.ne.s32.totalorder %s55, %s69
      %p71 = scmp.eq.s32.totalorder %s24, 0
      %p72 = por %p70, %p71
      %s74 = sadd.s32 %s73, 1
      %p77 = scmp.eq.s32.totalorder %s18, 1
      %p78 = scmp.ne.s32.totalorder %s73, %s75
      %p79 = scmp.eq.s32.totalorder %s18, 0
      %p80 = por %p78, %p79
      %p81 = scmp.ne.s32.totalorder %s73, %s75
      %p82 = scmp.eq.s32.totalorder %s23, 1
      %p83 = por %p81, %p82
      %p84 = scmp.ne.s32.totalorder %s75, %s76
      %p85 = scmp.eq.s32.totalorder %s23, 0
      %p86 = por %p84, %p85
      %p87 = scmp.ne.s32.totalorder %s75, %s76
      %p88 = scmp.eq.s32.totalorder %s24, 1
      %p89 = por %p87, %p88
      %p91 = scmp.ne.s32.totalorder %s76, %s90
      %p92 = scmp.eq.s32.totalorder %s24, 0
      %p93 = por %p91, %p92
      %s95 = sadd.s32 %s94, 1
      %p98 = scmp.eq.s32.totalorder %s18, 1
      %p99 = scmp.ne.s32.totalorder %s94, %s96
      %p100 = scmp.eq.s32.totalorder %s18, 0
      %p101 = por %p99, %p100
      %p102 = scmp.ne.s32.totalorder %s94, %s96
      %p103 = scmp.eq.s32.totalorder %s23, 1
      %p104 = por %p102, %p103
      %p105 = scmp.ne.s32.totalorder %s96, %s97
      %p106 = scmp.eq.s32.totalorder %s23, 0
      %p107 = por %p105, %p106
      %p108 = scmp.ne.s32.totalorder %s96, %s97
      %p109 = scmp.eq.s32.totalorder %s24, 1
      %p110 = por %p108, %p109
      %p112 = scmp.ne.s32.totalorder %s97, %s111
      %p113 = scmp.eq.s32.totalorder %s24, 0
      %p114 = por %p112, %p113
      %s116 = sadd.s32 %s115, 1
      %p119 = scmp.eq.s32.totalorder %s18, 1
      %p120 = scmp.ne.s32.totalorder %s115, %s117
      %p121 = scmp.eq.s32.totalorder %s18, 0
      %p122 = por %p120, %p121
      %p123 = scmp.ne.s32.totalorder %s115, %s117
      %p124 = scmp.eq.s32.totalorder %s23, 1
      %p125 = por %p123, %p124
      %p126 = scmp.ne.s32.totalorder %s117, %s118
      %p127 = scmp.eq.s32.totalorder %s23, 0
      %p128 = por %p126, %p127
      %p129 = scmp.ne.s32.totalorder %s117, %s118
      %p130 = scmp.eq.s32.totalorder %s24, 1
      %p131 = por %p129, %p130
      %p133 = scmp.ne.s32.totalorder %s118, %s132
      %p134 = scmp.eq.s32.totalorder %s24, 0
      %p135 = por %p133, %p134
      %s137 = sadd.s32 %s136, 1
      %p140 = scmp.eq.s32.totalorder %s18, 1
      %p141 = scmp.ne.s32.totalorder %s136, %s138
      %p142 = scmp.eq.s32.totalorder %s18, 0
      %p143 = por %p141, %p142
      %p144 = scmp.ne.s32.totalorder %s136, %s138
      %p145 = scmp.eq.s32.totalorder %s23, 1
      %p146 = por %p144, %p145
      %p147 = scmp.ne.s32.totalorder %s138, %s139
      %p148 = scmp.eq.s32.totalorder %s23, 0
      %p149 = por %p147, %p148
      %p150 = scmp.ne.s32.totalorder %s138, %s139
      %p151 = scmp.eq.s32.totalorder %s24, 1
      %p152 = por %p150, %p151
      %p154 = scmp.ne.s32.totalorder %s139, %s153
      %p155 = scmp.eq.s32.totalorder %s24, 0
      %p156 = por %p154, %p155
      %s158 = sadd.s32 %s157, 1
      %p161 = scmp.eq.s32.totalorder %s18, 1
      %p162 = scmp.ne.s32.totalorder %s157, %s159
      %p163 = scmp.eq.s32.totalorder %s18, 0
      %p164 = por %p162, %p163
      %p165 = scmp.ne.s32.totalorder %s157, %s159
      %p166 = scmp.eq.s32.totalorder %s23, 1
      %p167 = por %p165, %p166
      %p168 = scmp.ne.s32.totalorder %s159, %s160
      %p169 = scmp.eq.s32.totalorder %s23, 0
      %p170 = por %p168, %p169
      %p171 = scmp.ne.s32.totalorder %s159, %s160
      %p172 = scmp.eq.s32.totalorder %s24, 1
      %p173 = por %p171, %p172
      %p175 = scmp.ne.s32.totalorder %s160, %s174
      %p176 = scmp.eq.s32.totalorder %s24, 0
      %p177 = por %p175, %p176
      %s178 = ssub.s32 %s18, %s25
      %p179 = scmp.eq.s32.totalorder %s178, 0
      %s181 = sadd.s32 %s180, 1
      %s182 = scalar_select %p179, %s180, %s181
      %p185 = pneg %p179
      %p186 = scmp.eq.s32.totalorder %s18, 1
      %p187 = por %p185, %p186
      %p188 = scmp.ne.s32.totalorder %s180, %s183
      %p189 = scmp.eq.s32.totalorder %s18, 0
      %p190 = por %p188, %p189
      %p191 = scmp.ne.s32.totalorder %s180, %s183
      %p192 = scmp.eq.s32.totalorder %s23, 1
      %p193 = por %p191, %p192
      %p194 = scmp.ne.s32.totalorder %s183, %s184
      %p195 = scmp.eq.s32.totalorder %s23, 0
      %p196 = por %p194, %p195
      %p197 = scmp.ne.s32.totalorder %s183, %s184
      %p198 = scmp.eq.s32.totalorder %s24, 1
      %p199 = por %p197, %p198
      %p201 = scmp.ne.s32.totalorder %s184, %s200
      %p202 = scmp.eq.s32.totalorder %s24, 0
      %p203 = por %p201, %p202
      %p204 = scmp.le.s32.totalorder 1, %s18
      %p205 = scmp.lt.s32.totalorder %s18, 3
      %p206 = pnand %p204, %p205
      %p207 = pneg %p206
      // Predicated region
      $region9: #{tpu_custom_call.1} parent=5 // pred_check
        _
      $region10: #{tpu_custom_call.1} parent=5 // pred_check_branch
        %209 = sbr.rel (%p206) target = $region12
      $region11: #{tpu_custom_call.1} parent=5 // pred_region
        %s210 = ssub.s32 %s18, 1
        // Predicated region
        $region13: #{tpu_custom_call.1} parent=11 // pred_check
          %p211 = pneg %p65
        $region14: #{tpu_custom_call.1} parent=11 // pred_check_branch
          %213 = sbr.rel (%p211) target = $region16
        $region15: #{tpu_custom_call.1} parent=11 // pred_region
          %s215 = ssub.s32 18432, 18432
          %216 = vsyncadd [#allocation3], %s215
          %s217 = sshll.u32 [#allocation2], 4
          %s218 = int_to_ptr.vmem [resolvable:$true] %s217
          %223 = dma.hbm_to_vmem [thread:$0]  %s1, 18432, %s218, [#allocation3], 128, 128, 8
        $region16: #{tpu_custom_call.1} parent=11 // pred_fallthru
          _
        // Predicated region
        $region17: #{tpu_custom_call.1} parent=11 // pred_check
          %p224 = pneg %p86
        $region18: #{tpu_custom_call.1} parent=11 // pred_check_branch
          %226 = sbr.rel (%p224) target = $region20
        $region19: #{tpu_custom_call.1} parent=11 // pred_region
          _
        $region20: #{tpu_custom_call.1} parent=11 // pred_fallthru
          _
        // Predicated region
        $region21: #{tpu_custom_call.1} parent=11 // pred_check
          %p227 = pneg %p107
        $region22: #{tpu_custom_call.1} parent=11 // pred_check_branch
          %229 = sbr.rel (%p227) target = $region24
        $region23: #{tpu_custom_call.1} parent=11 // pred_region
          _
        $region24: #{tpu_custom_call.1} parent=11 // pred_fallthru
          _
        // Predicated region
        $region25: #{tpu_custom_call.1} parent=11 // pred_check
          %p230 = pneg %p128
        $region26: #{tpu_custom_call.1} parent=11 // pred_check_branch
          %232 = sbr.rel (%p230) target = $region28
        $region27: #{tpu_custom_call.1} parent=11 // pred_region
          %s234 = ssub.s32 18432, 18432
          %235 = vsyncadd [#allocation6], %s234
          %s236 = sshll.u32 [#allocation5], 4
          %s237 = int_to_ptr.vmem [resolvable:$true] %s236
          %242 = dma.hbm_to_vmem [thread:$0]  %s4, 18432, %s237, [#allocation6], 128, 128, 8
        $region28: #{tpu_custom_call.1} parent=11 // pred_fallthru
          _
        // Predicated region
        $region29: #{tpu_custom_call.1} parent=11 // pred_check
          %p243 = pneg %p149
        $region30: #{tpu_custom_call.1} parent=11 // pred_check_branch
          %245 = sbr.rel (%p243) target = $region32
        $region31: #{tpu_custom_call.1} parent=11 // pred_region
          _
        $region32: #{tpu_custom_call.1} parent=11 // pred_fallthru
          _
        // Predicated region
        $region33: #{tpu_custom_call.1} parent=11 // pred_check
          %p246 = pneg %p170
        $region34: #{tpu_custom_call.1} parent=11 // pred_check_branch
          %248 = sbr.rel (%p246) target = $region36
        $region35: #{tpu_custom_call.1} parent=11 // pred_region
          _
        $region36: #{tpu_custom_call.1} parent=11 // pred_fallthru
          _
      $region12: #{tpu_custom_call.1} parent=5 // pred_fallthru
        _
      %p249 = scmp.lt.s32.totalorder %s18, 2
      // Predicated region
      $region37: #{tpu_custom_call.1} parent=5 // pred_check
        %p250 = pneg %p249
      $region38: #{tpu_custom_call.1} parent=5 // pred_check_branch
        %252 = sbr.rel (%p250) target = $region40
      $region39: #{tpu_custom_call.1} parent=5 // pred_region
        // Predicated region
        $region41: #{tpu_custom_call.1} parent=39 // pred_check
          %p253 = pneg %p38
        $region42: #{tpu_custom_call.1} parent=39 // pred_check_branch
          %255 = sbr.rel (%p253) target = $region44
        $region43: #{tpu_custom_call.1} parent=39 // pred_region
          %p256 = scmp.lt.s32.totalorder %s18, 1
          %s257 = scalar_select %p256, %s18, 1
          %s258 = smul.addr %s257, 32
          %s259 = smul.addr %s258, 8
          %s260 = scalar_lea.vmem %s0, %s259
        $region44: #{tpu_custom_call.1} parent=39 // pred_fallthru
          _
      $region40: #{tpu_custom_call.1} parent=5 // pred_fallthru
        _
      %p261 = scmp.le.s32.totalorder 1, %s18
      %p262 = scmp.lt.s32.totalorder %s18, 3
      %p263 = pnand %p261, %p262
      %p264 = pneg %p263
      // Predicated region
      $region45: #{tpu_custom_call.1} parent=5 // pred_check
        _
      $region46: #{tpu_custom_call.1} parent=5 // pred_check_branch
        %266 = sbr.rel (%p263) target = $region48
      $region47: #{tpu_custom_call.1} parent=5 // pred_region
        %s267 = ssub.s32 %s18, 1
        // Predicated region
        $region49: #{tpu_custom_call.1} parent=47 // pred_check
          %p268 = pneg %p65
        $region50: #{tpu_custom_call.1} parent=47 // pred_check_branch
          %270 = sbr.rel (%p268) target = $region52
        $region51: #{tpu_custom_call.1} parent=47 // pred_region
          %271 = dma.done [#allocation3], 18432
        $region52: #{tpu_custom_call.1} parent=47 // pred_fallthru
          _
        // Predicated region
        $region53: #{tpu_custom_call.1} parent=47 // pred_check
          %p272 = pneg %p128
        $region54: #{tpu_custom_call.1} parent=47 // pred_check_branch
          %274 = sbr.rel (%p272) target = $region56
        $region55: #{tpu_custom_call.1} parent=47 // pred_region
          %275 = dma.done [#allocation6], 18432
        $region56: #{tpu_custom_call.1} parent=47 // pred_fallthru
          _
        %p276 = scmp.lt.s32.totalorder %s23, 1
        %s277 = scalar_select %p276, %s23, 1
        %s278 = smul.addr %s277, 32
        %s279 = smul.addr %s278, 8
        %s280 = scalar_lea.vmem %s0, %s279
        %p281 = pneg %p44
        %p282 = pneg %p41
        %p283 = pneg %p65
        %p284 = pneg %p62
        %p285 = pneg %p86
        %p286 = pneg %p83
        %p287 = pneg %p107
        %p288 = pneg %p104
        %p289 = pneg %p128
        %p290 = pneg %p125
        %p291 = pneg %p149
        %p292 = pneg %p146
        %p293 = pneg %p170
        %p294 = pneg %p167
        %p295 = pneg %p196
        %p296 = pneg %p193
        %s297 = sand.u32 %s183, 1
        %s298 = scalar_lea.sflag [#allocation4], %s297
        %s299 = sand.u32 %s183, 1
        %s300 = smul.addr %s299, 256
        %s301 = scalar_lea.vmem [#allocation7], %s300
        %p302 = scmp.lt.s32.totalorder %s23, 1
        %s303 = scalar_select %p302, %s23, 1
        %s304 = smul.addr %s303, 32
        %s305 = smul.addr %s304, 8
        %s306 = scalar_lea.vmem %s0, %s305
        %v307 = vld [vmem:[%s306] sm:$0xff]
        %v308 = vld [vmem:[%s306 + $0x8] sm:$0xff]
        %v309 = vld [vmem:[%s306 + $0x10] sm:$0xff]
        %v310 = vld [vmem:[%s306 + $0x18] sm:$0xff]
        %v311 = vld [vmem:[%s306 + $0x20] sm:$0xff]
        %v312 = vld [vmem:[%s306 + $0x28] sm:$0xff]
        %v313 = vld [vmem:[%s306 + $0x30] sm:$0xff]
        %v314 = vld [vmem:[%s306 + $0x38] sm:$0xff]
        %v315 = vld [vmem:[%s306 + $0x40] sm:$0xff]
        %v316 = vld [vmem:[%s306 + $0x48] sm:$0xff]
        %v317 = vld [vmem:[%s306 + $0x50] sm:$0xff]
        %v318 = vld [vmem:[%s306 + $0x58] sm:$0xff]
        %v319 = vld [vmem:[%s306 + $0x60] sm:$0xff]
        %v320 = vld [vmem:[%s306 + $0x68] sm:$0xff]
        %v321 = vld [vmem:[%s306 + $0x70] sm:$0xff]
        %v322 = vld [vmem:[%s306 + $0x78] sm:$0xff]
        %v323 = vld [vmem:[%s306 + $0x80] sm:$0xff]
        %v324 = vld [vmem:[%s306 + $0x88] sm:$0xff]
        %v325 = vld [vmem:[%s306 + $0x90] sm:$0xff]
        %v326 = vld [vmem:[%s306 + $0x98] sm:$0xff]
        %v327 = vld [vmem:[%s306 + $0xa0] sm:$0xff]
        %v328 = vld [vmem:[%s306 + $0xa8] sm:$0xff]
        %v329 = vld [vmem:[%s306 + $0xb0] sm:$0xff]
        %v330 = vld [vmem:[%s306 + $0xb8] sm:$0xff]
        %v331 = vld [vmem:[%s306 + $0xc0] sm:$0xff]
        %v332 = vld [vmem:[%s306 + $0xc8] sm:$0xff]
        %v333 = vld [vmem:[%s306 + $0xd0] sm:$0xff]
        %v334 = vld [vmem:[%s306 + $0xd8] sm:$0xff]
        %v335 = vld [vmem:[%s306 + $0xe0] sm:$0xff]
        %v336 = vld [vmem:[%s306 + $0xe8] sm:$0xff]
        %v337 = vld [vmem:[%s306 + $0xf0] sm:$0xff]
        %v338 = vld [vmem:[%s306 + $0xf8] sm:$0xff]
        %vm339 = vcmask 31744
        %v340 = vsel %vm339, %v307, 0.0
        %v341 = vsel %vm339, %v308, 0.0
        %v342 = vsel %vm339, %v309, 0.0
        %v343 = vsel %vm339, %v310, 0.0
        %v344 = vsel %vm339, %v311, 0.0
        %v345 = vsel %vm339, %v312, 0.0
        %v346 = vsel %vm339, %v313, 0.0
        %v347 = vsel %vm339, %v314, 0.0
        %v348 = vsel %vm339, %v315, 0.0
        %v349 = vsel %vm339, %v316, 0.0
        %v350 = vsel %vm339, %v317, 0.0
        %v351 = vsel %vm339, %v318, 0.0
        %v352 = vsel %vm339, %v319, 0.0
        %v353 = vsel %vm339, %v320, 0.0
        %v354 = vsel %vm339, %v321, 0.0
        %v355 = vsel %vm339, %v322, 0.0
        %v356 = vsel %vm339, %v323, 0.0
        %v357 = vsel %vm339, %v324, 0.0
        %v358 = vsel %vm339, %v325, 0.0
        %v359 = vsel %vm339, %v326, 0.0
        %v360 = vsel %vm339, %v327, 0.0
        %v361 = vsel %vm339, %v328, 0.0
        %v362 = vsel %vm339, %v329, 0.0
        %v363 = vsel %vm339, %v330, 0.0
        %v364 = vsel %vm339, %v331, 0.0
        %v365 = vsel %vm339, %v332, 0.0
        %v366 = vsel %vm339, %v333, 0.0
        %v367 = vsel %vm339, %v334, 0.0
        %v368 = vsel %vm339, %v335, 0.0
        %v369 = vsel %vm339, %v336, 0.0
        %v370 = vsel %vm339, %v337, 0.0
        %v371 = vsel %vm339, %v338, 0.0
        %vm405 = vcmask 1040384
        %v406 = vrot.slane 0.0, 7
        %v407 = vsel %vm405, %v406, %v406
        %v408 = vrot.slane %v340, 7
        %v409 = vrot.slane %v341, 7
        %v410 = vsel %vm405, %v408, %v409
        %v411 = vrot.slane %v342, 7
        %v412 = vrot.slane %v343, 7
        %v413 = vsel %vm405, %v411, %v412
        %v414 = vrot.slane %v344, 7
        %v415 = vrot.slane %v345, 7
        %v416 = vsel %vm405, %v414, %v415
        %v417 = vrot.slane %v346, 7
        %v418 = vrot.slane %v347, 7
        %v419 = vsel %vm405, %v417, %v418
        %v420 = vrot.slane %v348, 7
        %v421 = vrot.slane %v349, 7
        %v422 = vsel %vm405, %v420, %v421
        %v423 = vrot.slane %v350, 7
        %v424 = vrot.slane %v351, 7
        %v425 = vsel %vm405, %v423, %v424
        %v426 = vrot.slane %v352, 7
        %v427 = vrot.slane %v353, 7
        %v428 = vsel %vm405, %v426, %v427
        %v429 = vrot.slane %v354, 7
        %v430 = vrot.slane %v355, 7
        %v431 = vsel %vm405, %v429, %v430
        %v432 = vrot.slane %v356, 7
        %v433 = vrot.slane %v357, 7
        %v434 = vsel %vm405, %v432, %v433
        %v435 = vrot.slane %v358, 7
        %v436 = vrot.slane %v359, 7
        %v437 = vsel %vm405, %v435, %v436
        %v438 = vrot.slane %v360, 7
        %v439 = vrot.slane %v361, 7
        %v440 = vsel %vm405, %v438, %v439
        %v441 = vrot.slane %v362, 7
        %v442 = vrot.slane %v363, 7
        %v443 = vsel %vm405, %v441, %v442
        %v444 = vrot.slane %v364, 7
        %v445 = vrot.slane %v365, 7
        %v446 = vsel %vm405, %v444, %v445
        %v447 = vrot.slane %v366, 7
        %v448 = vrot.slane %v367, 7
        %v449 = vsel %vm405, %v447, %v448
        %v450 = vrot.slane %v368, 7
        %v451 = vrot.slane %v369, 7
        %v452 = vsel %vm405, %v450, %v451
        %v453 = vrot.slane %v370, 7
        %v454 = vrot.slane %v371, 7
        %v455 = vsel %vm405, %v453, %v454
        %v506 = vsel %vm405, 0.0, %v406
        %v507 = vsel %vm405, 0.0, %v408
        %v508 = vsel %vm405, 0.0, %v411
        %v509 = vsel %vm405, 0.0, %v414
        %v510 = vsel %vm405, 0.0, %v417
        %v511 = vsel %vm405, 0.0, %v420
        %v512 = vsel %vm405, 0.0, %v423
        %v513 = vsel %vm405, 0.0, %v426
        %v514 = vsel %vm405, 0.0, %v429
        %v515 = vsel %vm405, 0.0, %v432
        %v516 = vsel %vm405, 0.0, %v435
        %v517 = vsel %vm405, 0.0, %v438
        %v518 = vsel %vm405, 0.0, %v441
        %v519 = vsel %vm405, 0.0, %v444
        %v520 = vsel %vm405, 0.0, %v447
        %v521 = vsel %vm405, 0.0, %v450
        %v522 = vsel %vm405, 0.0, %v453
        %v523 = vsel %vm405, %v406, 0.0
        %v524 = vsel %vm405, %v409, 0.0
        %v525 = vsel %vm405, %v412, 0.0
        %v526 = vsel %vm405, %v415, 0.0
        %v527 = vsel %vm405, %v418, 0.0
        %v528 = vsel %vm405, %v421, 0.0
        %v529 = vsel %vm405, %v424, 0.0
        %v530 = vsel %vm405, %v427, 0.0
        %v531 = vsel %vm405, %v430, 0.0
        %v532 = vsel %vm405, %v433, 0.0
        %v533 = vsel %vm405, %v436, 0.0
        %v534 = vsel %vm405, %v439, 0.0
        %v535 = vsel %vm405, %v442, 0.0
        %v536 = vsel %vm405, %v445, 0.0
        %v537 = vsel %vm405, %v448, 0.0
        %v538 = vsel %vm405, %v451, 0.0
        %v539 = vsel %vm405, %v454, 0.0
        %vm572 = vcmask 1046528
        %v573 = vrot.slane %v506, 1
        %v574 = vrot.slane %v407, 1
        %v575 = vsel %vm572, %v573, %v574
        %v576 = vrot.slane %v523, 1
        %v577 = vsel %vm572, %v574, %v576
        %v578 = vrot.slane %v507, 1
        %v579 = vrot.slane %v410, 1
        %v580 = vsel %vm572, %v578, %v579
        %v581 = vrot.slane %v524, 1
        %v582 = vsel %vm572, %v579, %v581
        %v583 = vrot.slane %v508, 1
        %v584 = vrot.slane %v413, 1
        %v585 = vsel %vm572, %v583, %v584
        %v586 = vrot.slane %v525, 1
        %v587 = vsel %vm572, %v584, %v586
        %v588 = vrot.slane %v509, 1
        %v589 = vrot.slane %v416, 1
        %v590 = vsel %vm572, %v588, %v589
        %v591 = vrot.slane %v526, 1
        %v592 = vsel %vm572, %v589, %v591
        %v593 = vrot.slane %v510, 1
        %v594 = vrot.slane %v419, 1
        %v595 = vsel %vm572, %v593, %v594
        %v596 = vrot.slane %v527, 1
        %v597 = vsel %vm572, %v594, %v596
        %v598 = vrot.slane %v511, 1
        %v599 = vrot.slane %v422, 1
        %v600 = vsel %vm572, %v598, %v599
        %v601 = vrot.slane %v528, 1
        %v602 = vsel %vm572, %v599, %v601
        %v603 = vrot.slane %v512, 1
        %v604 = vrot.slane %v425, 1
        %v605 = vsel %vm572, %v603, %v604
        %v606 = vrot.slane %v529, 1
        %v607 = vsel %vm572, %v604, %v606
        %v608 = vrot.slane %v513, 1
        %v609 = vrot.slane %v428, 1
        %v610 = vsel %vm572, %v608, %v609
        %v611 = vrot.slane %v530, 1
        %v612 = vsel %vm572, %v609, %v611
        %v613 = vrot.slane %v514, 1
        %v614 = vrot.slane %v431, 1
        %v615 = vsel %vm572, %v613, %v614
        %v616 = vrot.slane %v531, 1
        %v617 = vsel %vm572, %v614, %v616
        %v618 = vrot.slane %v515, 1
        %v619 = vrot.slane %v434, 1
        %v620 = vsel %vm572, %v618, %v619
        %v621 = vrot.slane %v532, 1
        %v622 = vsel %vm572, %v619, %v621
        %v623 = vrot.slane %v516, 1
        %v624 = vrot.slane %v437, 1
        %v625 = vsel %vm572, %v623, %v624
        %v626 = vrot.slane %v533, 1
        %v627 = vsel %vm572, %v624, %v626
        %v628 = vrot.slane %v517, 1
        %v629 = vrot.slane %v440, 1
        %v630 = vsel %vm572, %v628, %v629
        %v631 = vrot.slane %v534, 1
        %v632 = vsel %vm572, %v629, %v631
        %v633 = vrot.slane %v518, 1
        %v634 = vrot.slane %v443, 1
        %v635 = vsel %vm572, %v633, %v634
        %v636 = vrot.slane %v535, 1
        %v637 = vsel %vm572, %v634, %v636
        %v638 = vrot.slane %v519, 1
        %v639 = vrot.slane %v446, 1
        %v640 = vsel %vm572, %v638, %v639
        %v641 = vrot.slane %v536, 1
        %v642 = vsel %vm572, %v639, %v641
        %v643 = vrot.slane %v520, 1
        %v644 = vrot.slane %v449, 1
        %v645 = vsel %vm572, %v643, %v644
        %v646 = vrot.slane %v537, 1
        %v647 = vsel %vm572, %v644, %v646
        %v648 = vrot.slane %v521, 1
        %v649 = vrot.slane %v452, 1
        %v650 = vsel %vm572, %v648, %v649
        %v651 = vrot.slane %v538, 1
        %v652 = vsel %vm572, %v649, %v651
        %vm685 = vcmask 1045504
        %v686 = vrot.slane %v506, 2
        %v687 = vrot.slane %v407, 2
        %v688 = vsel %vm685, %v686, %v687
        %v689 = vrot.slane %v523, 2
        %v690 = vsel %vm685, %v687, %v689
        %v691 = vrot.slane %v507, 2
        %v692 = vrot.slane %v410, 2
        %v693 = vsel %vm685, %v691, %v692
        %v694 = vrot.slane %v524, 2
        %v695 = vsel %vm685, %v692, %v694
        %v696 = vrot.slane %v508, 2
        %v697 = vrot.slane %v413, 2
        %v698 = vsel %vm685, %v696, %v697
        %v699 = vrot.slane %v525, 2
        %v700 = vsel %vm685, %v697, %v699
        %v701 = vrot.slane %v509, 2
        %v702 = vrot.slane %v416, 2
        %v703 = vsel %vm685, %v701, %v702
        %v704 = vrot.slane %v526, 2
        %v705 = vsel %vm685, %v702, %v704
        %v706 = vrot.slane %v510, 2
        %v707 = vrot.slane %v419, 2
        %v708 = vsel %vm685, %v706, %v707
        %v709 = vrot.slane %v527, 2
        %v710 = vsel %vm685, %v707, %v709
        %v711 = vrot.slane %v511, 2
        %v712 = vrot.slane %v422, 2
        %v713 = vsel %vm685, %v711, %v712
        %v714 = vrot.slane %v528, 2
        %v715 = vsel %vm685, %v712, %v714
        %v716 = vrot.slane %v512, 2
        %v717 = vrot.slane %v425, 2
        %v718 = vsel %vm685, %v716, %v717
        %v719 = vrot.slane %v529, 2
        %v720 = vsel %vm685, %v717, %v719
        %v721 = vrot.slane %v513, 2
        %v722 = vrot.slane %v428, 2
        %v723 = vsel %vm685, %v721, %v722
        %v724 = vrot.slane %v530, 2
        %v725 = vsel %vm685, %v722, %v724
        %v726 = vrot.slane %v514, 2
        %v727 = vrot.slane %v431, 2
        %v728 = vsel %vm685, %v726, %v727
        %v729 = vrot.slane %v531, 2
        %v730 = vsel %vm685, %v727, %v729
        %v731 = vrot.slane %v515, 2
        %v732 = vrot.slane %v434, 2
        %v733 = vsel %vm685, %v731, %v732
        %v734 = vrot.slane %v532, 2
        %v735 = vsel %vm685, %v732, %v734
        %v736 = vrot.slane %v516, 2
        %v737 = vrot.slane %v437, 2
        %v738 = vsel %vm685, %v736, %v737
        %v739 = vrot.slane %v533, 2
        %v740 = vsel %vm685, %v737, %v739
        %v741 = vrot.slane %v517, 2
        %v742 = vrot.slane %v440, 2
        %v743 = vsel %vm685, %v741, %v742
        %v744 = vrot.slane %v534, 2
        %v745 = vsel %vm685, %v742, %v744
        %v746 = vrot.slane %v518, 2
        %v747 = vrot.slane %v443, 2
        %v748 = vsel %vm685, %v746, %v747
        %v749 = vrot.slane %v535, 2
        %v750 = vsel %vm685, %v747, %v749
        %v751 = vrot.slane %v519, 2
        %v752 = vrot.slane %v446, 2
        %v753 = vsel %vm685, %v751, %v752
        %v754 = vrot.slane %v536, 2
        %v755 = vsel %vm685, %v752, %v754
        %v756 = vrot.slane %v520, 2
        %v757 = vrot.slane %v449, 2
        %v758 = vsel %vm685, %v756, %v757
        %v759 = vrot.slane %v537, 2
        %v760 = vsel %vm685, %v757, %v759
        %v761 = vrot.slane %v521, 2
        %v762 = vrot.slane %v452, 2
        %v763 = vsel %vm685, %v761, %v762
        %v764 = vrot.slane %v538, 2
        %v765 = vsel %vm685, %v762, %v764
        %v800 = vrot.slane %v522, 1
        %v801 = vrot.slane %v455, 1
        %v802 = vsel %vm572, %v800, %v801
        %v803 = vrot.slane %v539, 1
        %v804 = vsel %vm572, %v801, %v803
        %v807 = vrot.slane %v522, 2
        %v808 = vrot.slane %v455, 2
        %v809 = vsel %vm685, %v807, %v808
        %v810 = vrot.slane %v539, 2
        %v811 = vsel %vm685, %v808, %v810
        %v814 = vld [vmem:[#allocation2] sm:$0xff]
        %v815 = vld [vmem:[#allocation2 + $0x8] sm:$0xff]
        %v816 = vld [vmem:[#allocation2 + $0x10] sm:$0xff]
        %v817 = vld [vmem:[#allocation2 + $0x18] sm:$0xff]
        %v818 = vld [vmem:[#allocation2 + $0x20] sm:$0xff]
        %v819 = vld [vmem:[#allocation2 + $0x28] sm:$0xff]
        %v820 = vld [vmem:[#allocation2 + $0x30] sm:$0xff]
        %v821 = vld [vmem:[#allocation2 + $0x38] sm:$0xff]
        %v822 = vld [vmem:[#allocation2 + $0x40] sm:$0xff]
        %v823 = vld [vmem:[#allocation2 + $0x48] sm:$0xff]
        %v824 = vld [vmem:[#allocation2 + $0x50] sm:$0xff]
        %v825 = vld [vmem:[#allocation2 + $0x58] sm:$0xff]
        %v826 = vld [vmem:[#allocation2 + $0x60] sm:$0xff]
        %v827 = vld [vmem:[#allocation2 + $0x68] sm:$0xff]
        %v828 = vld [vmem:[#allocation2 + $0x70] sm:$0xff]
        %v829 = vld [vmem:[#allocation2 + $0x78] sm:$0xff]
        %v830 = vld [vmem:[#allocation2 + $0x80] sm:$0xff]
        %v831 = vld [vmem:[#allocation2 + $0x88] sm:$0xff]
        %v832 = vld [vmem:[#allocation2 + $0x90] sm:$0xff]
        %v833 = vld [vmem:[#allocation2 + $0x98] sm:$0xff]
        %v834 = vld [vmem:[#allocation2 + $0xa0] sm:$0xff]
        %v835 = vld [vmem:[#allocation2 + $0xa8] sm:$0xff]
        %v836 = vld [vmem:[#allocation2 + $0xb0] sm:$0xff]
        %v837 = vld [vmem:[#allocation2 + $0xb8] sm:$0xff]
        %v838 = vld [vmem:[#allocation2 + $0xc0] sm:$0xff]
        %v839 = vld [vmem:[#allocation2 + $0xc8] sm:$0xff]
        %v840 = vld [vmem:[#allocation2 + $0xd0] sm:$0xff]
        %v841 = vld [vmem:[#allocation2 + $0xd8] sm:$0xff]
        %v842 = vld [vmem:[#allocation2 + $0xe0] sm:$0xff]
        %v843 = vld [vmem:[#allocation2 + $0xe8] sm:$0xff]
        %v844 = vld [vmem:[#allocation2 + $0xf0] sm:$0xff]
        %v845 = vld [vmem:[#allocation2 + $0xf8] sm:$0xff]
        %v846 = vld [vmem:[#allocation2 + $0x100] sm:$0xff]
        %v847 = vld [vmem:[#allocation2 + $0x108] sm:$0xff]
        %v848 = vld [vmem:[#allocation2 + $0x110] sm:$0xff]
        %v849 = vld [vmem:[#allocation2 + $0x118] sm:$0xff]
        %v850 = vld [vmem:[#allocation2 + $0x120] sm:$0xff]
        %v851 = vld [vmem:[#allocation2 + $0x128] sm:$0xff]
        %v852 = vld [vmem:[#allocation2 + $0x130] sm:$0xff]
        %v853 = vld [vmem:[#allocation2 + $0x138] sm:$0xff]
        %v854 = vld [vmem:[#allocation2 + $0x140] sm:$0xff]
        %v855 = vld [vmem:[#allocation2 + $0x148] sm:$0xff]
        %v856 = vld [vmem:[#allocation2 + $0x150] sm:$0xff]
        %v857 = vld [vmem:[#allocation2 + $0x158] sm:$0xff]
        %v858 = vld [vmem:[#allocation2 + $0x160] sm:$0xff]
        %v859 = vld [vmem:[#allocation2 + $0x168] sm:$0xff]
        %v860 = vld [vmem:[#allocation2 + $0x170] sm:$0xff]
        %v861 = vld [vmem:[#allocation2 + $0x178] sm:$0xff]
        %v862 = vld [vmem:[#allocation2 + $0x180] sm:$0xff]
        %v863 = vld [vmem:[#allocation2 + $0x188] sm:$0xff]
        %v864 = vld [vmem:[#allocation2 + $0x190] sm:$0xff]
        %v865 = vld [vmem:[#allocation2 + $0x198] sm:$0xff]
        %v866 = vld [vmem:[#allocation2 + $0x1a0] sm:$0xff]
        %v867 = vld [vmem:[#allocation2 + $0x1a8] sm:$0xff]
        %v868 = vld [vmem:[#allocation2 + $0x1b0] sm:$0xff]
        %v869 = vld [vmem:[#allocation2 + $0x1b8] sm:$0xff]
        %v870 = vld [vmem:[#allocation2 + $0x1c0] sm:$0xff]
        %v871 = vld [vmem:[#allocation2 + $0x1c8] sm:$0xff]
        %v872 = vld [vmem:[#allocation2 + $0x1d0] sm:$0xff]
        %v873 = vld [vmem:[#allocation2 + $0x1d8] sm:$0xff]
        %v874 = vld [vmem:[#allocation2 + $0x1e0] sm:$0xff]
        %v875 = vld [vmem:[#allocation2 + $0x1e8] sm:$0xff]
        %v876 = vld [vmem:[#allocation2 + $0x1f0] sm:$0xff]
        %v877 = vld [vmem:[#allocation2 + $0x1f8] sm:$0xff]
        %v878 = vld [vmem:[#allocation2 + $0x200] sm:$0xff]
        %v879 = vld [vmem:[#allocation2 + $0x208] sm:$0xff]
        %v880 = vld [vmem:[#allocation2 + $0x210] sm:$0xff]
        %v881 = vld [vmem:[#allocation2 + $0x218] sm:$0xff]
        %v882 = vld [vmem:[#allocation2 + $0x220] sm:$0xff]
        %v883 = vld [vmem:[#allocation2 + $0x228] sm:$0xff]
        %v884 = vld [vmem:[#allocation2 + $0x230] sm:$0xff]
        %v885 = vld [vmem:[#allocation2 + $0x238] sm:$0xff]
        %v886 = vld [vmem:[#allocation2 + $0x240] sm:$0xff]
        %v887 = vld [vmem:[#allocation2 + $0x248] sm:$0xff]
        %v888 = vld [vmem:[#allocation2 + $0x250] sm:$0xff]
        %v889 = vld [vmem:[#allocation2 + $0x258] sm:$0xff]
        %v890 = vld [vmem:[#allocation2 + $0x260] sm:$0xff]
        %v891 = vld [vmem:[#allocation2 + $0x268] sm:$0xff]
        %v892 = vld [vmem:[#allocation2 + $0x270] sm:$0xff]
        %v893 = vld [vmem:[#allocation2 + $0x278] sm:$0xff]
        %v894 = vld [vmem:[#allocation2 + $0x280] sm:$0xff]
        %v895 = vld [vmem:[#allocation2 + $0x288] sm:$0xff]
        %v896 = vld [vmem:[#allocation2 + $0x290] sm:$0xff]
        %v897 = vld [vmem:[#allocation2 + $0x298] sm:$0xff]
        %v898 = vld [vmem:[#allocation2 + $0x2a0] sm:$0xff]
        %v899 = vld [vmem:[#allocation2 + $0x2a8] sm:$0xff]
        %v900 = vld [vmem:[#allocation2 + $0x2b0] sm:$0xff]
        %v901 = vld [vmem:[#allocation2 + $0x2b8] sm:$0xff]
        %v902 = vld [vmem:[#allocation2 + $0x2c0] sm:$0xff]
        %v903 = vld [vmem:[#allocation2 + $0x2c8] sm:$0xff]
        %v904 = vld [vmem:[#allocation2 + $0x2d0] sm:$0xff]
        %v905 = vld [vmem:[#allocation2 + $0x2d8] sm:$0xff]
        %v906 = vld [vmem:[#allocation2 + $0x2e0] sm:$0xff]
        %v907 = vld [vmem:[#allocation2 + $0x2e8] sm:$0xff]
        %v908 = vld [vmem:[#allocation2 + $0x2f0] sm:$0xff]
        %v909 = vld [vmem:[#allocation2 + $0x2f8] sm:$0xff]
        %v910 = vld [vmem:[#allocation2 + $0x300] sm:$0xff]
        %v911 = vld [vmem:[#allocation2 + $0x308] sm:$0xff]
        %v912 = vld [vmem:[#allocation2 + $0x310] sm:$0xff]
        %v913 = vld [vmem:[#allocation2 + $0x318] sm:$0xff]
        %v914 = vld [vmem:[#allocation2 + $0x320] sm:$0xff]
        %v915 = vld [vmem:[#allocation2 + $0x328] sm:$0xff]
        %v916 = vld [vmem:[#allocation2 + $0x330] sm:$0xff]
        %v917 = vld [vmem:[#allocation2 + $0x338] sm:$0xff]
        %v918 = vld [vmem:[#allocation2 + $0x340] sm:$0xff]
        %v919 = vld [vmem:[#allocation2 + $0x348] sm:$0xff]
        %v920 = vld [vmem:[#allocation2 + $0x350] sm:$0xff]
        %v921 = vld [vmem:[#allocation2 + $0x358] sm:$0xff]
        %v922 = vld [vmem:[#allocation2 + $0x360] sm:$0xff]
        %v923 = vld [vmem:[#allocation2 + $0x368] sm:$0xff]
        %v924 = vld [vmem:[#allocation2 + $0x370] sm:$0xff]
        %v925 = vld [vmem:[#allocation2 + $0x378] sm:$0xff]
        %v926 = vld [vmem:[#allocation2 + $0x380] sm:$0xff]
        %v927 = vld [vmem:[#allocation2 + $0x388] sm:$0xff]
        %v928 = vld [vmem:[#allocation2 + $0x390] sm:$0xff]
        %v929 = vld [vmem:[#allocation2 + $0x398] sm:$0xff]
        %v930 = vld [vmem:[#allocation2 + $0x3a0] sm:$0xff]
        %v931 = vld [vmem:[#allocation2 + $0x3a8] sm:$0xff]
        %v932 = vld [vmem:[#allocation2 + $0x3b0] sm:$0xff]
        %v933 = vld [vmem:[#allocation2 + $0x3b8] sm:$0xff]
        %v934 = vld [vmem:[#allocation2 + $0x3c0] sm:$0xff]
        %v935 = vld [vmem:[#allocation2 + $0x3c8] sm:$0xff]
        %v936 = vld [vmem:[#allocation2 + $0x3d0] sm:$0xff]
        %v937 = vld [vmem:[#allocation2 + $0x3d8] sm:$0xff]
        %v938 = vld [vmem:[#allocation2 + $0x3e0] sm:$0xff]
        %v939 = vld [vmem:[#allocation2 + $0x3e8] sm:$0xff]
        %v940 = vld [vmem:[#allocation2 + $0x3f0] sm:$0xff]
        %v941 = vld [vmem:[#allocation2 + $0x3f8] sm:$0xff]
        %v942 = vld [vmem:[#allocation2 + $0x400] sm:$0xff]
        %v943 = vld [vmem:[#allocation2 + $0x408] sm:$0xff]
        %v944 = vld [vmem:[#allocation2 + $0x410] sm:$0xff]
        %v945 = vld [vmem:[#allocation2 + $0x418] sm:$0xff]
        %v946 = vld [vmem:[#allocation2 + $0x420] sm:$0xff]
        %v947 = vld [vmem:[#allocation2 + $0x428] sm:$0xff]
        %v948 = vld [vmem:[#allocation2 + $0x430] sm:$0xff]
        %v949 = vld [vmem:[#allocation2 + $0x438] sm:$0xff]
        %v950 = vld [vmem:[#allocation2 + $0x440] sm:$0xff]
        %v951 = vld [vmem:[#allocation2 + $0x448] sm:$0xff]
        %v952 = vld [vmem:[#allocation2 + $0x450] sm:$0xff]
        %v953 = vld [vmem:[#allocation2 + $0x458] sm:$0xff]
        %v954 = vld [vmem:[#allocation2 + $0x460] sm:$0xff]
        %v955 = vld [vmem:[#allocation2 + $0x468] sm:$0xff]
        %v956 = vld [vmem:[#allocation2 + $0x470] sm:$0xff]
        %v957 = vld [vmem:[#allocation2 + $0x478] sm:$0xff]
        %958 = vmatprep.subr.mxu0 0.0
        %959 = vmatpush1.msra.mxu0 %v814
        %960 = vmatprep.subr.mxu0 0.0
        %961 = vmatpush1.msra.mxu0 %v815
        %962 = vmatprep.subr.mxu0 0.0
        %963 = vmatpush1.msra.mxu0 %v816
        %964 = vmatprep.subr.mxu0 0.0
        %965 = vmatpush1.msra.mxu0 %v817
        %966 = vmatprep.subr.mxu0 0.0
        %967 = vmatpush1.msra.mxu0 %v818
        %968 = vmatprep.subr.mxu0 0.0
        %969 = vmatpush1.msra.mxu0 %v819
        %970 = vmatprep.subr.mxu0 0.0
        %971 = vmatpush1.msra.mxu0 %v820
        %972 = vmatprep.subr.mxu0 0.0
        %973 = vmatpush1.msra.mxu0 %v821
        %974 = vmatprep.subr.mxu0 0.0
        %975 = vmatpush1.msra.mxu0 %v822
        %976 = vmatprep.subr.mxu0 0.0
        %977 = vmatpush1.msra.mxu0 %v823
        %978 = vmatprep.subr.mxu0 0.0
        %979 = vmatpush1.msra.mxu0 %v824
        %980 = vmatprep.subr.mxu0 0.0
        %981 = vmatpush1.msra.mxu0 %v825
        %982 = vmatprep.subr.mxu0 0.0
        %983 = vmatpush1.msra.mxu0 %v826
        %984 = vmatprep.subr.mxu0 0.0
        %985 = vmatpush1.msra.mxu0 %v827
        %986 = vmatprep.subr.mxu0 0.0
        %987 = vmatpush1.msra.mxu0 %v828
        %988 = vmatprep.subr.mxu0 0.0
        %989 = vmatpush1.msra.mxu0 %v829
        %990 = vmatprep.subr.mxu0 0.0
        %991 = vmatpush1.msra.mxu0 %v830
        %992 = vmatprep.subr.mxu0 0.0
        %993 = vmatpush1.msra.mxu0 %v831
        %994 = vmatprep.subr.mxu0 0.0
        %995 = vmatpush1.msra.mxu0 %v832
        %996 = vmatprep.subr.mxu0 0.0
        %997 = vmatpush1.msra.mxu0 %v833
        %998 = vmatprep.subr.mxu0 0.0
        %999 = vmatpush1.msra.mxu0 %v834
        %1000 = vmatprep.subr.mxu0 0.0
        %1001 = vmatpush1.msra.mxu0 %v835
        %1002 = vmatprep.subr.mxu0 0.0
        %1003 = vmatpush1.msra.mxu0 %v836
        %1004 = vmatprep.subr.mxu0 0.0
        %1005 = vmatpush1.msra.mxu0 %v837
        %1006 = vmatprep.subr.mxu0 0.0
        %1007 = vmatpush1.msra.mxu0 %v838
        %1008 = vmatprep.subr.mxu0 0.0
        %1009 = vmatpush1.msra.mxu0 %v839
        %1010 = vmatprep.subr.mxu0 0.0
        %1011 = vmatpush1.msra.mxu0 %v840
        %1012 = vmatprep.subr.mxu0 0.0
        %1013 = vmatpush1.msra.mxu0 %v841
        %1014 = vmatprep.subr.mxu0 0.0
        %1015 = vmatpush1.msra.mxu0 %v842
        %1016 = vmatprep.subr.mxu0 0.0
        %1017 = vmatpush1.msra.mxu0 %v843
        %1018 = vmatprep.subr.mxu0 0.0
        %1019 = vmatpush1.msra.mxu0 %v844
        %1020 = vmatprep.subr.mxu0 0.0
        %1021 = vmatpush1.msra.mxu0 %v845
        %1022 = vmatprep.mubr.f32.mxu0 %v575
        %1023 = vmatmul.mubr.f32.gmra.mrb[0].mxu0 %v506
        %v1024 = vpop.f32.mrb[0].mxu0
        %v1025 = vadd.f32 0.0, %v1024
        %v1026 = vpop.f32.mrb[0].mxu0
        %1027 = vmatprep.mubr.f32.mxu0 %v577
        %1028 = vmatmul.mubr.f32.gmra.mrb[0].mxu0 %v407
        %v1029 = vpop.f32.mrb[0].mxu0
        %v1030 = vadd.f32 0.0, %v1029
        %v1031 = vpop.f32.mrb[0].mxu0
        %1032 = vmatprep.mubr.f32.mxu0 %v580
        %1033 = vmatmul.mubr.f32.gmra.mrb[0].mxu0 %v507
        %v1034 = vpop.f32.mrb[0].mxu0
        %v1035 = vadd.f32 0.0, %v1034
        %v1036 = vpop.f32.mrb[0].mxu0
        %1037 = vmatprep.mubr.f32.mxu0 %v582
        %1038 = vmatmul.mubr.f32.gmra.mrb[0].mxu0 %v410
        %v1039 = vpop.f32.mrb[0].mxu0
        %v1040 = vadd.f32 0.0, %v1039
        %v1041 = vpop.f32.mrb[0].mxu0
        %1042 = vmatprep.mubr.f32.mxu0 %v585
        %1043 = vmatmul.mubr.f32.gmra.mrb[0].mxu0 %v508
        %v1044 = vpop.f32.mrb[0].mxu0
        %v1045 = vadd.f32 0.0, %v1044
        %v1046 = vpop.f32.mrb[0].mxu0
        %1047 = vmatprep.mubr.f32.mxu0 %v587
        %1048 = vmatmul.mubr.f32.gmra.mrb[0].mxu0 %v413
        %v1049 = vpop.f32.mrb[0].mxu0
        %v1050 = vadd.f32 0.0, %v1049
        %v1051 = vpop.f32.mrb[0].mxu0
        %1052 = vmatprep.mubr.f32.mxu0 %v590
        %1053 = vmatmul.mubr.f32.gmra.mrb[0].mxu0 %v509
        %v1054 = vpop.f32.mrb[0].mxu0
        %v1055 = vadd.f32 0.0, %v1054
        %v1056 = vpop.f32.mrb[0].mxu0
        %1057 = vmatprep.mubr.f32.mxu0 %v592
        %1058 = vmatmul.mubr.f32.gmra.mrb[0].mxu0 %v416
        %v1059 = vpop.f32.mrb[0].mxu0
        %v1060 = vadd.f32 0.0, %v1059
        %v1061 = vpop.f32.mrb[0].mxu0
        %1062 = vmatprep.mubr.f32.mxu0 %v595
        %1063 = vmatmul.mubr.f32.gmra.mrb[0].mxu0 %v510
        %v1064 = vpop.f32.mrb[0].mxu0
        %v1065 = vadd.f32 0.0, %v1064
        %v1066 = vpop.f32.mrb[0].mxu0
        %1067 = vmatprep.mubr.f32.mxu0 %v597
        %1068 = vmatmul.mubr.f32.gmra.mrb[0].mxu0 %v419
        %v1069 = vpop.f32.mrb[0].mxu0
        %v1070 = vadd.f32 0.0, %v1069
        %v1071 = vpop.f32.mrb[0].mxu0
        %1072 = vmatprep.mubr.f32.mxu0 %v600
        %1073 = vmatmul.mubr.f32.gmra.mrb[0].mxu0 %v511
        %v1074 = vpop.f32.mrb[0].mxu0
        %v1075 = vadd.f32 0.0, %v1074
        %v1076 = vpop.f32.mrb[0].mxu0
        %1077 = vmatprep.mubr.f32.mxu0 %v602
        %1078 = vmatmul.mubr.f32.gmra.mrb[0].mxu0 %v422
        %v1079 = vpop.f32.mrb[0].mxu0
        %v1080 = vadd.f32 0.0, %v1079
        %v1081 = vpop.f32.mrb[0].mxu0
        %1082 = vmatprep.mubr.f32.mxu0 %v605
        %1083 = vmatmul.mubr.f32.gmra.mrb[0].mxu0 %v512
        %v1084 = vpop.f32.mrb[0].mxu0
        %v1085 = vadd.f32 0.0, %v1084
        %v1086 = vpop.f32.mrb[0].mxu0
        %1087 = vmatprep.mubr.f32.mxu0 %v607
        %1088 = vmatmul.mubr.f32.gmra.mrb[0].mxu0 %v425
        %v1089 = vpop.f32.mrb[0].mxu0
        %v1090 = vadd.f32 0.0, %v1089
        %v1091 = vpop.f32.mrb[0].mxu0
        %1092 = vmatprep.mubr.f32.mxu0 %v610
        %1093 = vmatmul.mubr.f32.gmra.mrb[0].mxu0 %v513
        %v1094 = vpop.f32.mrb[0].mxu0
        %v1095 = vadd.f32 0.0, %v1094
        %v1096 = vpop.f32.mrb[0].mxu0
        %1097 = vmatprep.mubr.f32.mxu0 %v612
        %1098 = vmatmul.mubr.f32.gmra.mrb[0].mxu0 %v428
        %v1099 = vpop.f32.mrb[0].mxu0
        %v1100 = vadd.f32 0.0, %v1099
        %v1101 = vpop.f32.mrb[0].mxu0
        %1102 = vmatprep.mubr.f32.mxu0 %v615
        %1103 = vmatmul.mubr.f32.gmra.mrb[0].mxu0 %v514
        %v1104 = vpop.f32.mrb[0].mxu0
        %v1105 = vadd.f32 0.0, %v1104
        %v1106 = vpop.f32.mrb[0].mxu0
        %1107 = vmatprep.mubr.f32.mxu0 %v617
        %1108 = vmatmul.mubr.f32.gmra.mrb[0].mxu0 %v431
        %v1109 = vpop.f32.mrb[0].mxu0
        %v1110 = vadd.f32 0.0, %v1109
        %v1111 = vpop.f32.mrb[0].mxu0
        %1112 = vmatprep.mubr.f32.mxu0 %v620
        %1113 = vmatmul.mubr.f32.gmra.mrb[0].mxu0 %v515
        %v1114 = vpop.f32.mrb[0].mxu0
        %v1115 = vadd.f32 0.0, %v1114
        %v1116 = vpop.f32.mrb[0].mxu0
        %1117 = vmatprep.mubr.f32.mxu0 %v622
        %1118 = vmatmul.mubr.f32.gmra.mrb[0].mxu0 %v434
        %v1119 = vpop.f32.mrb[0].mxu0
        %v1120 = vadd.f32 0.0, %v1119
        %v1121 = vpop.f32.mrb[0].mxu0
        %1122 = vmatprep.mubr.f32.mxu0 %v625
        %1123 = vmatmul.mubr.f32.gmra.mrb[0].mxu0 %v516
        %v1124 = vpop.f32.mrb[0].mxu0
        %v1125 = vadd.f32 0.0, %v1124
        %v1126 = vpop.f32.mrb[0].mxu0
        %1127 = vmatprep.mubr.f32.mxu0 %v627
        %1128 = vmatmul.mubr.f32.gmra.mrb[0].mxu0 %v437
        %v1129 = vpop.f32.mrb[0].mxu0
        %v1130 = vadd.f32 0.0, %v1129
        %v1131 = vpop.f32.mrb[0].mxu0
        %1132 = vmatprep.mubr.f32.mxu0 %v630
        %1133 = vmatmul.mubr.f32.gmra.mrb[0].mxu0 %v517
        %v1134 = vpop.f32.mrb[0].mxu0
        %v1135 = vadd.f32 0.0, %v1134
        %v1136 = vpop.f32.mrb[0].mxu0
        %1137 = vmatprep.mubr.f32.mxu0 %v632
        %1138 = vmatmul.mubr.f32.gmra.mrb[0].mxu0 %v440
        %v1139 = vpop.f32.mrb[0].mxu0
        %v1140 = vadd.f32 0.0, %v1139
        %v1141 = vpop.f32.mrb[0].mxu0
        %1142 = vmatprep.mubr.f32.mxu0 %v635
        %1143 = vmatmul.mubr.f32.gmra.mrb[0].mxu0 %v518
        %v1144 = vpop.f32.mrb[0].mxu0
        %v1145 = vadd.f32 0.0, %v1144
        %v1146 = vpop.f32.mrb[0].mxu0
        %1147 = vmatprep.mubr.f32.mxu0 %v637
        %1148 = vmatmul.mubr.f32.gmra.mrb[0].mxu0 %v443
        %v1149 = vpop.f32.mrb[0].mxu0
        %v1150 = vadd.f32 0.0, %v1149
        %v1151 = vpop.f32.mrb[0].mxu0
        %1152 = vmatprep.mubr.f32.mxu0 %v640
        %1153 = vmatmul.mubr.f32.gmra.mrb[0].mxu0 %v519
        %v1154 = vpop.f32.mrb[0].mxu0
        %v1155 = vadd.f32 0.0, %v1154
        %v1156 = vpop.f32.mrb[0].mxu0
        %1157 = vmatprep.mubr.f32.mxu0 %v642
        %1158 = vmatmul.mubr.f32.gmra.mrb[0].mxu0 %v446
        %v1159 = vpop.f32.mrb[0].mxu0
        %v1160 = vadd.f32 0.0, %v1159
        %v1161 = vpop.f32.mrb[0].mxu0
        %1162 = vmatprep.mubr.f32.mxu0 %v645
        %1163 = vmatmul.mubr.f32.gmra.mrb[0].mxu0 %v520
        %v1164 = vpop.f32.mrb[0].mxu0
        %v1165 = vadd.f32 0.0, %v1164
        %v1166 = vpop.f32.mrb[0].mxu0
        %1167 = vmatprep.mubr.f32.mxu0 %v647
        %1168 = vmatmul.mubr.f32.gmra.mrb[0].mxu0 %v449
        %v1169 = vpop.f32.mrb[0].mxu0
        %v1170 = vadd.f32 0.0, %v1169
        %v1171 = vpop.f32.mrb[0].mxu0
        %1172 = vmatprep.mubr.f32.mxu0 %v650
        %1173 = vmatmul.mubr.f32.gmra.mrb[0].mxu0 %v521
        %v1174 = vpop.f32.mrb[0].mxu0
        %v1175 = vadd.f32 0.0, %v1174
        %v1176 = vpop.f32.mrb[0].mxu0
        %1177 = vmatprep.mubr.f32.mxu0 %v652
        %1178 = vmatmul.mubr.f32.gmra.mrb[0].mxu0 %v452
        %v1179 = vpop.f32.mrb[0].mxu0
        %v1180 = vadd.f32 0.0, %v1179
        %v1181 = vpop.f32.mrb[0].mxu0
        %1182 = vdwg.mxu0
        %1183 = vmatprep.subr.mxu0 0.0
        %1184 = vmatpush1.msra.mxu0 %v846
        %1185 = vmatprep.subr.mxu0 0.0
        %1186 = vmatpush1.msra.mxu0 %v847
        %1187 = vmatprep.subr.mxu0 0.0
        %1188 = vmatpush1.msra.mxu0 %v848
        %1189 = vmatprep.subr.mxu0 0.0
        %1190 = vmatpush1.msra.mxu0 %v849
        %1191 = vmatprep.subr.mxu0 0.0
        %1192 = vmatpush1.msra.mxu0 %v850
        %1193 = vmatprep.subr.mxu0 0.0
        %1194 = vmatpush1.msra.mxu0 %v851
        %1195 = vmatprep.subr.mxu0 0.0
        %1196 = vmatpush1.msra.mxu0 %v852
        %1197 = vmatprep.subr.mxu0 0.0
        %1198 = vmatpush1.msra.mxu0 %v853
        %1199 = vmatprep.subr.mxu0 0.0
        %1200 = vmatpush1.msra.mxu0 %v854
        %1201 = vmatprep.subr.mxu0 0.0
        %1202 = vmatpush1.msra.mxu0 %v855
        %1203 = vmatprep.subr.mxu0 0.0
        %1204 = vmatpush1.msra.mxu0 %v856
        %1205 = vmatprep.subr.mxu0 0.0
        %1206 = vmatpush1.msra.mxu0 %v857
        %1207 = vmatprep.subr.mxu0 0.0
        %1208 = vmatpush1.msra.mxu0 %v858
        %1209 = vmatprep.subr.mxu0 0.0
        %1210 = vmatpush1.msra.mxu0 %v859
        %1211 = vmatprep.subr.mxu0 0.0
        %1212 = vmatpush1.msra.mxu0 %v860
        %1213 = vmatprep.subr.mxu0 0.0
        %1214 = vmatpush1.msra.mxu0 %v861
        %1215 = vmatprep.subr.mxu0 0.0
        %1216 = vmatpush1.msra.mxu0 %v862
        %1217 = vmatprep.subr.mxu0 0.0
        %1218 = vmatpush1.msra.mxu0 %v863
        %1219 = vmatprep.subr.mxu0 0.0
        %1220 = vmatpush1.msra.mxu0 %v864
        %1221 = vmatprep.subr.mxu0 0.0
        %1222 = vmatpush1.msra.mxu0 %v865
        %1223 = vmatprep.subr.mxu0 0.0
        %1224 = vmatpush1.msra.mxu0 %v866
        %1225 = vmatprep.subr.mxu0 0.0
        %1226 = vmatpush1.msra.mxu0 %v867
        %1227 = vmatprep.subr.mxu0 0.0
        %1228 = vmatpush1.msra.mxu0 %v868
        %1229 = vmatprep.subr.mxu0 0.0
        %1230 = vmatpush1.msra.mxu0 %v869
        %1231 = vmatprep.subr.mxu0 0.0
        %1232 = vmatpush1.msra.mxu0 %v870
        %1233 = vmatprep.subr.mxu0 0.0
        %1234 = vmatpush1.msra.mxu0 %v871
        %1235 = vmatprep.subr.mxu0 0.0
        %1236 = vmatpush1.msra.mxu0 %v872
        %1237 = vmatprep.subr.mxu0 0.0
        %1238 = vmatpush1.msra.mxu0 %v873
        %1239 = vmatprep.subr.mxu0 0.0
        %1240 = vmatpush1.msra.mxu0 %v874
        %1241 = vmatprep.subr.mxu0 0.0
        %1242 = vmatpush1.msra.mxu0 %v875
        %1243 = vmatprep.subr.mxu0 0.0
        %1244 = vmatpush1.msra.mxu0 %v876
        %1245 = vmatprep.subr.mxu0 0.0
        %1246 = vmatpush1.msra.mxu0 %v877
        %1247 = vmatprep.mubr.f32.mxu0 %v507
        %1248 = vmatmul.mubr.f32.gmra.mrb[0].mxu0 %v688
        %v1249 = vpop.f32.mrb[0].mxu0
        %v1250 = vadd.f32 %v1025, %v1249
        %v1251 = vpop.f32.mrb[0].mxu0
        %1252 = vmatprep.mubr.f32.mxu0 %v410
        %1253 = vmatmul.mubr.f32.gmra.mrb[0].mxu0 %v690
        %v1254 = vpop.f32.mrb[0].mxu0
        %v1255 = vadd.f32 %v1030, %v1254
        %v1256 = vpop.f32.mrb[0].mxu0
        %1257 = vmatprep.mubr.f32.mxu0 %v508
        %1258 = vmatmul.mubr.f32.gmra.mrb[0].mxu0 %v693
        %v1259 = vpop.f32.mrb[0].mxu0
        %v1260 = vadd.f32 %v1035, %v1259
        %v1261 = vpop.f32.mrb[0].mxu0
        %1262 = vmatprep.mubr.f32.mxu0 %v413
        %1263 = vmatmul.mubr.f32.gmra.mrb[0].mxu0 %v695
        %v1264 = vpop.f32.mrb[0].mxu0
        %v1265 = vadd.f32 %v1040, %v1264
        %v1266 = vpop.f32.mrb[0].mxu0
        %1267 = vmatprep.mubr.f32.mxu0 %v509
        %1268 = vmatmul.mubr.f32.gmra.mrb[0].mxu0 %v698
        %v1269 = vpop.f32.mrb[0].mxu0
        %v1270 = vadd.f32 %v1045, %v1269
        %v1271 = vpop.f32.mrb[0].mxu0
        %1272 = vmatprep.mubr.f32.mxu0 %v416
        %1273 = vmatmul.mubr.f32.gmra.mrb[0].mxu0 %v700
        %v1274 = vpop.f32.mrb[0].mxu0
        %v1275 = vadd.f32 %v1050, %v1274
        %v1276 = vpop.f32.mrb[0].mxu0
        %1277 = vmatprep.mubr.f32.mxu0 %v510
        %1278 = vmatmul.mubr.f32.gmra.mrb[0].mxu0 %v703
        %v1279 = vpop.f32.mrb[0].mxu0
        %v1280 = vadd.f32 %v1055, %v1279
        %v1281 = vpop.f32.mrb[0].mxu0
        %1282 = vmatprep.mubr.f32.mxu0 %v419
        %1283 = vmatmul.mubr.f32.gmra.mrb[0].mxu0 %v705
        %v1284 = vpop.f32.mrb[0].mxu0
        %v1285 = vadd.f32 %v1060, %v1284
        %v1286 = vpop.f32.mrb[0].mxu0
        %1287 = vmatprep.mubr.f32.mxu0 %v511
        %1288 = vmatmul.mubr.f32.gmra.mrb[0].mxu0 %v708
        %v1289 = vpop.f32.mrb[0].mxu0
        %v1290 = vadd.f32 %v1065, %v1289
        %v1291 = vpop.f32.mrb[0].mxu0
        %1292 = vmatprep.mubr.f32.mxu0 %v422
        %1293 = vmatmul.mubr.f32.gmra.mrb[0].mxu0 %v710
        %v1294 = vpop.f32.mrb[0].mxu0
        %v1295 = vadd.f32 %v1070, %v1294
        %v1296 = vpop.f32.mrb[0].mxu0
        %1297 = vmatprep.mubr.f32.mxu0 %v512
        %1298 = vmatmul.mubr.f32.gmra.mrb[0].mxu0 %v713
        %v1299 = vpop.f32.mrb[0].mxu0
        %v1300 = vadd.f32 %v1075, %v1299
        %v1301 = vpop.f32.mrb[0].mxu0
        %1302 = vmatprep.mubr.f32.mxu0 %v425
        %1303 = vmatmul.mubr.f32.gmra.mrb[0].mxu0 %v715
        %v1304 = vpop.f32.mrb[0].mxu0
        %v1305 = vadd.f32 %v1080, %v1304
        %v1306 = vpop.f32.mrb[0].mxu0
        %1307 = vmatprep.mubr.f32.mxu0 %v513
        %1308 = vmatmul.mubr.f32.gmra.mrb[0].mxu0 %v718
        %v1309 = vpop.f32.mrb[0].mxu0
        %v1310 = vadd.f32 %v1085, %v1309
        %v1311 = vpop.f32.mrb[0].mxu0
        %1312 = vmatprep.mubr.f32.mxu0 %v428
        %1313 = vmatmul.mubr.f32.gmra.mrb[0].mxu0 %v720
        %v1314 = vpop.f32.mrb[0].mxu0
        %v1315 = vadd.f32 %v1090, %v1314
        %v1316 = vpop.f32.mrb[0].mxu0
        %1317 = vmatprep.mubr.f32.mxu0 %v514
        %1318 = vmatmul.mubr.f32.gmra.mrb[0].mxu0 %v723
        %v1319 = vpop.f32.mrb[0].mxu0
        %v1320 = vadd.f32 %v1095, %v1319
        %v1321 = vpop.f32.mrb[0].mxu0
        %1322 = vmatprep.mubr.f32.mxu0 %v431
        %1323 = vmatmul.mubr.f32.gmra.mrb[0].mxu0 %v725
        %v1324 = vpop.f32.mrb[0].mxu0
        %v1325 = vadd.f32 %v1100, %v1324
        %v1326 = vpop.f32.mrb[0].mxu0
        %1327 = vmatprep.mubr.f32.mxu0 %v515
        %1328 = vmatmul.mubr.f32.gmra.mrb[0].mxu0 %v728
        %v1329 = vpop.f32.mrb[0].mxu0
        %v1330 = vadd.f32 %v1105, %v1329
        %v1331 = vpop.f32.mrb[0].mxu0
        %1332 = vmatprep.mubr.f32.mxu0 %v434
        %1333 = vmatmul.mubr.f32.gmra.mrb[0].mxu0 %v730
        %v1334 = vpop.f32.mrb[0].mxu0
        %v1335 = vadd.f32 %v1110, %v1334
        %v1336 = vpop.f32.mrb[0].mxu0
        %1337 = vmatprep.mubr.f32.mxu0 %v516
        %1338 = vmatmul.mubr.f32.gmra.mrb[0].mxu0 %v733
        %v1339 = vpop.f32.mrb[0].mxu0
        %v1340 = vadd.f32 %v1115, %v1339
        %v1341 = vpop.f32.mrb[0].mxu0
        %1342 = vmatprep.mubr.f32.mxu0 %v437
        %1343 = vmatmul.mubr.f32.gmra.mrb[0].mxu0 %v735
        %v1344 = vpop.f32.mrb[0].mxu0
        %v1345 = vadd.f32 %v1120, %v1344
        %v1346 = vpop.f32.mrb[0].mxu0
        %1347 = vmatprep.mubr.f32.mxu0 %v517
        %1348 = vmatmul.mubr.f32.gmra.mrb[0].mxu0 %v738
        %v1349 = vpop.f32.mrb[0].mxu0
        %v1350 = vadd.f32 %v1125, %v1349
        %v1351 = vpop.f32.mrb[0].mxu0
        %1352 = vmatprep.mubr.f32.mxu0 %v440
        %1353 = vmatmul.mubr.f32.gmra.mrb[0].mxu0 %v740
        %v1354 = vpop.f32.mrb[0].mxu0
        %v1355 = vadd.f32 %v1130, %v1354
        %v1356 = vpop.f32.mrb[0].mxu0
        %1357 = vmatprep.mubr.f32.mxu0 %v518
        %1358 = vmatmul.mubr.f32.gmra.mrb[0].mxu0 %v743
        %v1359 = vpop.f32.mrb[0].mxu0
        %v1360 = vadd.f32 %v1135, %v1359
        %v1361 = vpop.f32.mrb[0].mxu0
        %1362 = vmatprep.mubr.f32.mxu0 %v443
        %1363 = vmatmul.mubr.f32.gmra.mrb[0].mxu0 %v745
        %v1364 = vpop.f32.mrb[0].mxu0
        %v1365 = vadd.f32 %v1140, %v1364
        %v1366 = vpop.f32.mrb[0].mxu0
        %1367 = vmatprep.mubr.f32.mxu0 %v519
        %1368 = vmatmul.mubr.f32.gmra.mrb[0].mxu0 %v748
        %v1369 = vpop.f32.mrb[0].mxu0
        %v1370 = vadd.f32 %v1145, %v1369
        %v1371 = vpop.f32.mrb[0].mxu0
        %1372 = vmatprep.mubr.f32.mxu0 %v446
        %1373 = vmatmul.mubr.f32.gmra.mrb[0].mxu0 %v750
        %v1374 = vpop.f32.mrb[0].mxu0
        %v1375 = vadd.f32 %v1150, %v1374
        %v1376 = vpop.f32.mrb[0].mxu0
        %1377 = vmatprep.mubr.f32.mxu0 %v520
        %1378 = vmatmul.mubr.f32.gmra.mrb[0].mxu0 %v753
        %v1379 = vpop.f32.mrb[0].mxu0
        %v1380 = vadd.f32 %v1155, %v1379
        %v1381 = vpop.f32.mrb[0].mxu0
        %1382 = vmatprep.mubr.f32.mxu0 %v449
        %1383 = vmatmul.mubr.f32.gmra.mrb[0].mxu0 %v755
        %v1384 = vpop.f32.mrb[0].mxu0
        %v1385 = vadd.f32 %v1160, %v1384
        %v1386 = vpop.f32.mrb[0].mxu0
        %1387 = vmatprep.mubr.f32.mxu0 %v521
        %1388 = vmatmul.mubr.f32.gmra.mrb[0].mxu0 %v758
        %v1389 = vpop.f32.mrb[0].mxu0
        %v1390 = vadd.f32 %v1165, %v1389
        %v1391 = vpop.f32.mrb[0].mxu0
        %1392 = vmatprep.mubr.f32.mxu0 %v452
        %1393 = vmatmul.mubr.f32.gmra.mrb[0].mxu0 %v760
        %v1394 = vpop.f32.mrb[0].mxu0
        %v1395 = vadd.f32 %v1170, %v1394
        %v1396 = vpop.f32.mrb[0].mxu0
        %1397 = vmatprep.mubr.f32.mxu0 %v522
        %1398 = vmatmul.mubr.f32.gmra.mrb[0].mxu0 %v763
        %v1399 = vpop.f32.mrb[0].mxu0
        %v1400 = vadd.f32 %v1175, %v1399
        %v1401 = vpop.f32.mrb[0].mxu0
        %1402 = vmatprep.mubr.f32.mxu0 %v455
        %1403 = vmatmul.mubr.f32.gmra.mrb[0].mxu0 %v765
        %v1404 = vpop.f32.mrb[0].mxu0
        %v1405 = vadd.f32 %v1180, %v1404
        %v1406 = vpop.f32.mrb[0].mxu0
        %1407 = vdwg.mxu0
        %1408 = vmatprep.subr.mxu0 0.0
        %1409 = vmatpush1.msra.mxu0 %v878
        %1410 = vmatprep.subr.mxu0 0.0
        %1411 = vmatpush1.msra.mxu0 %v879
        %1412 = vmatprep.subr.mxu0 0.0
        %1413 = vmatpush1.msra.mxu0 %v880
        %1414 = vmatprep.subr.mxu0 0.0
        %1415 = vmatpush1.msra.mxu0 %v881
        %1416 = vmatprep.subr.mxu0 0.0
        %1417 = vmatpush1.msra.mxu0 %v882
        %1418 = vmatprep.subr.mxu0 0.0
        %1419 = vmatpush1.msra.mxu0 %v883
        %1420 = vmatprep.subr.mxu0 0.0
        %1421 = vmatpush1.msra.mxu0 %v884
        %1422 = vmatprep.subr.mxu0 0.0
        %1423 = vmatpush1.msra.mxu0 %v885
        %1424 = vmatprep.subr.mxu0 0.0
        %1425 = vmatpush1.msra.mxu0 %v886
        %1426 = vmatprep.subr.mxu0 0.0
        %1427 = vmatpush1.msra.mxu0 %v887
        %1428 = vmatprep.subr.mxu0 0.0
        %1429 = vmatpush1.msra.mxu0 %v888
        %1430 = vmatprep.subr.mxu0 0.0
        %1431 = vmatpush1.msra.mxu0 %v889
        %1432 = vmatprep.subr.mxu0 0.0
        %1433 = vmatpush1.msra.mxu0 %v890
        %1434 = vmatprep.subr.mxu0 0.0
        %1435 = vmatpush1.msra.mxu0 %v891
        %1436 = vmatprep.subr.mxu0 0.0
        %1437 = vmatpush1.msra.mxu0 %v892
        %1438 = vmatprep.subr.mxu0 0.0
        %1439 = vmatpush1.msra.mxu0 %v893
        %1440 = vmatprep.subr.mxu0 0.0
        %1441 = vmatpush1.msra.mxu0 %v894
        %1442 = vmatprep.subr.mxu0 0.0
        %1443 = vmatpush1.msra.mxu0 %v895
        %1444 = vmatprep.subr.mxu0 0.0
        %1445 = vmatpush1.msra.mxu0 %v896
        %1446 = vmatprep.subr.mxu0 0.0
        %1447 = vmatpush1.msra.mxu0 %v897
        %1448 = vmatprep.subr.mxu0 0.0
        %1449 = vmatpush1.msra.mxu0 %v898
        %1450 = vmatprep.subr.mxu0 0.0
        %1451 = vmatpush1.msra.mxu0 %v899
        %1452 = vmatprep.subr.mxu0 0.0
        %1453 = vmatpush1.msra.mxu0 %v900
        %1454 = vmatprep.subr.mxu0 0.0
        %1455 = vmatpush1.msra.mxu0 %v901
        %1456 = vmatprep.subr.mxu0 0.0
        %1457 = vmatpush1.msra.mxu0 %v902
        %1458 = vmatprep.subr.mxu0 0.0
        %1459 = vmatpush1.msra.mxu0 %v903
        %1460 = vmatprep.subr.mxu0 0.0
        %1461 = vmatpush1.msra.mxu0 %v904
        %1462 = vmatprep.subr.mxu0 0.0
        %1463 = vmatpush1.msra.mxu0 %v905
        %1464 = vmatprep.subr.mxu0 0.0
        %1465 = vmatpush1.msra.mxu0 %v906
        %1466 = vmatprep.subr.mxu0 0.0
        %1467 = vmatpush1.msra.mxu0 %v907
        %1468 = vmatprep.subr.mxu0 0.0
        %1469 = vmatpush1.msra.mxu0 %v908
        %1470 = vmatprep.subr.mxu0 0.0
        %1471 = vmatpush1.msra.mxu0 %v909
        %1472 = vmatprep.mubr.f32.mxu0 %v693
        %1473 = vmatmul.mubr.f32.gmra.mrb[0].mxu0 %v580
        %v1474 = vpop.f32.mrb[0].mxu0
        %v1475 = vadd.f32 %v1250, %v1474
        %v1476 = vpop.f32.mrb[0].mxu0
        %1477 = vmatprep.mubr.f32.mxu0 %v695
        %1478 = vmatmul.mubr.f32.gmra.mrb[0].mxu0 %v582
        %v1479 = vpop.f32.mrb[0].mxu0
        %v1480 = vadd.f32 %v1255, %v1479
        %v1481 = vpop.f32.mrb[0].mxu0
        %1482 = vmatprep.mubr.f32.mxu0 %v698
        %1483 = vmatmul.mubr.f32.gmra.mrb[0].mxu0 %v585
        %v1484 = vpop.f32.mrb[0].mxu0
        %v1485 = vadd.f32 %v1260, %v1484
        %v1486 = vpop.f32.mrb[0].mxu0
        %1487 = vmatprep.mubr.f32.mxu0 %v700
        %1488 = vmatmul.mubr.f32.gmra.mrb[0].mxu0 %v587
        %v1489 = vpop.f32.mrb[0].mxu0
        %v1490 = vadd.f32 %v1265, %v1489
        %v1491 = vpop.f32.mrb[0].mxu0
        %1492 = vmatprep.mubr.f32.mxu0 %v703
        %1493 = vmatmul.mubr.f32.gmra.mrb[0].mxu0 %v590
        %v1494 = vpop.f32.mrb[0].mxu0
        %v1495 = vadd.f32 %v1270, %v1494
        %v1496 = vpop.f32.mrb[0].mxu0
        %1497 = vmatprep.mubr.f32.mxu0 %v705
        %1498 = vmatmul.mubr.f32.gmra.mrb[0].mxu0 %v592
        %v1499 = vpop.f32.mrb[0].mxu0
        %v1500 = vadd.f32 %v1275, %v1499
        %v1501 = vpop.f32.mrb[0].mxu0
        %1502 = vmatprep.mubr.f32.mxu0 %v708
        %1503 = vmatmul.mubr.f32.gmra.mrb[0].mxu0 %v595
        %v1504 = vpop.f32.mrb[0].mxu0
        %v1505 = vadd.f32 %v1280, %v1504
        %v1506 = vpop.f32.mrb[0].mxu0
        %1507 = vmatprep.mubr.f32.mxu0 %v710
        %1508 = vmatmul.mubr.f32.gmra.mrb[0].mxu0 %v597
        %v1509 = vpop.f32.mrb[0].mxu0
        %v1510 = vadd.f32 %v1285, %v1509
        %v1511 = vpop.f32.mrb[0].mxu0
        %1512 = vmatprep.mubr.f32.mxu0 %v713
        %1513 = vmatmul.mubr.f32.gmra.mrb[0].mxu0 %v600
        %v1514 = vpop.f32.mrb[0].mxu0
        %v1515 = vadd.f32 %v1290, %v1514
        %v1516 = vpop.f32.mrb[0].mxu0
        %1517 = vmatprep.mubr.f32.mxu0 %v715
        %1518 = vmatmul.mubr.f32.gmra.mrb[0].mxu0 %v602
        %v1519 = vpop.f32.mrb[0].mxu0
        %v1520 = vadd.f32 %v1295, %v1519
        %v1521 = vpop.f32.mrb[0].mxu0
        %1522 = vmatprep.mubr.f32.mxu0 %v718
        %1523 = vmatmul.mubr.f32.gmra.mrb[0].mxu0 %v605
        %v1524 = vpop.f32.mrb[0].mxu0
        %v1525 = vadd.f32 %v1300, %v1524
        %v1526 = vpop.f32.mrb[0].mxu0
        %1527 = vmatprep.mubr.f32.mxu0 %v720
        %1528 = vmatmul.mubr.f32.gmra.mrb[0].mxu0 %v607
        %v1529 = vpop.f32.mrb[0].mxu0
        %v1530 = vadd.f32 %v1305, %v1529
        %v1531 = vpop.f32.mrb[0].mxu0
        %1532 = vmatprep.mubr.f32.mxu0 %v723
        %1533 = vmatmul.mubr.f32.gmra.mrb[0].mxu0 %v610
        %v1534 = vpop.f32.mrb[0].mxu0
        %v1535 = vadd.f32 %v1310, %v1534
        %v1536 = vpop.f32.mrb[0].mxu0
        %1537 = vmatprep.mubr.f32.mxu0 %v725
        %1538 = vmatmul.mubr.f32.gmra.mrb[0].mxu0 %v612
        %v1539 = vpop.f32.mrb[0].mxu0
        %v1540 = vadd.f32 %v1315, %v1539
        %v1541 = vpop.f32.mrb[0].mxu0
        %1542 = vmatprep.mubr.f32.mxu0 %v728
        %1543 = vmatmul.mubr.f32.gmra.mrb[0].mxu0 %v615
        %v1544 = vpop.f32.mrb[0].mxu0
        %v1545 = vadd.f32 %v1320, %v1544
        %v1546 = vpop.f32.mrb[0].mxu0
        %1547 = vmatprep.mubr.f32.mxu0 %v730
        %1548 = vmatmul.mubr.f32.gmra.mrb[0].mxu0 %v617
        %v1549 = vpop.f32.mrb[0].mxu0
        %v1550 = vadd.f32 %v1325, %v1549
        %v1551 = vpop.f32.mrb[0].mxu0
        %1552 = vmatprep.mubr.f32.mxu0 %v733
        %1553 = vmatmul.mubr.f32.gmra.mrb[0].mxu0 %v620
        %v1554 = vpop.f32.mrb[0].mxu0
        %v1555 = vadd.f32 %v1330, %v1554
        %v1556 = vpop.f32.mrb[0].mxu0
        %1557 = vmatprep.mubr.f32.mxu0 %v735
        %1558 = vmatmul.mubr.f32.gmra.mrb[0].mxu0 %v622
        %v1559 = vpop.f32.mrb[0].mxu0
        %v1560 = vadd.f32 %v1335, %v1559
        %v1561 = vpop.f32.mrb[0].mxu0
        %1562 = vmatprep.mubr.f32.mxu0 %v738
        %1563 = vmatmul.mubr.f32.gmra.mrb[0].mxu0 %v625
        %v1564 = vpop.f32.mrb[0].mxu0
        %v1565 = vadd.f32 %v1340, %v1564
        %v1566 = vpop.f32.mrb[0].mxu0
        %1567 = vmatprep.mubr.f32.mxu0 %v740
        %1568 = vmatmul.mubr.f32.gmra.mrb[0].mxu0 %v627
        %v1569 = vpop.f32.mrb[0].mxu0
        %v1570 = vadd.f32 %v1345, %v1569
        %v1571 = vpop.f32.mrb[0].mxu0
        %1572 = vmatprep.mubr.f32.mxu0 %v743
        %1573 = vmatmul.mubr.f32.gmra.mrb[0].mxu0 %v630
        %v1574 = vpop.f32.mrb[0].mxu0
        %v1575 = vadd.f32 %v1350, %v1574
        %v1576 = vpop.f32.mrb[0].mxu0
        %1577 = vmatprep.mubr.f32.mxu0 %v745
        %1578 = vmatmul.mubr.f32.gmra.mrb[0].mxu0 %v632
        %v1579 = vpop.f32.mrb[0].mxu0
        %v1580 = vadd.f32 %v1355, %v1579
        %v1581 = vpop.f32.mrb[0].mxu0
        %1582 = vmatprep.mubr.f32.mxu0 %v748
        %1583 = vmatmul.mubr.f32.gmra.mrb[0].mxu0 %v635
        %v1584 = vpop.f32.mrb[0].mxu0
        %v1585 = vadd.f32 %v1360, %v1584
        %v1586 = vpop.f32.mrb[0].mxu0
        %1587 = vmatprep.mubr.f32.mxu0 %v750
        %1588 = vmatmul.mubr.f32.gmra.mrb[0].mxu0 %v637
        %v1589 = vpop.f32.mrb[0].mxu0
        %v1590 = vadd.f32 %v1365, %v1589
        %v1591 = vpop.f32.mrb[0].mxu0
        %1592 = vmatprep.mubr.f32.mxu0 %v753
        %1593 = vmatmul.mubr.f32.gmra.mrb[0].mxu0 %v640
        %v1594 = vpop.f32.mrb[0].mxu0
        %v1595 = vadd.f32 %v1370, %v1594
        %v1596 = vpop.f32.mrb[0].mxu0
        %1597 = vmatprep.mubr.f32.mxu0 %v755
        %1598 = vmatmul.mubr.f32.gmra.mrb[0].mxu0 %v642
        %v1599 = vpop.f32.mrb[0].mxu0
        %v1600 = vadd.f32 %v1375, %v1599
        %v1601 = vpop.f32.mrb[0].mxu0
        %1602 = vmatprep.mubr.f32.mxu0 %v758
        %1603 = vmatmul.mubr.f32.gmra.mrb[0].mxu0 %v645
        %v1604 = vpop.f32.mrb[0].mxu0
        %v1605 = vadd.f32 %v1380, %v1604
        %v1606 = vpop.f32.mrb[0].mxu0
        %1607 = vmatprep.mubr.f32.mxu0 %v760
        %1608 = vmatmul.mubr.f32.gmra.mrb[0].mxu0 %v647
        %v1609 = vpop.f32.mrb[0].mxu0
        %v1610 = vadd.f32 %v1385, %v1609
        %v1611 = vpop.f32.mrb[0].mxu0
        %1612 = vmatprep.mubr.f32.mxu0 %v763
        %1613 = vmatmul.mubr.f32.gmra.mrb[0].mxu0 %v650
        %v1614 = vpop.f32.mrb[0].mxu0
        %v1615 = vadd.f32 %v1390, %v1614
        %v1616 = vpop.f32.mrb[0].mxu0
        %1617 = vmatprep.mubr.f32.mxu0 %v765
        %1618 = vmatmul.mubr.f32.gmra.mrb[0].mxu0 %v652
        %v1619 = vpop.f32.mrb[0].mxu0
        %v1620 = vadd.f32 %v1395, %v1619
        %v1621 = vpop.f32.mrb[0].mxu0
        %1622 = vmatprep.mubr.f32.mxu0 %v809
        %1623 = vmatmul.mubr.f32.gmra.mrb[0].mxu0 %v802
        %v1624 = vpop.f32.mrb[0].mxu0
        %v1625 = vadd.f32 %v1400, %v1624
        %v1626 = vpop.f32.mrb[0].mxu0
        %1627 = vmatprep.mubr.f32.mxu0 %v811
        %1628 = vmatmul.mubr.f32.gmra.mrb[0].mxu0 %v804
        %v1629 = vpop.f32.mrb[0].mxu0
        %v1630 = vadd.f32 %v1405, %v1629
        %v1631 = vpop.f32.mrb[0].mxu0
        %1632 = vdwg.mxu0
        %1633 = vmatprep.subr.mxu0 0.0
        %1634 = vmatpush1.msra.mxu0 %v910
        %1635 = vmatprep.subr.mxu0 0.0
        %1636 = vmatpush1.msra.mxu0 %v911
        %1637 = vmatprep.subr.mxu0 0.0
        %1638 = vmatpush1.msra.mxu0 %v912
        %1639 = vmatprep.subr.mxu0 0.0
        %1640 = vmatpush1.msra.mxu0 %v913
        %1641 = vmatprep.subr.mxu0 0.0
        %1642 = vmatpush1.msra.mxu0 %v914
        %1643 = vmatprep.subr.mxu0 0.0
        %1644 = vmatpush1.msra.mxu0 %v915
        %1645 = vmatprep.subr.mxu0 0.0
        %1646 = vmatpush1.msra.mxu0 %v916
        %1647 = vmatprep.subr.mxu0 0.0
        %1648 = vmatpush1.msra.mxu0 %v917
        %1649 = vmatprep.subr.mxu0 0.0
        %1650 = vmatpush1.msra.mxu0 %v918
        %1651 = vmatprep.subr.mxu0 0.0
        %1652 = vmatpush1.msra.mxu0 %v919
        %1653 = vmatprep.subr.mxu0 0.0
        %1654 = vmatpush1.msra.mxu0 %v920
        %1655 = vmatprep.subr.mxu0 0.0
        %1656 = vmatpush1.msra.mxu0 %v921
        %1657 = vmatprep.subr.mxu0 0.0
        %1658 = vmatpush1.msra.mxu0 %v922
        %1659 = vmatprep.subr.mxu0 0.0
        %1660 = vmatpush1.msra.mxu0 %v923
        %1661 = vmatprep.subr.mxu0 0.0
        %1662 = vmatpush1.msra.mxu0 %v924
        %1663 = vmatprep.subr.mxu0 0.0
        %1664 = vmatpush1.msra.mxu0 %v925
        %1665 = vmatprep.subr.mxu0 0.0
        %1666 = vmatpush1.msra.mxu0 %v926
        %1667 = vmatprep.subr.mxu0 0.0
        %1668 = vmatpush1.msra.mxu0 %v927
        %1669 = vmatprep.subr.mxu0 0.0
        %1670 = vmatpush1.msra.mxu0 %v928
        %1671 = vmatprep.subr.mxu0 0.0
        %1672 = vmatpush1.msra.mxu0 %v929
        %1673 = vmatprep.subr.mxu0 0.0
        %1674 = vmatpush1.msra.mxu0 %v930
        %1675 = vmatprep.subr.mxu0 0.0
        %1676 = vmatpush1.msra.mxu0 %v931
        %1677 = vmatprep.subr.mxu0 0.0
        %1678 = vmatpush1.msra.mxu0 %v932
        %1679 = vmatprep.subr.mxu0 0.0
        %1680 = vmatpush1.msra.mxu0 %v933
        %1681 = vmatprep.subr.mxu0 0.0
        %1682 = vmatpush1.msra.mxu0 %v934
        %1683 = vmatprep.subr.mxu0 0.0
        %1684 = vmatpush1.msra.mxu0 %v935
        %1685 = vmatprep.subr.mxu0 0.0
        %1686 = vmatpush1.msra.mxu0 %v936
        %1687 = vmatprep.subr.mxu0 0.0
        %1688 = vmatpush1.msra.mxu0 %v937
        %1689 = vmatprep.subr.mxu0 0.0
        %1690 = vmatpush1.msra.mxu0 %v938
        %1691 = vmatprep.subr.mxu0 0.0
        %1692 = vmatpush1.msra.mxu0 %v939
        %1693 = vmatprep.subr.mxu0 0.0
        %1694 = vmatpush1.msra.mxu0 %v940
        %1695 = vmatprep.subr.mxu0 0.0
        %1696 = vmatpush1.msra.mxu0 %v941
        %1697 = vmatprep.mubr.f32.mxu0 %v585
        %1698 = vmatmul.mubr.f32.gmra.mrb[0].mxu0 %v508
        %v1699 = vpop.f32.mrb[0].mxu0
        %v1700 = vadd.f32 %v1475, %v1699
        %v1701 = vpop.f32.mrb[0].mxu0
        %1702 = vmatprep.mubr.f32.mxu0 %v587
        %1703 = vmatmul.mubr.f32.gmra.mrb[0].mxu0 %v413
        %v1704 = vpop.f32.mrb[0].mxu0
        %v1705 = vadd.f32 %v1480, %v1704
        %v1706 = vpop.f32.mrb[0].mxu0
        %1707 = vmatprep.mubr.f32.mxu0 %v590
        %1708 = vmatmul.mubr.f32.gmra.mrb[0].mxu0 %v509
        %v1709 = vpop.f32.mrb[0].mxu0
        %v1710 = vadd.f32 %v1485, %v1709
        %v1711 = vpop.f32.mrb[0].mxu0
        %1712 = vmatprep.mubr.f32.mxu0 %v592
        %1713 = vmatmul.mubr.f32.gmra.mrb[0].mxu0 %v416
        %v1714 = vpop.f32.mrb[0].mxu0
        %v1715 = vadd.f32 %v1490, %v1714
        %v1716 = vpop.f32.mrb[0].mxu0
        %1717 = vmatprep.mubr.f32.mxu0 %v595
        %1718 = vmatmul.mubr.f32.gmra.mrb[0].mxu0 %v510
        %v1719 = vpop.f32.mrb[0].mxu0
        %v1720 = vadd.f32 %v1495, %v1719
        %v1721 = vpop.f32.mrb[0].mxu0
        %1722 = vmatprep.mubr.f32.mxu0 %v597
        %1723 = vmatmul.mubr.f32.gmra.mrb[0].mxu0 %v419
        %v1724 = vpop.f32.mrb[0].mxu0
        %v1725 = vadd.f32 %v1500, %v1724
        %v1726 = vpop.f32.mrb[0].mxu0
        %1727 = vmatprep.mubr.f32.mxu0 %v600
        %1728 = vmatmul.mubr.f32.gmra.mrb[0].mxu0 %v511
        %v1729 = vpop.f32.mrb[0].mxu0
        %v1730 = vadd.f32 %v1505, %v1729
        %v1731 = vpop.f32.mrb[0].mxu0
        %1732 = vmatprep.mubr.f32.mxu0 %v602
        %1733 = vmatmul.mubr.f32.gmra.mrb[0].mxu0 %v422
        %v1734 = vpop.f32.mrb[0].mxu0
        %v1735 = vadd.f32 %v1510, %v1734
        %v1736 = vpop.f32.mrb[0].mxu0
        %1737 = vmatprep.mubr.f32.mxu0 %v605
        %1738 = vmatmul.mubr.f32.gmra.mrb[0].mxu0 %v512
        %v1739 = vpop.f32.mrb[0].mxu0
        %v1740 = vadd.f32 %v1515, %v1739
        %v1741 = vpop.f32.mrb[0].mxu0
        %1742 = vmatprep.mubr.f32.mxu0 %v607
        %1743 = vmatmul.mubr.f32.gmra.mrb[0].mxu0 %v425
        %v1744 = vpop.f32.mrb[0].mxu0
        %v1745 = vadd.f32 %v1520, %v1744
        %v1746 = vpop.f32.mrb[0].mxu0
        %1747 = vmatprep.mubr.f32.mxu0 %v610
        %1748 = vmatmul.mubr.f32.gmra.mrb[0].mxu0 %v513
        %v1749 = vpop.f32.mrb[0].mxu0
        %v1750 = vadd.f32 %v1525, %v1749
        %v1751 = vpop.f32.mrb[0].mxu0
        %1752 = vmatprep.mubr.f32.mxu0 %v612
        %1753 = vmatmul.mubr.f32.gmra.mrb[0].mxu0 %v428
        %v1754 = vpop.f32.mrb[0].mxu0
        %v1755 = vadd.f32 %v1530, %v1754
        %v1756 = vpop.f32.mrb[0].mxu0
        %1757 = vmatprep.mubr.f32.mxu0 %v615
        %1758 = vmatmul.mubr.f32.gmra.mrb[0].mxu0 %v514
        %v1759 = vpop.f32.mrb[0].mxu0
        %v1760 = vadd.f32 %v1535, %v1759
        %v1761 = vpop.f32.mrb[0].mxu0
        %1762 = vmatprep.mubr.f32.mxu0 %v617
        %1763 = vmatmul.mubr.f32.gmra.mrb[0].mxu0 %v431
        %v1764 = vpop.f32.mrb[0].mxu0
        %v1765 = vadd.f32 %v1540, %v1764
        %v1766 = vpop.f32.mrb[0].mxu0
        %1767 = vmatprep.mubr.f32.mxu0 %v620
        %1768 = vmatmul.mubr.f32.gmra.mrb[0].mxu0 %v515
        %v1769 = vpop.f32.mrb[0].mxu0
        %v1770 = vadd.f32 %v1545, %v1769
        %v1771 = vpop.f32.mrb[0].mxu0
        %1772 = vmatprep.mubr.f32.mxu0 %v622
        %1773 = vmatmul.mubr.f32.gmra.mrb[0].mxu0 %v434
        %v1774 = vpop.f32.mrb[0].mxu0
        %v1775 = vadd.f32 %v1550, %v1774
        %v1776 = vpop.f32.mrb[0].mxu0
        %1777 = vmatprep.mubr.f32.mxu0 %v625
        %1778 = vmatmul.mubr.f32.gmra.mrb[0].mxu0 %v516
        %v1779 = vpop.f32.mrb[0].mxu0
        %v1780 = vadd.f32 %v1555, %v1779
        %v1781 = vpop.f32.mrb[0].mxu0
        %1782 = vmatprep.mubr.f32.mxu0 %v627
        %1783 = vmatmul.mubr.f32.gmra.mrb[0].mxu0 %v437
        %v1784 = vpop.f32.mrb[0].mxu0
        %v1785 = vadd.f32 %v1560, %v1784
        %v1786 = vpop.f32.mrb[0].mxu0
        %1787 = vmatprep.mubr.f32.mxu0 %v630
        %1788 = vmatmul.mubr.f32.gmra.mrb[0].mxu0 %v517
        %v1789 = vpop.f32.mrb[0].mxu0
        %v1790 = vadd.f32 %v1565, %v1789
        %v1791 = vpop.f32.mrb[0].mxu0
        %1792 = vmatprep.mubr.f32.mxu0 %v632
        %1793 = vmatmul.mubr.f32.gmra.mrb[0].mxu0 %v440
        %v1794 = vpop.f32.mrb[0].mxu0
        %v1795 = vadd.f32 %v1570, %v1794
        %v1796 = vpop.f32.mrb[0].mxu0
        %1797 = vmatprep.mubr.f32.mxu0 %v635
        %1798 = vmatmul.mubr.f32.gmra.mrb[0].mxu0 %v518
        %v1799 = vpop.f32.mrb[0].mxu0
        %v1800 = vadd.f32 %v1575, %v1799
        %v1801 = vpop.f32.mrb[0].mxu0
        %1802 = vmatprep.mubr.f32.mxu0 %v637
        %1803 = vmatmul.mubr.f32.gmra.mrb[0].mxu0 %v443
        %v1804 = vpop.f32.mrb[0].mxu0
        %v1805 = vadd.f32 %v1580, %v1804
        %v1806 = vpop.f32.mrb[0].mxu0
        %1807 = vmatprep.mubr.f32.mxu0 %v640
        %1808 = vmatmul.mubr.f32.gmra.mrb[0].mxu0 %v519
        %v1809 = vpop.f32.mrb[0].mxu0
        %v1810 = vadd.f32 %v1585, %v1809
        %v1811 = vpop.f32.mrb[0].mxu0
        %1812 = vmatprep.mubr.f32.mxu0 %v642
        %1813 = vmatmul.mubr.f32.gmra.mrb[0].mxu0 %v446
        %v1814 = vpop.f32.mrb[0].mxu0
        %v1815 = vadd.f32 %v1590, %v1814
        %v1816 = vpop.f32.mrb[0].mxu0
        %1817 = vmatprep.mubr.f32.mxu0 %v645
        %1818 = vmatmul.mubr.f32.gmra.mrb[0].mxu0 %v520
        %v1819 = vpop.f32.mrb[0].mxu0
        %v1820 = vadd.f32 %v1595, %v1819
        %v1821 = vpop.f32.mrb[0].mxu0
        %1822 = vmatprep.mubr.f32.mxu0 %v647
        %1823 = vmatmul.mubr.f32.gmra.mrb[0].mxu0 %v449
        %v1824 = vpop.f32.mrb[0].mxu0
        %v1825 = vadd.f32 %v1600, %v1824
        %v1826 = vpop.f32.mrb[0].mxu0
        %1827 = vmatprep.mubr.f32.mxu0 %v650
        %1828 = vmatmul.mubr.f32.gmra.mrb[0].mxu0 %v521
        %v1829 = vpop.f32.mrb[0].mxu0
        %v1830 = vadd.f32 %v1605, %v1829
        %v1831 = vpop.f32.mrb[0].mxu0
        %1832 = vmatprep.mubr.f32.mxu0 %v652
        %1833 = vmatmul.mubr.f32.gmra.mrb[0].mxu0 %v452
        %v1834 = vpop.f32.mrb[0].mxu0
        %v1835 = vadd.f32 %v1610, %v1834
        %v1836 = vpop.f32.mrb[0].mxu0
        %1837 = vmatprep.mubr.f32.mxu0 %v802
        %1838 = vmatmul.mubr.f32.gmra.mrb[0].mxu0 %v522
        %v1839 = vpop.f32.mrb[0].mxu0
        %v1840 = vadd.f32 %v1615, %v1839
        %v1841 = vpop.f32.mrb[0].mxu0
        %1842 = vmatprep.mubr.f32.mxu0 %v804
        %1843 = vmatmul.mubr.f32.gmra.mrb[0].mxu0 %v455
        %v1844 = vpop.f32.mrb[0].mxu0
        %v1845 = vadd.f32 %v1620, %v1844
        %v1846 = vpop.f32.mrb[0].mxu0
        %1847 = vmatprep.mubr.f32.mxu0 %v575
        %1848 = vmatmul.mubr.f32.gmra.mrb[0].mxu0 %v506
        %v1849 = vpop.f32.mrb[0].mxu0
        %v1850 = vadd.f32 %v1625, %v1849
        %v1851 = vpop.f32.mrb[0].mxu0
        %1852 = vmatprep.mubr.f32.mxu0 %v577
        %1853 = vmatmul.mubr.f32.gmra.mrb[0].mxu0 %v407
        %v1854 = vpop.f32.mrb[0].mxu0
        %v1855 = vadd.f32 %v1630, %v1854
        %v1856 = vpop.f32.mrb[0].mxu0
        %1857 = vdwg.mxu0
        %1858 = vmatprep.subr.mxu0 0.0
        %1859 = vmatpush1.msra.mxu0 %v942
        %1860 = vmatprep.subr.mxu0 0.0
        %1861 = vmatpush1.msra.mxu0 %v943
        %1862 = vmatprep.subr.mxu0 0.0
        %1863 = vmatpush1.msra.mxu0 %v944
        %1864 = vmatprep.subr.mxu0 0.0
        %1865 = vmatpush1.msra.mxu0 %v945
        %1866 = vmatprep.subr.mxu0 0.0
        %1867 = vmatpush1.msra.mxu0 %v946
        %1868 = vmatprep.subr.mxu0 0.0
        %1869 = vmatpush1.msra.mxu0 %v947
        %1870 = vmatprep.subr.mxu0 0.0
        %1871 = vmatpush1.msra.mxu0 %v948
        %1872 = vmatprep.subr.mxu0 0.0
        %1873 = vmatpush1.msra.mxu0 %v949
        %1874 = vmatprep.subr.mxu0 0.0
        %1875 = vmatpush1.msra.mxu0 %v950
        %1876 = vmatprep.subr.mxu0 0.0
        %1877 = vmatpush1.msra.mxu0 %v951
        %1878 = vmatprep.subr.mxu0 0.0
        %1879 = vmatpush1.msra.mxu0 %v952
        %1880 = vmatprep.subr.mxu0 0.0
        %1881 = vmatpush1.msra.mxu0 %v953
        %1882 = vmatprep.subr.mxu0 0.0
        %1883 = vmatpush1.msra.mxu0 %v954
        %1884 = vmatprep.subr.mxu0 0.0
        %1885 = vmatpush1.msra.mxu0 %v955
        %1886 = vmatprep.subr.mxu0 0.0
        %1887 = vmatpush1.msra.mxu0 %v956
        %1888 = vmatprep.subr.mxu0 0.0
        %1889 = vmatpush1.msra.mxu0 %v957
        %1890 = vmatprep.subr.mxu0 0.0
        %1891 = vmatpush1.msra.mxu0 0.0
        %1892 = vmatprep.subr.mxu0 0.0
        %1893 = vmatpush1.msra.mxu0 0.0
        %1894 = vmatprep.subr.mxu0 0.0
        %1895 = vmatpush1.msra.mxu0 0.0
        %1896 = vmatprep.subr.mxu0 0.0
        %1897 = vmatpush1.msra.mxu0 0.0
        %1898 = vmatprep.subr.mxu0 0.0
        %1899 = vmatpush1.msra.mxu0 0.0
        %1900 = vmatprep.subr.mxu0 0.0
        %1901 = vmatpush1.msra.mxu0 0.0
        %1902 = vmatprep.subr.mxu0 0.0
        %1903 = vmatpush1.msra.mxu0 0.0
        %1904 = vmatprep.subr.mxu0 0.0
        %1905 = vmatpush1.msra.mxu0 0.0
        %1906 = vmatprep.subr.mxu0 0.0
        %1907 = vmatpush1.msra.mxu0 0.0
        %1908 = vmatprep.subr.mxu0 0.0
        %1909 = vmatpush1.msra.mxu0 0.0
        %1910 = vmatprep.subr.mxu0 0.0
        %1911 = vmatpush1.msra.mxu0 0.0
        %1912 = vmatprep.subr.mxu0 0.0
        %1913 = vmatpush1.msra.mxu0 0.0
        %1914 = vmatprep.subr.mxu0 0.0
        %1915 = vmatpush1.msra.mxu0 0.0
        %1916 = vmatprep.subr.mxu0 0.0
        %1917 = vmatpush1.msra.mxu0 0.0
        %1918 = vmatprep.subr.mxu0 0.0
        %1919 = vmatpush1.msra.mxu0 0.0
        %1920 = vmatprep.subr.mxu0 0.0
        %1921 = vmatpush1.msra.mxu0 0.0
        %1922 = vmatprep.mubr.f32.mxu0 0.0
        %1923 = vmatmul.mubr.f32.gmra.mrb[0].mxu0 %v698
        %v1924 = vpop.f32.mrb[0].mxu0
        %v1925 = vadd.f32 %v1700, %v1924
        %v1926 = vpop.f32.mrb[0].mxu0
        %1927 = vmatprep.mubr.f32.mxu0 0.0
        %1928 = vmatmul.mubr.f32.gmra.mrb[0].mxu0 %v700
        %v1929 = vpop.f32.mrb[0].mxu0
        %v1930 = vadd.f32 %v1705, %v1929
        %v1931 = vpop.f32.mrb[0].mxu0
        %1932 = vmatprep.mubr.f32.mxu0 0.0
        %1933 = vmatmul.mubr.f32.gmra.mrb[0].mxu0 %v703
        %v1934 = vpop.f32.mrb[0].mxu0
        %v1935 = vadd.f32 %v1710, %v1934
        %v1936 = vpop.f32.mrb[0].mxu0
        %1937 = vmatprep.mubr.f32.mxu0 0.0
        %1938 = vmatmul.mubr.f32.gmra.mrb[0].mxu0 %v705
        %v1939 = vpop.f32.mrb[0].mxu0
        %v1940 = vadd.f32 %v1715, %v1939
        %v1941 = vpop.f32.mrb[0].mxu0
        %1942 = vmatprep.mubr.f32.mxu0 0.0
        %1943 = vmatmul.mubr.f32.gmra.mrb[0].mxu0 %v708
        %v1944 = vpop.f32.mrb[0].mxu0
        %v1945 = vadd.f32 %v1720, %v1944
        %v1946 = vpop.f32.mrb[0].mxu0
        %1947 = vmatprep.mubr.f32.mxu0 0.0
        %1948 = vmatmul.mubr.f32.gmra.mrb[0].mxu0 %v710
        %v1949 = vpop.f32.mrb[0].mxu0
        %v1950 = vadd.f32 %v1725, %v1949
        %v1951 = vpop.f32.mrb[0].mxu0
        %1952 = vmatprep.mubr.f32.mxu0 0.0
        %1953 = vmatmul.mubr.f32.gmra.mrb[0].mxu0 %v713
        %v1954 = vpop.f32.mrb[0].mxu0
        %v1955 = vadd.f32 %v1730, %v1954
        %v1956 = vpop.f32.mrb[0].mxu0
        %1957 = vmatprep.mubr.f32.mxu0 0.0
        %1958 = vmatmul.mubr.f32.gmra.mrb[0].mxu0 %v715
        %v1959 = vpop.f32.mrb[0].mxu0
        %v1960 = vadd.f32 %v1735, %v1959
        %v1961 = vpop.f32.mrb[0].mxu0
        %1962 = vmatprep.mubr.f32.mxu0 0.0
        %1963 = vmatmul.mubr.f32.gmra.mrb[0].mxu0 %v718
        %v1964 = vpop.f32.mrb[0].mxu0
        %v1965 = vadd.f32 %v1740, %v1964
        %v1966 = vpop.f32.mrb[0].mxu0
        %1967 = vmatprep.mubr.f32.mxu0 0.0
        %1968 = vmatmul.mubr.f32.gmra.mrb[0].mxu0 %v720
        %v1969 = vpop.f32.mrb[0].mxu0
        %v1970 = vadd.f32 %v1745, %v1969
        %v1971 = vpop.f32.mrb[0].mxu0
        %1972 = vmatprep.mubr.f32.mxu0 0.0
        %1973 = vmatmul.mubr.f32.gmra.mrb[0].mxu0 %v723
        %v1974 = vpop.f32.mrb[0].mxu0
        %v1975 = vadd.f32 %v1750, %v1974
        %v1976 = vpop.f32.mrb[0].mxu0
        %1977 = vmatprep.mubr.f32.mxu0 0.0
        %1978 = vmatmul.mubr.f32.gmra.mrb[0].mxu0 %v725
        %v1979 = vpop.f32.mrb[0].mxu0
        %v1980 = vadd.f32 %v1755, %v1979
        %v1981 = vpop.f32.mrb[0].mxu0
        %1982 = vmatprep.mubr.f32.mxu0 0.0
        %1983 = vmatmul.mubr.f32.gmra.mrb[0].mxu0 %v728
        %v1984 = vpop.f32.mrb[0].mxu0
        %v1985 = vadd.f32 %v1760, %v1984
        %v1986 = vpop.f32.mrb[0].mxu0
        %1987 = vmatprep.mubr.f32.mxu0 0.0
        %1988 = vmatmul.mubr.f32.gmra.mrb[0].mxu0 %v730
        %v1989 = vpop.f32.mrb[0].mxu0
        %v1990 = vadd.f32 %v1765, %v1989
        %v1991 = vpop.f32.mrb[0].mxu0
        %1992 = vmatprep.mubr.f32.mxu0 0.0
        %1993 = vmatmul.mubr.f32.gmra.mrb[0].mxu0 %v733
        %v1994 = vpop.f32.mrb[0].mxu0
        %v1995 = vadd.f32 %v1770, %v1994
        %v1996 = vpop.f32.mrb[0].mxu0
        %1997 = vmatprep.mubr.f32.mxu0 0.0
        %1998 = vmatmul.mubr.f32.gmra.mrb[0].mxu0 %v735
        %v1999 = vpop.f32.mrb[0].mxu0
        %v2000 = vadd.f32 %v1775, %v1999
        %v2001 = vpop.f32.mrb[0].mxu0
        %2002 = vmatprep.mubr.f32.mxu0 0.0
        %2003 = vmatmul.mubr.f32.gmra.mrb[0].mxu0 %v738
        %v2004 = vpop.f32.mrb[0].mxu0
        %v2005 = vadd.f32 %v1780, %v2004
        %v2006 = vpop.f32.mrb[0].mxu0
        %2007 = vmatprep.mubr.f32.mxu0 0.0
        %2008 = vmatmul.mubr.f32.gmra.mrb[0].mxu0 %v740
        %v2009 = vpop.f32.mrb[0].mxu0
        %v2010 = vadd.f32 %v1785, %v2009
        %v2011 = vpop.f32.mrb[0].mxu0
        %2012 = vmatprep.mubr.f32.mxu0 0.0
        %2013 = vmatmul.mubr.f32.gmra.mrb[0].mxu0 %v743
        %v2014 = vpop.f32.mrb[0].mxu0
        %v2015 = vadd.f32 %v1790, %v2014
        %v2016 = vpop.f32.mrb[0].mxu0
        %2017 = vmatprep.mubr.f32.mxu0 0.0
        %2018 = vmatmul.mubr.f32.gmra.mrb[0].mxu0 %v745
        %v2019 = vpop.f32.mrb[0].mxu0
        %v2020 = vadd.f32 %v1795, %v2019
        %v2021 = vpop.f32.mrb[0].mxu0
        %2022 = vmatprep.mubr.f32.mxu0 0.0
        %2023 = vmatmul.mubr.f32.gmra.mrb[0].mxu0 %v748
        %v2024 = vpop.f32.mrb[0].mxu0
        %v2025 = vadd.f32 %v1800, %v2024
        %v2026 = vpop.f32.mrb[0].mxu0
        %2027 = vmatprep.mubr.f32.mxu0 0.0
        %2028 = vmatmul.mubr.f32.gmra.mrb[0].mxu0 %v750
        %v2029 = vpop.f32.mrb[0].mxu0
        %v2030 = vadd.f32 %v1805, %v2029
        %v2031 = vpop.f32.mrb[0].mxu0
        %2032 = vmatprep.mubr.f32.mxu0 0.0
        %2033 = vmatmul.mubr.f32.gmra.mrb[0].mxu0 %v753
        %v2034 = vpop.f32.mrb[0].mxu0
        %v2035 = vadd.f32 %v1810, %v2034
        %v2036 = vpop.f32.mrb[0].mxu0
        %2037 = vmatprep.mubr.f32.mxu0 0.0
        %2038 = vmatmul.mubr.f32.gmra.mrb[0].mxu0 %v755
        %v2039 = vpop.f32.mrb[0].mxu0
        %v2040 = vadd.f32 %v1815, %v2039
        %v2041 = vpop.f32.mrb[0].mxu0
        %2042 = vmatprep.mubr.f32.mxu0 0.0
        %2043 = vmatmul.mubr.f32.gmra.mrb[0].mxu0 %v758
        %v2044 = vpop.f32.mrb[0].mxu0
        %v2045 = vadd.f32 %v1820, %v2044
        %v2046 = vpop.f32.mrb[0].mxu0
        %2047 = vmatprep.mubr.f32.mxu0 0.0
        %2048 = vmatmul.mubr.f32.gmra.mrb[0].mxu0 %v760
        %v2049 = vpop.f32.mrb[0].mxu0
        %v2050 = vadd.f32 %v1825, %v2049
        %v2051 = vpop.f32.mrb[0].mxu0
        %2052 = vmatprep.mubr.f32.mxu0 0.0
        %2053 = vmatmul.mubr.f32.gmra.mrb[0].mxu0 %v763
        %v2054 = vpop.f32.mrb[0].mxu0
        %v2055 = vadd.f32 %v1830, %v2054
        %v2056 = vpop.f32.mrb[0].mxu0
        %2057 = vmatprep.mubr.f32.mxu0 0.0
        %2058 = vmatmul.mubr.f32.gmra.mrb[0].mxu0 %v765
        %v2059 = vpop.f32.mrb[0].mxu0
        %v2060 = vadd.f32 %v1835, %v2059
        %v2061 = vpop.f32.mrb[0].mxu0
        %2062 = vmatprep.mubr.f32.mxu0 0.0
        %2063 = vmatmul.mubr.f32.gmra.mrb[0].mxu0 %v809
        %v2064 = vpop.f32.mrb[0].mxu0
        %v2065 = vadd.f32 %v1840, %v2064
        %v2066 = vpop.f32.mrb[0].mxu0
        %2067 = vmatprep.mubr.f32.mxu0 0.0
        %2068 = vmatmul.mubr.f32.gmra.mrb[0].mxu0 %v811
        %v2069 = vpop.f32.mrb[0].mxu0
        %v2070 = vadd.f32 %v1845, %v2069
        %v2071 = vpop.f32.mrb[0].mxu0
        %2072 = vmatprep.mubr.f32.mxu0 0.0
        %2073 = vmatmul.mubr.f32.gmra.mrb[0].mxu0 %v688
        %v2074 = vpop.f32.mrb[0].mxu0
        %v2075 = vadd.f32 %v1850, %v2074
        %v2076 = vpop.f32.mrb[0].mxu0
        %2077 = vmatprep.mubr.f32.mxu0 0.0
        %2078 = vmatmul.mubr.f32.gmra.mrb[0].mxu0 %v690
        %v2079 = vpop.f32.mrb[0].mxu0
        %v2080 = vadd.f32 %v1855, %v2079
        %v2081 = vpop.f32.mrb[0].mxu0
        %2082 = vdwg.mxu0
        %v2083 = vadd.f32 %v1925, %v1930
        %v2084 = vadd.f32 %v2083, %v1935
        %v2085 = vadd.f32 %v2084, %v1940
        %v2086 = vadd.f32 %v2085, %v1945
        %v2087 = vadd.f32 %v2086, %v1950
        %v2088 = vadd.f32 %v2087, %v1955
        %v2089 = vadd.f32 %v2088, %v1960
        %v2090 = vadd.f32 %v2089, %v1965
        %v2091 = vadd.f32 %v2090, %v1970
        %v2092 = vadd.f32 %v2091, %v1975
        %v2093 = vadd.f32 %v2092, %v1980
        %v2094 = vadd.f32 %v2093, %v1985
        %v2095 = vadd.f32 %v2094, %v1990
        %v2096 = vadd.f32 %v2095, %v1995
        %v2097 = vadd.f32 %v2096, %v2000
        %v2098 = vadd.f32 %v2097, %v2005
        %v2099 = vadd.f32 %v2098, %v2010
        %v2100 = vadd.f32 %v2099, %v2015
        %v2101 = vadd.f32 %v2100, %v2020
        %v2102 = vadd.f32 %v2101, %v2025
        %v2103 = vadd.f32 %v2102, %v2030
        %v2104 = vadd.f32 %v2103, %v2035
        %v2105 = vadd.f32 %v2104, %v2040
        %v2106 = vadd.f32 %v2105, %v2045
        %v2107 = vadd.f32 %v2106, %v2050
        %v2108 = vadd.f32 %v2107, %v2055
        %v2109 = vadd.f32 %v2108, %v2060
        %v2110 = vadd.f32 %v2109, %v2065
        %v2111 = vadd.f32 %v2110, %v2070
        %v2112 = vadd.f32 %v2111, %v2075
        %v2113 = vadd.f32 %v2112, %v2080
        %2114 = vadd.xlane.f32.xlu0 %v2113
        %v2115 = vpop.xlane.xlu0 %2114
        %v2116 = vrot.slane %v2115, 4
        %v2117 = vadd.f32 %v2115, %v2116
        %v2118 = vrot.slane %v2117, 2
        %v2119 = vadd.f32 %v2117, %v2118
        %v2120 = vrot.slane %v2119, 1
        %v2121 = vadd.f32 %v2119, %v2120
        %s2122 = vtos %v2121
        %v2123 = vmul.f32 %v1925, %v1925
        %v2124 = vmul.f32 %v1930, %v1930
        %v2125 = vmul.f32 %v1935, %v1935
        %v2126 = vmul.f32 %v1940, %v1940
        %v2127 = vmul.f32 %v1945, %v1945
        %v2128 = vmul.f32 %v1950, %v1950
        %v2129 = vmul.f32 %v1955, %v1955
        %v2130 = vmul.f32 %v1960, %v1960
        %v2131 = vmul.f32 %v1965, %v1965
        %v2132 = vmul.f32 %v1970, %v1970
        %v2133 = vmul.f32 %v1975, %v1975
        %v2134 = vmul.f32 %v1980, %v1980
        %v2135 = vmul.f32 %v1985, %v1985
        %v2136 = vmul.f32 %v1990, %v1990
        %v2137 = vmul.f32 %v1995, %v1995
        %v2138 = vmul.f32 %v2000, %v2000
        %v2139 = vmul.f32 %v2005, %v2005
        %v2140 = vmul.f32 %v2010, %v2010
        %v2141 = vmul.f32 %v2015, %v2015
        %v2142 = vmul.f32 %v2020, %v2020
        %v2143 = vmul.f32 %v2025, %v2025
        %v2144 = vmul.f32 %v2030, %v2030
        %v2145 = vmul.f32 %v2035, %v2035
        %v2146 = vmul.f32 %v2040, %v2040
        %v2147 = vmul.f32 %v2045, %v2045
        %v2148 = vmul.f32 %v2050, %v2050
        %v2149 = vmul.f32 %v2055, %v2055
        %v2150 = vmul.f32 %v2060, %v2060
        %v2151 = vmul.f32 %v2065, %v2065
        %v2152 = vmul.f32 %v2070, %v2070
        %v2153 = vmul.f32 %v2075, %v2075
        %v2154 = vmul.f32 %v2080, %v2080
        %v2155 = vadd.f32 %v2123, %v2124
        %v2156 = vadd.f32 %v2155, %v2125
        %v2157 = vadd.f32 %v2156, %v2126
        %v2158 = vadd.f32 %v2157, %v2127
        %v2159 = vadd.f32 %v2158, %v2128
        %v2160 = vadd.f32 %v2159, %v2129
        %v2161 = vadd.f32 %v2160, %v2130
        %v2162 = vadd.f32 %v2161, %v2131
        %v2163 = vadd.f32 %v2162, %v2132
        %v2164 = vadd.f32 %v2163, %v2133
        %v2165 = vadd.f32 %v2164, %v2134
        %v2166 = vadd.f32 %v2165, %v2135
        %v2167 = vadd.f32 %v2166, %v2136
        %v2168 = vadd.f32 %v2167, %v2137
        %v2169 = vadd.f32 %v2168, %v2138
        %v2170 = vadd.f32 %v2169, %v2139
        %v2171 = vadd.f32 %v2170, %v2140
        %v2172 = vadd.f32 %v2171, %v2141
        %v2173 = vadd.f32 %v2172, %v2142
        %v2174 = vadd.f32 %v2173, %v2143
        %v2175 = vadd.f32 %v2174, %v2144
        %v2176 = vadd.f32 %v2175, %v2145
        %v2177 = vadd.f32 %v2176, %v2146
        %v2178 = vadd.f32 %v2177, %v2147
        %v2179 = vadd.f32 %v2178, %v2148
        %v2180 = vadd.f32 %v2179, %v2149
        %v2181 = vadd.f32 %v2180, %v2150
        %v2182 = vadd.f32 %v2181, %v2151
        %v2183 = vadd.f32 %v2182, %v2152
        %v2184 = vadd.f32 %v2183, %v2153
        %v2185 = vadd.f32 %v2184, %v2154
        %2186 = vadd.xlane.f32.xlu0 %v2185
        %v2187 = vpop.xlane.xlu0 %2186
        %v2188 = vrot.slane %v2187, 4
        %v2189 = vadd.f32 %v2187, %v2188
        %v2190 = vrot.slane %v2189, 2
        %v2191 = vadd.f32 %v2189, %v2190
        %v2192 = vrot.slane %v2191, 1
        %v2193 = vadd.f32 %v2191, %v2192
        %s2194 = vtos %v2193
        %v2195 = vrcp.pop 2048.0
        %s2196 = vtos %v2195
        %s2197 = smul.f32 %s2122, %s2196
        %v2198 = vrcp.pop 2048.0
        %s2199 = vtos %v2198
        %s2200 = smul.f32 %s2194, %s2199
        %s2201 = smul.f32 %s2197, %s2197
        %s2202 = ssub.f32 %s2200, %s2201
        %s2203 = smax.f32 %s2202, 0.0
        %s2204 = sadd.f32 %s2203, 1e-05
        %v2205 = vstv %s2204
        %v2206 = vrsqrt.pop %v2205
        %s2207 = vtos %v2206
        %v2208 = vstv %s2197
        %v2209 = vsub.f32 %v1925, %v2208
        %v2210 = vsub.f32 %v1930, %v2208
        %v2211 = vsub.f32 %v1935, %v2208
        %v2212 = vsub.f32 %v1940, %v2208
        %v2213 = vsub.f32 %v1945, %v2208
        %v2214 = vsub.f32 %v1950, %v2208
        %v2215 = vsub.f32 %v1955, %v2208
        %v2216 = vsub.f32 %v1960, %v2208
        %v2217 = vsub.f32 %v1965, %v2208
        %v2218 = vsub.f32 %v1970, %v2208
        %v2219 = vsub.f32 %v1975, %v2208
        %v2220 = vsub.f32 %v1980, %v2208
        %v2221 = vsub.f32 %v1985, %v2208
        %v2222 = vsub.f32 %v1990, %v2208
        %v2223 = vsub.f32 %v1995, %v2208
        %v2224 = vsub.f32 %v2000, %v2208
        %v2225 = vsub.f32 %v2005, %v2208
        %v2226 = vsub.f32 %v2010, %v2208
        %v2227 = vsub.f32 %v2015, %v2208
        %v2228 = vsub.f32 %v2020, %v2208
        %v2229 = vsub.f32 %v2025, %v2208
        %v2230 = vsub.f32 %v2030, %v2208
        %v2231 = vsub.f32 %v2035, %v2208
        %v2232 = vsub.f32 %v2040, %v2208
        %v2233 = vsub.f32 %v2045, %v2208
        %v2234 = vsub.f32 %v2050, %v2208
        %v2235 = vsub.f32 %v2055, %v2208
        %v2236 = vsub.f32 %v2060, %v2208
        %v2237 = vsub.f32 %v2065, %v2208
        %v2238 = vsub.f32 %v2070, %v2208
        %v2239 = vsub.f32 %v2075, %v2208
        %v2240 = vsub.f32 %v2080, %v2208
        %v2241 = vstv %s2207
        %v2242 = vmul.f32 %v2209, %v2241
        %v2243 = vmul.f32 %v2210, %v2241
        %v2244 = vmul.f32 %v2211, %v2241
        %v2245 = vmul.f32 %v2212, %v2241
        %v2246 = vmul.f32 %v2213, %v2241
        %v2247 = vmul.f32 %v2214, %v2241
        %v2248 = vmul.f32 %v2215, %v2241
        %v2249 = vmul.f32 %v2216, %v2241
        %v2250 = vmul.f32 %v2217, %v2241
        %v2251 = vmul.f32 %v2218, %v2241
        %v2252 = vmul.f32 %v2219, %v2241
        %v2253 = vmul.f32 %v2220, %v2241
        %v2254 = vmul.f32 %v2221, %v2241
        %v2255 = vmul.f32 %v2222, %v2241
        %v2256 = vmul.f32 %v2223, %v2241
        %v2257 = vmul.f32 %v2224, %v2241
        %v2258 = vmul.f32 %v2225, %v2241
        %v2259 = vmul.f32 %v2226, %v2241
        %v2260 = vmul.f32 %v2227, %v2241
        %v2261 = vmul.f32 %v2228, %v2241
        %v2262 = vmul.f32 %v2229, %v2241
        %v2263 = vmul.f32 %v2230, %v2241
        %v2264 = vmul.f32 %v2231, %v2241
        %v2265 = vmul.f32 %v2232, %v2241
        %v2266 = vmul.f32 %v2233, %v2241
        %v2267 = vmul.f32 %v2234, %v2241
        %v2268 = vmul.f32 %v2235, %v2241
        %v2269 = vmul.f32 %v2236, %v2241
        %v2270 = vmul.f32 %v2237, %v2241
        %v2271 = vmul.f32 %v2238, %v2241
        %v2272 = vmul.f32 %v2239, %v2241
        %v2273 = vmul.f32 %v2240, %v2241
        %v2274 = vld [vmem:[%s2] sm:$0x1]
        %v2276 = vlaneseq
        %v2277 = vshrl.u32 %v2276, 7
        %v2278 = vsub.s32 0, %v2277
        %v2279 = vrot.slane %v2274, %v2278
        %v2281 = vmul.f32 %v2242, %v2279
        %v2282 = vmul.f32 %v2243, %v2279
        %v2283 = vmul.f32 %v2244, %v2279
        %v2284 = vmul.f32 %v2245, %v2279
        %v2285 = vmul.f32 %v2246, %v2279
        %v2286 = vmul.f32 %v2247, %v2279
        %v2287 = vmul.f32 %v2248, %v2279
        %v2288 = vmul.f32 %v2249, %v2279
        %v2289 = vmul.f32 %v2250, %v2279
        %v2290 = vmul.f32 %v2251, %v2279
        %v2291 = vmul.f32 %v2252, %v2279
        %v2292 = vmul.f32 %v2253, %v2279
        %v2293 = vmul.f32 %v2254, %v2279
        %v2294 = vmul.f32 %v2255, %v2279
        %v2295 = vmul.f32 %v2256, %v2279
        %v2296 = vmul.f32 %v2257, %v2279
        %v2297 = vmul.f32 %v2258, %v2279
        %v2298 = vmul.f32 %v2259, %v2279
        %v2299 = vmul.f32 %v2260, %v2279
        %v2300 = vmul.f32 %v2261, %v2279
        %v2301 = vmul.f32 %v2262, %v2279
        %v2302 = vmul.f32 %v2263, %v2279
        %v2303 = vmul.f32 %v2264, %v2279
        %v2304 = vmul.f32 %v2265, %v2279
        %v2305 = vmul.f32 %v2266, %v2279
        %v2306 = vmul.f32 %v2267, %v2279
        %v2307 = vmul.f32 %v2268, %v2279
        %v2308 = vmul.f32 %v2269, %v2279
        %v2309 = vmul.f32 %v2270, %v2279
        %v2310 = vmul.f32 %v2271, %v2279
        %v2311 = vmul.f32 %v2272, %v2279
        %v2312 = vmul.f32 %v2273, %v2279
        %v2313 = vld [vmem:[%s3] sm:$0x1]
        %v2315 = vlaneseq
        %v2316 = vshrl.u32 %v2315, 7
        %v2317 = vsub.s32 0, %v2316
        %v2318 = vrot.slane %v2313, %v2317
        %v2320 = vadd.f32 %v2281, %v2318
        %v2321 = vadd.f32 %v2282, %v2318
        %v2322 = vadd.f32 %v2283, %v2318
        %v2323 = vadd.f32 %v2284, %v2318
        %v2324 = vadd.f32 %v2285, %v2318
        %v2325 = vadd.f32 %v2286, %v2318
        %v2326 = vadd.f32 %v2287, %v2318
        %v2327 = vadd.f32 %v2288, %v2318
        %v2328 = vadd.f32 %v2289, %v2318
        %v2329 = vadd.f32 %v2290, %v2318
        %v2330 = vadd.f32 %v2291, %v2318
        %v2331 = vadd.f32 %v2292, %v2318
        %v2332 = vadd.f32 %v2293, %v2318
        %v2333 = vadd.f32 %v2294, %v2318
        %v2334 = vadd.f32 %v2295, %v2318
        %v2335 = vadd.f32 %v2296, %v2318
        %v2336 = vadd.f32 %v2297, %v2318
        %v2337 = vadd.f32 %v2298, %v2318
        %v2338 = vadd.f32 %v2299, %v2318
        %v2339 = vadd.f32 %v2300, %v2318
        %v2340 = vadd.f32 %v2301, %v2318
        %v2341 = vadd.f32 %v2302, %v2318
        %v2342 = vadd.f32 %v2303, %v2318
        %v2343 = vadd.f32 %v2304, %v2318
        %v2344 = vadd.f32 %v2305, %v2318
        %v2345 = vadd.f32 %v2306, %v2318
        %v2346 = vadd.f32 %v2307, %v2318
        %v2347 = vadd.f32 %v2308, %v2318
        %v2348 = vadd.f32 %v2309, %v2318
        %v2349 = vadd.f32 %v2310, %v2318
        %v2350 = vadd.f32 %v2311, %v2318
        %v2351 = vadd.f32 %v2312, %v2318
        %v2352 = vmul.f32 %v2320, 0.5
        %v2353 = vmul.f32 %v2321, 0.5
        %v2354 = vmul.f32 %v2322, 0.5
        %v2355 = vmul.f32 %v2323, 0.5
        %v2356 = vmul.f32 %v2324, 0.5
        %v2357 = vmul.f32 %v2325, 0.5
        %v2358 = vmul.f32 %v2326, 0.5
        %v2359 = vmul.f32 %v2327, 0.5
        %v2360 = vmul.f32 %v2328, 0.5
        %v2361 = vmul.f32 %v2329, 0.5
        %v2362 = vmul.f32 %v2330, 0.5
        %v2363 = vmul.f32 %v2331, 0.5
        %v2364 = vmul.f32 %v2332, 0.5
        %v2365 = vmul.f32 %v2333, 0.5
        %v2366 = vmul.f32 %v2334, 0.5
        %v2367 = vmul.f32 %v2335, 0.5
        %v2368 = vmul.f32 %v2336, 0.5
        %v2369 = vmul.f32 %v2337, 0.5
        %v2370 = vmul.f32 %v2338, 0.5
        %v2371 = vmul.f32 %v2339, 0.5
        %v2372 = vmul.f32 %v2340, 0.5
        %v2373 = vmul.f32 %v2341, 0.5
        %v2374 = vmul.f32 %v2342, 0.5
        %v2375 = vmul.f32 %v2343, 0.5
        %v2376 = vmul.f32 %v2344, 0.5
        %v2377 = vmul.f32 %v2345, 0.5
        %v2378 = vmul.f32 %v2346, 0.5
        %v2379 = vmul.f32 %v2347, 0.5
        %v2380 = vmul.f32 %v2348, 0.5
        %v2381 = vmul.f32 %v2349, 0.5
        %v2382 = vmul.f32 %v2350, 0.5
        %v2383 = vmul.f32 %v2351, 0.5
        %v2384 = vmul.f32 %v2320, 0.70710677
        %v2385 = vmul.f32 %v2321, 0.70710677
        %v2386 = vmul.f32 %v2322, 0.70710677
        %v2387 = vmul.f32 %v2323, 0.70710677
        %v2388 = vmul.f32 %v2324, 0.70710677
        %v2389 = vmul.f32 %v2325, 0.70710677
        %v2390 = vmul.f32 %v2326, 0.70710677
        %v2391 = vmul.f32 %v2327, 0.70710677
        %v2392 = vmul.f32 %v2328, 0.70710677
        %v2393 = vmul.f32 %v2329, 0.70710677
        %v2394 = vmul.f32 %v2330, 0.70710677
        %v2395 = vmul.f32 %v2331, 0.70710677
        %v2396 = vmul.f32 %v2332, 0.70710677
        %v2397 = vmul.f32 %v2333, 0.70710677
        %v2398 = vmul.f32 %v2334, 0.70710677
        %v2399 = vmul.f32 %v2335, 0.70710677
        %v2400 = vmul.f32 %v2336, 0.70710677
        %v2401 = vmul.f32 %v2337, 0.70710677
        %v2402 = vmul.f32 %v2338, 0.70710677
        %v2403 = vmul.f32 %v2339, 0.70710677
        %v2404 = vmul.f32 %v2340, 0.70710677
        %v2405 = vmul.f32 %v2341, 0.70710677
        %v2406 = vmul.f32 %v2342, 0.70710677
        %v2407 = vmul.f32 %v2343, 0.70710677
        %v2408 = vmul.f32 %v2344, 0.70710677
        %v2409 = vmul.f32 %v2345, 0.70710677
        %v2410 = vmul.f32 %v2346, 0.70710677
        %v2411 = vmul.f32 %v2347, 0.70710677
        %v2412 = vmul.f32 %v2348, 0.70710677
        %v2413 = vmul.f32 %v2349, 0.70710677
        %v2414 = vmul.f32 %v2350, 0.70710677
        %v2415 = vmul.f32 %v2351, 0.70710677
        %v2416 = verf.f32.pop %v2384
        %v2417 = verf.f32.pop %v2385
        %v2418 = verf.f32.pop %v2386
        %v2419 = verf.f32.pop %v2387
        %v2420 = verf.f32.pop %v2388
        %v2421 = verf.f32.pop %v2389
        %v2422 = verf.f32.pop %v2390
        %v2423 = verf.f32.pop %v2391
        %v2424 = verf.f32.pop %v2392
        %v2425 = verf.f32.pop %v2393
        %v2426 = verf.f32.pop %v2394
        %v2427 = verf.f32.pop %v2395
        %v2428 = verf.f32.pop %v2396
        %v2429 = verf.f32.pop %v2397
        %v2430 = verf.f32.pop %v2398
        %v2431 = verf.f32.pop %v2399
        %v2432 = verf.f32.pop %v2400
        %v2433 = verf.f32.pop %v2401
        %v2434 = verf.f32.pop %v2402
        %v2435 = verf.f32.pop %v2403
        %v2436 = verf.f32.pop %v2404
        %v2437 = verf.f32.pop %v2405
        %v2438 = verf.f32.pop %v2406
        %v2439 = verf.f32.pop %v2407
        %v2440 = verf.f32.pop %v2408
        %v2441 = verf.f32.pop %v2409
        %v2442 = verf.f32.pop %v2410
        %v2443 = verf.f32.pop %v2411
        %v2444 = verf.f32.pop %v2412
        %v2445 = verf.f32.pop %v2413
        %v2446 = verf.f32.pop %v2414
        %v2447 = verf.f32.pop %v2415
        %v2448 = vadd.f32 %v2416, 1.0
        %v2449 = vadd.f32 %v2417, 1.0
        %v2450 = vadd.f32 %v2418, 1.0
        %v2451 = vadd.f32 %v2419, 1.0
        %v2452 = vadd.f32 %v2420, 1.0
        %v2453 = vadd.f32 %v2421, 1.0
        %v2454 = vadd.f32 %v2422, 1.0
        %v2455 = vadd.f32 %v2423, 1.0
        %v2456 = vadd.f32 %v2424, 1.0
        %v2457 = vadd.f32 %v2425, 1.0
        %v2458 = vadd.f32 %v2426, 1.0
        %v2459 = vadd.f32 %v2427, 1.0
        %v2460 = vadd.f32 %v2428, 1.0
        %v2461 = vadd.f32 %v2429, 1.0
        %v2462 = vadd.f32 %v2430, 1.0
        %v2463 = vadd.f32 %v2431, 1.0
        %v2464 = vadd.f32 %v2432, 1.0
        %v2465 = vadd.f32 %v2433, 1.0
        %v2466 = vadd.f32 %v2434, 1.0
        %v2467 = vadd.f32 %v2435, 1.0
        %v2468 = vadd.f32 %v2436, 1.0
        %v2469 = vadd.f32 %v2437, 1.0
        %v2470 = vadd.f32 %v2438, 1.0
        %v2471 = vadd.f32 %v2439, 1.0
        %v2472 = vadd.f32 %v2440, 1.0
        %v2473 = vadd.f32 %v2441, 1.0
        %v2474 = vadd.f32 %v2442, 1.0
        %v2475 = vadd.f32 %v2443, 1.0
        %v2476 = vadd.f32 %v2444, 1.0
        %v2477 = vadd.f32 %v2445, 1.0
        %v2478 = vadd.f32 %v2446, 1.0
        %v2479 = vadd.f32 %v2447, 1.0
        %v2480 = vmul.f32 %v2352, %v2448
        %v2481 = vmul.f32 %v2353, %v2449
        %v2482 = vmul.f32 %v2354, %v2450
        %v2483 = vmul.f32 %v2355, %v2451
        %v2484 = vmul.f32 %v2356, %v2452
        %v2485 = vmul.f32 %v2357, %v2453
        %v2486 = vmul.f32 %v2358, %v2454
        %v2487 = vmul.f32 %v2359, %v2455
        %v2488 = vmul.f32 %v2360, %v2456
        %v2489 = vmul.f32 %v2361, %v2457
        %v2490 = vmul.f32 %v2362, %v2458
        %v2491 = vmul.f32 %v2363, %v2459
        %v2492 = vmul.f32 %v2364, %v2460
        %v2493 = vmul.f32 %v2365, %v2461
        %v2494 = vmul.f32 %v2366, %v2462
        %v2495 = vmul.f32 %v2367, %v2463
        %v2496 = vmul.f32 %v2368, %v2464
        %v2497 = vmul.f32 %v2369, %v2465
        %v2498 = vmul.f32 %v2370, %v2466
        %v2499 = vmul.f32 %v2371, %v2467
        %v2500 = vmul.f32 %v2372, %v2468
        %v2501 = vmul.f32 %v2373, %v2469
        %v2502 = vmul.f32 %v2374, %v2470
        %v2503 = vmul.f32 %v2375, %v2471
        %v2504 = vmul.f32 %v2376, %v2472
        %v2505 = vmul.f32 %v2377, %v2473
        %v2506 = vmul.f32 %v2378, %v2474
        %v2507 = vmul.f32 %v2379, %v2475
        %v2508 = vmul.f32 %v2380, %v2476
        %v2509 = vmul.f32 %v2381, %v2477
        %v2510 = vmul.f32 %v2382, %v2478
        %v2511 = vmul.f32 %v2383, %v2479
        %v2544 = vrot.slane %v2480, 7
        %v2545 = vrot.slane %v2481, 7
        %v2546 = vsel %vm405, %v2544, %v2545
        %v2547 = vrot.slane %v2482, 7
        %v2548 = vrot.slane %v2483, 7
        %v2549 = vsel %vm405, %v2547, %v2548
        %v2550 = vrot.slane %v2484, 7
        %v2551 = vrot.slane %v2485, 7
        %v2552 = vsel %vm405, %v2550, %v2551
        %v2553 = vrot.slane %v2486, 7
        %v2554 = vrot.slane %v2487, 7
        %v2555 = vsel %vm405, %v2553, %v2554
        %v2556 = vrot.slane %v2488, 7
        %v2557 = vrot.slane %v2489, 7
        %v2558 = vsel %vm405, %v2556, %v2557
        %v2559 = vrot.slane %v2490, 7
        %v2560 = vrot.slane %v2491, 7
        %v2561 = vsel %vm405, %v2559, %v2560
        %v2562 = vrot.slane %v2492, 7
        %v2563 = vrot.slane %v2493, 7
        %v2564 = vsel %vm405, %v2562, %v2563
        %v2565 = vrot.slane %v2494, 7
        %v2566 = vrot.slane %v2495, 7
        %v2567 = vsel %vm405, %v2565, %v2566
        %v2568 = vrot.slane %v2496, 7
        %v2569 = vrot.slane %v2497, 7
        %v2570 = vsel %vm405, %v2568, %v2569
        %v2571 = vrot.slane %v2498, 7
        %v2572 = vrot.slane %v2499, 7
        %v2573 = vsel %vm405, %v2571, %v2572
        %v2574 = vrot.slane %v2500, 7
        %v2575 = vrot.slane %v2501, 7
        %v2576 = vsel %vm405, %v2574, %v2575
        %v2577 = vrot.slane %v2502, 7
        %v2578 = vrot.slane %v2503, 7
        %v2579 = vsel %vm405, %v2577, %v2578
        %v2580 = vrot.slane %v2504, 7
        %v2581 = vrot.slane %v2505, 7
        %v2582 = vsel %vm405, %v2580, %v2581
        %v2583 = vrot.slane %v2506, 7
        %v2584 = vrot.slane %v2507, 7
        %v2585 = vsel %vm405, %v2583, %v2584
        %v2586 = vrot.slane %v2508, 7
        %v2587 = vrot.slane %v2509, 7
        %v2588 = vsel %vm405, %v2586, %v2587
        %v2589 = vrot.slane %v2510, 7
        %v2590 = vrot.slane %v2511, 7
        %v2591 = vsel %vm405, %v2589, %v2590
        %v2640 = vsel %vm405, 0.0, %v2544
        %v2641 = vsel %vm405, 0.0, %v2547
        %v2642 = vsel %vm405, 0.0, %v2550
        %v2643 = vsel %vm405, 0.0, %v2553
        %v2644 = vsel %vm405, 0.0, %v2556
        %v2645 = vsel %vm405, 0.0, %v2559
        %v2646 = vsel %vm405, 0.0, %v2562
        %v2647 = vsel %vm405, 0.0, %v2565
        %v2648 = vsel %vm405, 0.0, %v2568
        %v2649 = vsel %vm405, 0.0, %v2571
        %v2650 = vsel %vm405, 0.0, %v2574
        %v2651 = vsel %vm405, 0.0, %v2577
        %v2652 = vsel %vm405, 0.0, %v2580
        %v2653 = vsel %vm405, 0.0, %v2583
        %v2654 = vsel %vm405, 0.0, %v2586
        %v2655 = vsel %vm405, 0.0, %v2589
        %v2656 = vsel %vm405, %v2545, 0.0
        %v2657 = vsel %vm405, %v2548, 0.0
        %v2658 = vsel %vm405, %v2551, 0.0
        %v2659 = vsel %vm405, %v2554, 0.0
        %v2660 = vsel %vm405, %v2557, 0.0
        %v2661 = vsel %vm405, %v2560, 0.0
        %v2662 = vsel %vm405, %v2563, 0.0
        %v2663 = vsel %vm405, %v2566, 0.0
        %v2664 = vsel %vm405, %v2569, 0.0
        %v2665 = vsel %vm405, %v2572, 0.0
        %v2666 = vsel %vm405, %v2575, 0.0
        %v2667 = vsel %vm405, %v2578, 0.0
        %v2668 = vsel %vm405, %v2581, 0.0
        %v2669 = vsel %vm405, %v2584, 0.0
        %v2670 = vsel %vm405, %v2587, 0.0
        %v2671 = vsel %vm405, %v2590, 0.0
        %v2702 = vrot.slane %v2640, 1
        %v2703 = vrot.slane %v2546, 1
        %v2704 = vsel %vm572, %v2702, %v2703
        %v2705 = vrot.slane %v2656, 1
        %v2706 = vsel %vm572, %v2703, %v2705
        %v2707 = vrot.slane %v2641, 1
        %v2708 = vrot.slane %v2549, 1
        %v2709 = vsel %vm572, %v2707, %v2708
        %v2710 = vrot.slane %v2657, 1
        %v2711 = vsel %vm572, %v2708, %v2710
        %v2712 = vrot.slane %v2642, 1
        %v2713 = vrot.slane %v2552, 1
        %v2714 = vsel %vm572, %v2712, %v2713
        %v2715 = vrot.slane %v2658, 1
        %v2716 = vsel %vm572, %v2713, %v2715
        %v2717 = vrot.slane %v2643, 1
        %v2718 = vrot.slane %v2555, 1
        %v2719 = vsel %vm572, %v2717, %v2718
        %v2720 = vrot.slane %v2659, 1
        %v2721 = vsel %vm572, %v2718, %v2720
        %v2722 = vrot.slane %v2644, 1
        %v2723 = vrot.slane %v2558, 1
        %v2724 = vsel %vm572, %v2722, %v2723
        %v2725 = vrot.slane %v2660, 1
        %v2726 = vsel %vm572, %v2723, %v2725
        %v2727 = vrot.slane %v2645, 1
        %v2728 = vrot.slane %v2561, 1
        %v2729 = vsel %vm572, %v2727, %v2728
        %v2730 = vrot.slane %v2661, 1
        %v2731 = vsel %vm572, %v2728, %v2730
        %v2732 = vrot.slane %v2646, 1
        %v2733 = vrot.slane %v2564, 1
        %v2734 = vsel %vm572, %v2732, %v2733
        %v2735 = vrot.slane %v2662, 1
        %v2736 = vsel %vm572, %v2733, %v2735
        %v2737 = vrot.slane %v2647, 1
        %v2738 = vrot.slane %v2567, 1
        %v2739 = vsel %vm572, %v2737, %v2738
        %v2740 = vrot.slane %v2663, 1
        %v2741 = vsel %vm572, %v2738, %v2740
        %v2742 = vrot.slane %v2648, 1
        %v2743 = vrot.slane %v2570, 1
        %v2744 = vsel %vm572, %v2742, %v2743
        %v2745 = vrot.slane %v2664, 1
        %v2746 = vsel %vm572, %v2743, %v2745
        %v2747 = vrot.slane %v2649, 1
        %v2748 = vrot.slane %v2573, 1
        %v2749 = vsel %vm572, %v2747, %v2748
        %v2750 = vrot.slane %v2665, 1
        %v2751 = vsel %vm572, %v2748, %v2750
        %v2752 = vrot.slane %v2650, 1
        %v2753 = vrot.slane %v2576, 1
        %v2754 = vsel %vm572, %v2752, %v2753
        %v2755 = vrot.slane %v2666, 1
        %v2756 = vsel %vm572, %v2753, %v2755
        %v2757 = vrot.slane %v2651, 1
        %v2758 = vrot.slane %v2579, 1
        %v2759 = vsel %vm572, %v2757, %v2758
        %v2760 = vrot.slane %v2667, 1
        %v2761 = vsel %vm572, %v2758, %v2760
        %v2762 = vrot.slane %v2652, 1
        %v2763 = vrot.slane %v2582, 1
        %v2764 = vsel %vm572, %v2762, %v2763
        %v2765 = vrot.slane %v2668, 1
        %v2766 = vsel %vm572, %v2763, %v2765
        %v2767 = vrot.slane %v2653, 1
        %v2768 = vrot.slane %v2585, 1
        %v2769 = vsel %vm572, %v2767, %v2768
        %v2770 = vrot.slane %v2669, 1
        %v2771 = vsel %vm572, %v2768, %v2770
        %v2772 = vrot.slane %v2654, 1
        %v2773 = vrot.slane %v2588, 1
        %v2774 = vsel %vm572, %v2772, %v2773
        %v2775 = vrot.slane %v2670, 1
        %v2776 = vsel %vm572, %v2773, %v2775
        %v2807 = vrot.slane %v2640, 2
        %v2808 = vrot.slane %v2546, 2
        %v2809 = vsel %vm685, %v2807, %v2808
        %v2810 = vrot.slane %v2656, 2
        %v2811 = vsel %vm685, %v2808, %v2810
        %v2812 = vrot.slane %v2641, 2
        %v2813 = vrot.slane %v2549, 2
        %v2814 = vsel %vm685, %v2812, %v2813
        %v2815 = vrot.slane %v2657, 2
        %v2816 = vsel %vm685, %v2813, %v2815
        %v2817 = vrot.slane %v2642, 2
        %v2818 = vrot.slane %v2552, 2
        %v2819 = vsel %vm685, %v2817, %v2818
        %v2820 = vrot.slane %v2658, 2
        %v2821 = vsel %vm685, %v2818, %v2820
        %v2822 = vrot.slane %v2643, 2
        %v2823 = vrot.slane %v2555, 2
        %v2824 = vsel %vm685, %v2822, %v2823
        %v2825 = vrot.slane %v2659, 2
        %v2826 = vsel %vm685, %v2823, %v2825
        %v2827 = vrot.slane %v2644, 2
        %v2828 = vrot.slane %v2558, 2
        %v2829 = vsel %vm685, %v2827, %v2828
        %v2830 = vrot.slane %v2660, 2
        %v2831 = vsel %vm685, %v2828, %v2830
        %v2832 = vrot.slane %v2645, 2
        %v2833 = vrot.slane %v2561, 2
        %v2834 = vsel %vm685, %v2832, %v2833
        %v2835 = vrot.slane %v2661, 2
        %v2836 = vsel %vm685, %v2833, %v2835
        %v2837 = vrot.slane %v2646, 2
        %v2838 = vrot.slane %v2564, 2
        %v2839 = vsel %vm685, %v2837, %v2838
        %v2840 = vrot.slane %v2662, 2
        %v2841 = vsel %vm685, %v2838, %v2840
        %v2842 = vrot.slane %v2647, 2
        %v2843 = vrot.slane %v2567, 2
        %v2844 = vsel %vm685, %v2842, %v2843
        %v2845 = vrot.slane %v2663, 2
        %v2846 = vsel %vm685, %v2843, %v2845
        %v2847 = vrot.slane %v2648, 2
        %v2848 = vrot.slane %v2570, 2
        %v2849 = vsel %vm685, %v2847, %v2848
        %v2850 = vrot.slane %v2664, 2
        %v2851 = vsel %vm685, %v2848, %v2850
        %v2852 = vrot.slane %v2649, 2
        %v2853 = vrot.slane %v2573, 2
        %v2854 = vsel %vm685, %v2852, %v2853
        %v2855 = vrot.slane %v2665, 2
        %v2856 = vsel %vm685, %v2853, %v2855
        %v2857 = vrot.slane %v2650, 2
        %v2858 = vrot.slane %v2576, 2
        %v2859 = vsel %vm685, %v2857, %v2858
        %v2860 = vrot.slane %v2666, 2
        %v2861 = vsel %vm685, %v2858, %v2860
        %v2862 = vrot.slane %v2651, 2
        %v2863 = vrot.slane %v2579, 2
        %v2864 = vsel %vm685, %v2862, %v2863
        %v2865 = vrot.slane %v2667, 2
        %v2866 = vsel %vm685, %v2863, %v2865
        %v2867 = vrot.slane %v2652, 2
        %v2868 = vrot.slane %v2582, 2
        %v2869 = vsel %vm685, %v2867, %v2868
        %v2870 = vrot.slane %v2668, 2
        %v2871 = vsel %vm685, %v2868, %v2870
        %v2872 = vrot.slane %v2653, 2
        %v2873 = vrot.slane %v2585, 2
        %v2874 = vsel %vm685, %v2872, %v2873
        %v2875 = vrot.slane %v2669, 2
        %v2876 = vsel %vm685, %v2873, %v2875
        %v2877 = vrot.slane %v2654, 2
        %v2878 = vrot.slane %v2588, 2
        %v2879 = vsel %vm685, %v2877, %v2878
        %v2880 = vrot.slane %v2670, 2
        %v2881 = vsel %vm685, %v2878, %v2880
        %v2914 = vrot.slane %v2655, 1
        %v2915 = vrot.slane %v2591, 1
        %v2916 = vsel %vm572, %v2914, %v2915
        %v2917 = vrot.slane %v2671, 1
        %v2918 = vsel %vm572, %v2915, %v2917
        %v2921 = vrot.slane %v2655, 2
        %v2922 = vrot.slane %v2591, 2
        %v2923 = vsel %vm685, %v2921, %v2922
        %v2924 = vrot.slane %v2671, 2
        %v2925 = vsel %vm685, %v2922, %v2924
        %v2928 = vld [vmem:[#allocation5] sm:$0xff]
        %v2929 = vld [vmem:[#allocation5 + $0x8] sm:$0xff]
        %v2930 = vld [vmem:[#allocation5 + $0x10] sm:$0xff]
        %v2931 = vld [vmem:[#allocation5 + $0x18] sm:$0xff]
        %v2932 = vld [vmem:[#allocation5 + $0x20] sm:$0xff]
        %v2933 = vld [vmem:[#allocation5 + $0x28] sm:$0xff]
        %v2934 = vld [vmem:[#allocation5 + $0x30] sm:$0xff]
        %v2935 = vld [vmem:[#allocation5 + $0x38] sm:$0xff]
        %v2936 = vld [vmem:[#allocation5 + $0x40] sm:$0xff]
        %v2937 = vld [vmem:[#allocation5 + $0x48] sm:$0xff]
        %v2938 = vld [vmem:[#allocation5 + $0x50] sm:$0xff]
        %v2939 = vld [vmem:[#allocation5 + $0x58] sm:$0xff]
        %v2940 = vld [vmem:[#allocation5 + $0x60] sm:$0xff]
        %v2941 = vld [vmem:[#allocation5 + $0x68] sm:$0xff]
        %v2942 = vld [vmem:[#allocation5 + $0x70] sm:$0xff]
        %v2943 = vld [vmem:[#allocation5 + $0x78] sm:$0xff]
        %v2944 = vld [vmem:[#allocation5 + $0x80] sm:$0xff]
        %v2945 = vld [vmem:[#allocation5 + $0x88] sm:$0xff]
        %v2946 = vld [vmem:[#allocation5 + $0x90] sm:$0xff]
        %v2947 = vld [vmem:[#allocation5 + $0x98] sm:$0xff]
        %v2948 = vld [vmem:[#allocation5 + $0xa0] sm:$0xff]
        %v2949 = vld [vmem:[#allocation5 + $0xa8] sm:$0xff]
        %v2950 = vld [vmem:[#allocation5 + $0xb0] sm:$0xff]
        %v2951 = vld [vmem:[#allocation5 + $0xb8] sm:$0xff]
        %v2952 = vld [vmem:[#allocation5 + $0xc0] sm:$0xff]
        %v2953 = vld [vmem:[#allocation5 + $0xc8] sm:$0xff]
        %v2954 = vld [vmem:[#allocation5 + $0xd0] sm:$0xff]
        %v2955 = vld [vmem:[#allocation5 + $0xd8] sm:$0xff]
        %v2956 = vld [vmem:[#allocation5 + $0xe0] sm:$0xff]
        %v2957 = vld [vmem:[#allocation5 + $0xe8] sm:$0xff]
        %v2958 = vld [vmem:[#allocation5 + $0xf0] sm:$0xff]
        %v2959 = vld [vmem:[#allocation5 + $0xf8] sm:$0xff]
        %v2960 = vld [vmem:[#allocation5 + $0x100] sm:$0xff]
        %v2961 = vld [vmem:[#allocation5 + $0x108] sm:$0xff]
        %v2962 = vld [vmem:[#allocation5 + $0x110] sm:$0xff]
        %v2963 = vld [vmem:[#allocation5 + $0x118] sm:$0xff]
        %v2964 = vld [vmem:[#allocation5 + $0x120] sm:$0xff]
        %v2965 = vld [vmem:[#allocation5 + $0x128] sm:$0xff]
        %v2966 = vld [vmem:[#allocation5 + $0x130] sm:$0xff]
        %v2967 = vld [vmem:[#allocation5 + $0x138] sm:$0xff]
        %v2968 = vld [vmem:[#allocation5 + $0x140] sm:$0xff]
        %v2969 = vld [vmem:[#allocation5 + $0x148] sm:$0xff]
        %v2970 = vld [vmem:[#allocation5 + $0x150] sm:$0xff]
        %v2971 = vld [vmem:[#allocation5 + $0x158] sm:$0xff]
        %v2972 = vld [vmem:[#allocation5 + $0x160] sm:$0xff]
        %v2973 = vld [vmem:[#allocation5 + $0x168] sm:$0xff]
        %v2974 = vld [vmem:[#allocation5 + $0x170] sm:$0xff]
        %v2975 = vld [vmem:[#allocation5 + $0x178] sm:$0xff]
        %v2976 = vld [vmem:[#allocation5 + $0x180] sm:$0xff]
        %v2977 = vld [vmem:[#allocation5 + $0x188] sm:$0xff]
        %v2978 = vld [vmem:[#allocation5 + $0x190] sm:$0xff]
        %v2979 = vld [vmem:[#allocation5 + $0x198] sm:$0xff]
        %v2980 = vld [vmem:[#allocation5 + $0x1a0] sm:$0xff]
        %v2981 = vld [vmem:[#allocation5 + $0x1a8] sm:$0xff]
        %v2982 = vld [vmem:[#allocation5 + $0x1b0] sm:$0xff]
        %v2983 = vld [vmem:[#allocation5 + $0x1b8] sm:$0xff]
        %v2984 = vld [vmem:[#allocation5 + $0x1c0] sm:$0xff]
        %v2985 = vld [vmem:[#allocation5 + $0x1c8] sm:$0xff]
        %v2986 = vld [vmem:[#allocation5 + $0x1d0] sm:$0xff]
        %v2987 = vld [vmem:[#allocation5 + $0x1d8] sm:$0xff]
        %v2988 = vld [vmem:[#allocation5 + $0x1e0] sm:$0xff]
        %v2989 = vld [vmem:[#allocation5 + $0x1e8] sm:$0xff]
        %v2990 = vld [vmem:[#allocation5 + $0x1f0] sm:$0xff]
        %v2991 = vld [vmem:[#allocation5 + $0x1f8] sm:$0xff]
        %v2992 = vld [vmem:[#allocation5 + $0x200] sm:$0xff]
        %v2993 = vld [vmem:[#allocation5 + $0x208] sm:$0xff]
        %v2994 = vld [vmem:[#allocation5 + $0x210] sm:$0xff]
        %v2995 = vld [vmem:[#allocation5 + $0x218] sm:$0xff]
        %v2996 = vld [vmem:[#allocation5 + $0x220] sm:$0xff]
        %v2997 = vld [vmem:[#allocation5 + $0x228] sm:$0xff]
        %v2998 = vld [vmem:[#allocation5 + $0x230] sm:$0xff]
        %v2999 = vld [vmem:[#allocation5 + $0x238] sm:$0xff]
        %v3000 = vld [vmem:[#allocation5 + $0x240] sm:$0xff]
        %v3001 = vld [vmem:[#allocation5 + $0x248] sm:$0xff]
        %v3002 = vld [vmem:[#allocation5 + $0x250] sm:$0xff]
        %v3003 = vld [vmem:[#allocation5 + $0x258] sm:$0xff]
        %v3004 = vld [vmem:[#allocation5 + $0x260] sm:$0xff]
        %v3005 = vld [vmem:[#allocation5 + $0x268] sm:$0xff]
        %v3006 = vld [vmem:[#allocation5 + $0x270] sm:$0xff]
        %v3007 = vld [vmem:[#allocation5 + $0x278] sm:$0xff]
        %v3008 = vld [vmem:[#allocation5 + $0x280] sm:$0xff]
        %v3009 = vld [vmem:[#allocation5 + $0x288] sm:$0xff]
        %v3010 = vld [vmem:[#allocation5 + $0x290] sm:$0xff]
        %v3011 = vld [vmem:[#allocation5 + $0x298] sm:$0xff]
        %v3012 = vld [vmem:[#allocation5 + $0x2a0] sm:$0xff]
        %v3013 = vld [vmem:[#allocation5 + $0x2a8] sm:$0xff]
        %v3014 = vld [vmem:[#allocation5 + $0x2b0] sm:$0xff]
        %v3015 = vld [vmem:[#allocation5 + $0x2b8] sm:$0xff]
        %v3016 = vld [vmem:[#allocation5 + $0x2c0] sm:$0xff]
        %v3017 = vld [vmem:[#allocation5 + $0x2c8] sm:$0xff]
        %v3018 = vld [vmem:[#allocation5 + $0x2d0] sm:$0xff]
        %v3019 = vld [vmem:[#allocation5 + $0x2d8] sm:$0xff]
        %v3020 = vld [vmem:[#allocation5 + $0x2e0] sm:$0xff]
        %v3021 = vld [vmem:[#allocation5 + $0x2e8] sm:$0xff]
        %v3022 = vld [vmem:[#allocation5 + $0x2f0] sm:$0xff]
        %v3023 = vld [vmem:[#allocation5 + $0x2f8] sm:$0xff]
        %v3024 = vld [vmem:[#allocation5 + $0x300] sm:$0xff]
        %v3025 = vld [vmem:[#allocation5 + $0x308] sm:$0xff]
        %v3026 = vld [vmem:[#allocation5 + $0x310] sm:$0xff]
        %v3027 = vld [vmem:[#allocation5 + $0x318] sm:$0xff]
        %v3028 = vld [vmem:[#allocation5 + $0x320] sm:$0xff]
        %v3029 = vld [vmem:[#allocation5 + $0x328] sm:$0xff]
        %v3030 = vld [vmem:[#allocation5 + $0x330] sm:$0xff]
        %v3031 = vld [vmem:[#allocation5 + $0x338] sm:$0xff]
        %v3032 = vld [vmem:[#allocation5 + $0x340] sm:$0xff]
        %v3033 = vld [vmem:[#allocation5 + $0x348] sm:$0xff]
        %v3034 = vld [vmem:[#allocation5 + $0x350] sm:$0xff]
        %v3035 = vld [vmem:[#allocation5 + $0x358] sm:$0xff]
        %v3036 = vld [vmem:[#allocation5 + $0x360] sm:$0xff]
        %v3037 = vld [vmem:[#allocation5 + $0x368] sm:$0xff]
        %v3038 = vld [vmem:[#allocation5 + $0x370] sm:$0xff]
        %v3039 = vld [vmem:[#allocation5 + $0x378] sm:$0xff]
        %v3040 = vld [vmem:[#allocation5 + $0x380] sm:$0xff]
        %v3041 = vld [vmem:[#allocation5 + $0x388] sm:$0xff]
        %v3042 = vld [vmem:[#allocation5 + $0x390] sm:$0xff]
        %v3043 = vld [vmem:[#allocation5 + $0x398] sm:$0xff]
        %v3044 = vld [vmem:[#allocation5 + $0x3a0] sm:$0xff]
        %v3045 = vld [vmem:[#allocation5 + $0x3a8] sm:$0xff]
        %v3046 = vld [vmem:[#allocation5 + $0x3b0] sm:$0xff]
        %v3047 = vld [vmem:[#allocation5 + $0x3b8] sm:$0xff]
        %v3048 = vld [vmem:[#allocation5 + $0x3c0] sm:$0xff]
        %v3049 = vld [vmem:[#allocation5 + $0x3c8] sm:$0xff]
        %v3050 = vld [vmem:[#allocation5 + $0x3d0] sm:$0xff]
        %v3051 = vld [vmem:[#allocation5 + $0x3d8] sm:$0xff]
        %v3052 = vld [vmem:[#allocation5 + $0x3e0] sm:$0xff]
        %v3053 = vld [vmem:[#allocation5 + $0x3e8] sm:$0xff]
        %v3054 = vld [vmem:[#allocation5 + $0x3f0] sm:$0xff]
        %v3055 = vld [vmem:[#allocation5 + $0x3f8] sm:$0xff]
        %v3056 = vld [vmem:[#allocation5 + $0x400] sm:$0xff]
        %v3057 = vld [vmem:[#allocation5 + $0x408] sm:$0xff]
        %v3058 = vld [vmem:[#allocation5 + $0x410] sm:$0xff]
        %v3059 = vld [vmem:[#allocation5 + $0x418] sm:$0xff]
        %v3060 = vld [vmem:[#allocation5 + $0x420] sm:$0xff]
        %v3061 = vld [vmem:[#allocation5 + $0x428] sm:$0xff]
        %v3062 = vld [vmem:[#allocation5 + $0x430] sm:$0xff]
        %v3063 = vld [vmem:[#allocation5 + $0x438] sm:$0xff]
        %v3064 = vld [vmem:[#allocation5 + $0x440] sm:$0xff]
        %v3065 = vld [vmem:[#allocation5 + $0x448] sm:$0xff]
        %v3066 = vld [vmem:[#allocation5 + $0x450] sm:$0xff]
        %v3067 = vld [vmem:[#allocation5 + $0x458] sm:$0xff]
        %v3068 = vld [vmem:[#allocation5 + $0x460] sm:$0xff]
        %v3069 = vld [vmem:[#allocation5 + $0x468] sm:$0xff]
        %v3070 = vld [vmem:[#allocation5 + $0x470] sm:$0xff]
        %v3071 = vld [vmem:[#allocation5 + $0x478] sm:$0xff]
        %3072 = vmatprep.subr.mxu0 0.0
        %3073 = vmatpush1.msra.mxu0 %v2928
        %3074 = vmatprep.subr.mxu0 0.0
        %3075 = vmatpush1.msra.mxu0 %v2929
        %3076 = vmatprep.subr.mxu0 0.0
        %3077 = vmatpush1.msra.mxu0 %v2930
        %3078 = vmatprep.subr.mxu0 0.0
        %3079 = vmatpush1.msra.mxu0 %v2931
        %3080 = vmatprep.subr.mxu0 0.0
        %3081 = vmatpush1.msra.mxu0 %v2932
        %3082 = vmatprep.subr.mxu0 0.0
        %3083 = vmatpush1.msra.mxu0 %v2933
        %3084 = vmatprep.subr.mxu0 0.0
        %3085 = vmatpush1.msra.mxu0 %v2934
        %3086 = vmatprep.subr.mxu0 0.0
        %3087 = vmatpush1.msra.mxu0 %v2935
        %3088 = vmatprep.subr.mxu0 0.0
        %3089 = vmatpush1.msra.mxu0 %v2936
        %3090 = vmatprep.subr.mxu0 0.0
        %3091 = vmatpush1.msra.mxu0 %v2937
        %3092 = vmatprep.subr.mxu0 0.0
        %3093 = vmatpush1.msra.mxu0 %v2938
        %3094 = vmatprep.subr.mxu0 0.0
        %3095 = vmatpush1.msra.mxu0 %v2939
        %3096 = vmatprep.subr.mxu0 0.0
        %3097 = vmatpush1.msra.mxu0 %v2940
        %3098 = vmatprep.subr.mxu0 0.0
        %3099 = vmatpush1.msra.mxu0 %v2941
        %3100 = vmatprep.subr.mxu0 0.0
        %3101 = vmatpush1.msra.mxu0 %v2942
        %3102 = vmatprep.subr.mxu0 0.0
        %3103 = vmatpush1.msra.mxu0 %v2943
        %3104 = vmatprep.subr.mxu0 0.0
        %3105 = vmatpush1.msra.mxu0 %v2944
        %3106 = vmatprep.subr.mxu0 0.0
        %3107 = vmatpush1.msra.mxu0 %v2945
        %3108 = vmatprep.subr.mxu0 0.0
        %3109 = vmatpush1.msra.mxu0 %v2946
        %3110 = vmatprep.subr.mxu0 0.0
        %3111 = vmatpush1.msra.mxu0 %v2947
        %3112 = vmatprep.subr.mxu0 0.0
        %3113 = vmatpush1.msra.mxu0 %v2948
        %3114 = vmatprep.subr.mxu0 0.0
        %3115 = vmatpush1.msra.mxu0 %v2949
        %3116 = vmatprep.subr.mxu0 0.0
        %3117 = vmatpush1.msra.mxu0 %v2950
        %3118 = vmatprep.subr.mxu0 0.0
        %3119 = vmatpush1.msra.mxu0 %v2951
        %3120 = vmatprep.subr.mxu0 0.0
        %3121 = vmatpush1.msra.mxu0 %v2952
        %3122 = vmatprep.subr.mxu0 0.0
        %3123 = vmatpush1.msra.mxu0 %v2953
        %3124 = vmatprep.subr.mxu0 0.0
        %3125 = vmatpush1.msra.mxu0 %v2954
        %3126 = vmatprep.subr.mxu0 0.0
        %3127 = vmatpush1.msra.mxu0 %v2955
        %3128 = vmatprep.subr.mxu0 0.0
        %3129 = vmatpush1.msra.mxu0 %v2956
        %3130 = vmatprep.subr.mxu0 0.0
        %3131 = vmatpush1.msra.mxu0 %v2957
        %3132 = vmatprep.subr.mxu0 0.0
        %3133 = vmatpush1.msra.mxu0 %v2958
        %3134 = vmatprep.subr.mxu0 0.0
        %3135 = vmatpush1.msra.mxu0 %v2959
        %3136 = vmatprep.mubr.f32.mxu0 %v575
        %3137 = vmatmul.mubr.f32.gmra.mrb[0].mxu0 %v506
        %v3138 = vpop.f32.mrb[0].mxu0
        %v3139 = vadd.f32 0.0, %v3138
        %v3140 = vpop.f32.mrb[0].mxu0
        %3141 = vmatprep.mubr.f32.mxu0 %v577
        %3142 = vmatmul.mubr.f32.gmra.mrb[0].mxu0 %v407
        %v3143 = vpop.f32.mrb[0].mxu0
        %v3144 = vadd.f32 0.0, %v3143
        %v3145 = vpop.f32.mrb[0].mxu0
        %3146 = vmatprep.mubr.f32.mxu0 %v2704
        %3147 = vmatmul.mubr.f32.gmra.mrb[0].mxu0 %v2640
        %v3148 = vpop.f32.mrb[0].mxu0
        %v3149 = vadd.f32 0.0, %v3148
        %v3150 = vpop.f32.mrb[0].mxu0
        %3151 = vmatprep.mubr.f32.mxu0 %v2706
        %3152 = vmatmul.mubr.f32.gmra.mrb[0].mxu0 %v2546
        %v3153 = vpop.f32.mrb[0].mxu0
        %v3154 = vadd.f32 0.0, %v3153
        %v3155 = vpop.f32.mrb[0].mxu0
        %3156 = vmatprep.mubr.f32.mxu0 %v2709
        %3157 = vmatmul.mubr.f32.gmra.mrb[0].mxu0 %v2641
        %v3158 = vpop.f32.mrb[0].mxu0
        %v3159 = vadd.f32 0.0, %v3158
        %v3160 = vpop.f32.mrb[0].mxu0
        %3161 = vmatprep.mubr.f32.mxu0 %v2711
        %3162 = vmatmul.mubr.f32.gmra.mrb[0].mxu0 %v2549
        %v3163 = vpop.f32.mrb[0].mxu0
        %v3164 = vadd.f32 0.0, %v3163
        %v3165 = vpop.f32.mrb[0].mxu0
        %3166 = vmatprep.mubr.f32.mxu0 %v2714
        %3167 = vmatmul.mubr.f32.gmra.mrb[0].mxu0 %v2642
        %v3168 = vpop.f32.mrb[0].mxu0
        %v3169 = vadd.f32 0.0, %v3168
        %v3170 = vpop.f32.mrb[0].mxu0
        %3171 = vmatprep.mubr.f32.mxu0 %v2716
        %3172 = vmatmul.mubr.f32.gmra.mrb[0].mxu0 %v2552
        %v3173 = vpop.f32.mrb[0].mxu0
        %v3174 = vadd.f32 0.0, %v3173
        %v3175 = vpop.f32.mrb[0].mxu0
        %3176 = vmatprep.mubr.f32.mxu0 %v2719
        %3177 = vmatmul.mubr.f32.gmra.mrb[0].mxu0 %v2643
        %v3178 = vpop.f32.mrb[0].mxu0
        %v3179 = vadd.f32 0.0, %v3178
        %v3180 = vpop.f32.mrb[0].mxu0
        %3181 = vmatprep.mubr.f32.mxu0 %v2721
        %3182 = vmatmul.mubr.f32.gmra.mrb[0].mxu0 %v2555
        %v3183 = vpop.f32.mrb[0].mxu0
        %v3184 = vadd.f32 0.0, %v3183
        %v3185 = vpop.f32.mrb[0].mxu0
        %3186 = vmatprep.mubr.f32.mxu0 %v2724
        %3187 = vmatmul.mubr.f32.gmra.mrb[0].mxu0 %v2644
        %v3188 = vpop.f32.mrb[0].mxu0
        %v3189 = vadd.f32 0.0, %v3188
        %v3190 = vpop.f32.mrb[0].mxu0
        %3191 = vmatprep.mubr.f32.mxu0 %v2726
        %3192 = vmatmul.mubr.f32.gmra.mrb[0].mxu0 %v2558
        %v3193 = vpop.f32.mrb[0].mxu0
        %v3194 = vadd.f32 0.0, %v3193
        %v3195 = vpop.f32.mrb[0].mxu0
        %3196 = vmatprep.mubr.f32.mxu0 %v2729
        %3197 = vmatmul.mubr.f32.gmra.mrb[0].mxu0 %v2645
        %v3198 = vpop.f32.mrb[0].mxu0
        %v3199 = vadd.f32 0.0, %v3198
        %v3200 = vpop.f32.mrb[0].mxu0
        %3201 = vmatprep.mubr.f32.mxu0 %v2731
        %3202 = vmatmul.mubr.f32.gmra.mrb[0].mxu0 %v2561
        %v3203 = vpop.f32.mrb[0].mxu0
        %v3204 = vadd.f32 0.0, %v3203
        %v3205 = vpop.f32.mrb[0].mxu0
        %3206 = vmatprep.mubr.f32.mxu0 %v2734
        %3207 = vmatmul.mubr.f32.gmra.mrb[0].mxu0 %v2646
        %v3208 = vpop.f32.mrb[0].mxu0
        %v3209 = vadd.f32 0.0, %v3208
        %v3210 = vpop.f32.mrb[0].mxu0
        %3211 = vmatprep.mubr.f32.mxu0 %v2736
        %3212 = vmatmul.mubr.f32.gmra.mrb[0].mxu0 %v2564
        %v3213 = vpop.f32.mrb[0].mxu0
        %v3214 = vadd.f32 0.0, %v3213
        %v3215 = vpop.f32.mrb[0].mxu0
        %3216 = vmatprep.mubr.f32.mxu0 %v2739
        %3217 = vmatmul.mubr.f32.gmra.mrb[0].mxu0 %v2647
        %v3218 = vpop.f32.mrb[0].mxu0
        %v3219 = vadd.f32 0.0, %v3218
        %v3220 = vpop.f32.mrb[0].mxu0
        %3221 = vmatprep.mubr.f32.mxu0 %v2741
        %3222 = vmatmul.mubr.f32.gmra.mrb[0].mxu0 %v2567
        %v3223 = vpop.f32.mrb[0].mxu0
        %v3224 = vadd.f32 0.0, %v3223
        %v3225 = vpop.f32.mrb[0].mxu0
        %3226 = vmatprep.mubr.f32.mxu0 %v2744
        %3227 = vmatmul.mubr.f32.gmra.mrb[0].mxu0 %v2648
        %v3228 = vpop.f32.mrb[0].mxu0
        %v3229 = vadd.f32 0.0, %v3228
        %v3230 = vpop.f32.mrb[0].mxu0
        %3231 = vmatprep.mubr.f32.mxu0 %v2746
        %3232 = vmatmul.mubr.f32.gmra.mrb[0].mxu0 %v2570
        %v3233 = vpop.f32.mrb[0].mxu0
        %v3234 = vadd.f32 0.0, %v3233
        %v3235 = vpop.f32.mrb[0].mxu0
        %3236 = vmatprep.mubr.f32.mxu0 %v2749
        %3237 = vmatmul.mubr.f32.gmra.mrb[0].mxu0 %v2649
        %v3238 = vpop.f32.mrb[0].mxu0
        %v3239 = vadd.f32 0.0, %v3238
        %v3240 = vpop.f32.mrb[0].mxu0
        %3241 = vmatprep.mubr.f32.mxu0 %v2751
        %3242 = vmatmul.mubr.f32.gmra.mrb[0].mxu0 %v2573
        %v3243 = vpop.f32.mrb[0].mxu0
        %v3244 = vadd.f32 0.0, %v3243
        %v3245 = vpop.f32.mrb[0].mxu0
        %3246 = vmatprep.mubr.f32.mxu0 %v2754
        %3247 = vmatmul.mubr.f32.gmra.mrb[0].mxu0 %v2650
        %v3248 = vpop.f32.mrb[0].mxu0
        %v3249 = vadd.f32 0.0, %v3248
        %v3250 = vpop.f32.mrb[0].mxu0
        %3251 = vmatprep.mubr.f32.mxu0 %v2756
        %3252 = vmatmul.mubr.f32.gmra.mrb[0].mxu0 %v2576
        %v3253 = vpop.f32.mrb[0].mxu0
        %v3254 = vadd.f32 0.0, %v3253
        %v3255 = vpop.f32.mrb[0].mxu0
        %3256 = vmatprep.mubr.f32.mxu0 %v2759
        %3257 = vmatmul.mubr.f32.gmra.mrb[0].mxu0 %v2651
        %v3258 = vpop.f32.mrb[0].mxu0
        %v3259 = vadd.f32 0.0, %v3258
        %v3260 = vpop.f32.mrb[0].mxu0
        %3261 = vmatprep.mubr.f32.mxu0 %v2761
        %3262 = vmatmul.mubr.f32.gmra.mrb[0].mxu0 %v2579
        %v3263 = vpop.f32.mrb[0].mxu0
        %v3264 = vadd.f32 0.0, %v3263
        %v3265 = vpop.f32.mrb[0].mxu0
        %3266 = vmatprep.mubr.f32.mxu0 %v2764
        %3267 = vmatmul.mubr.f32.gmra.mrb[0].mxu0 %v2652
        %v3268 = vpop.f32.mrb[0].mxu0
        %v3269 = vadd.f32 0.0, %v3268
        %v3270 = vpop.f32.mrb[0].mxu0
        %3271 = vmatprep.mubr.f32.mxu0 %v2766
        %3272 = vmatmul.mubr.f32.gmra.mrb[0].mxu0 %v2582
        %v3273 = vpop.f32.mrb[0].mxu0
        %v3274 = vadd.f32 0.0, %v3273
        %v3275 = vpop.f32.mrb[0].mxu0
        %3276 = vmatprep.mubr.f32.mxu0 %v2769
        %3277 = vmatmul.mubr.f32.gmra.mrb[0].mxu0 %v2653
        %v3278 = vpop.f32.mrb[0].mxu0
        %v3279 = vadd.f32 0.0, %v3278
        %v3280 = vpop.f32.mrb[0].mxu0
        %3281 = vmatprep.mubr.f32.mxu0 %v2771
        %3282 = vmatmul.mubr.f32.gmra.mrb[0].mxu0 %v2585
        %v3283 = vpop.f32.mrb[0].mxu0
        %v3284 = vadd.f32 0.0, %v3283
        %v3285 = vpop.f32.mrb[0].mxu0
        %3286 = vmatprep.mubr.f32.mxu0 %v2774
        %3287 = vmatmul.mubr.f32.gmra.mrb[0].mxu0 %v2654
        %v3288 = vpop.f32.mrb[0].mxu0
        %v3289 = vadd.f32 0.0, %v3288
        %v3290 = vpop.f32.mrb[0].mxu0
        %3291 = vmatprep.mubr.f32.mxu0 %v2776
        %3292 = vmatmul.mubr.f32.gmra.mrb[0].mxu0 %v2588
        %v3293 = vpop.f32.mrb[0].mxu0
        %v3294 = vadd.f32 0.0, %v3293
        %v3295 = vpop.f32.mrb[0].mxu0
        %3296 = vdwg.mxu0
        %3297 = vmatprep.subr.mxu0 0.0
        %3298 = vmatpush1.msra.mxu0 %v2960
        %3299 = vmatprep.subr.mxu0 0.0
        %3300 = vmatpush1.msra.mxu0 %v2961
        %3301 = vmatprep.subr.mxu0 0.0
        %3302 = vmatpush1.msra.mxu0 %v2962
        %3303 = vmatprep.subr.mxu0 0.0
        %3304 = vmatpush1.msra.mxu0 %v2963
        %3305 = vmatprep.subr.mxu0 0.0
        %3306 = vmatpush1.msra.mxu0 %v2964
        %3307 = vmatprep.subr.mxu0 0.0
        %3308 = vmatpush1.msra.mxu0 %v2965
        %3309 = vmatprep.subr.mxu0 0.0
        %3310 = vmatpush1.msra.mxu0 %v2966
        %3311 = vmatprep.subr.mxu0 0.0
        %3312 = vmatpush1.msra.mxu0 %v2967
        %3313 = vmatprep.subr.mxu0 0.0
        %3314 = vmatpush1.msra.mxu0 %v2968
        %3315 = vmatprep.subr.mxu0 0.0
        %3316 = vmatpush1.msra.mxu0 %v2969
        %3317 = vmatprep.subr.mxu0 0.0
        %3318 = vmatpush1.msra.mxu0 %v2970
        %3319 = vmatprep.subr.mxu0 0.0
        %3320 = vmatpush1.msra.mxu0 %v2971
        %3321 = vmatprep.subr.mxu0 0.0
        %3322 = vmatpush1.msra.mxu0 %v2972
        %3323 = vmatprep.subr.mxu0 0.0
        %3324 = vmatpush1.msra.mxu0 %v2973
        %3325 = vmatprep.subr.mxu0 0.0
        %3326 = vmatpush1.msra.mxu0 %v2974
        %3327 = vmatprep.subr.mxu0 0.0
        %3328 = vmatpush1.msra.mxu0 %v2975
        %3329 = vmatprep.subr.mxu0 0.0
        %3330 = vmatpush1.msra.mxu0 %v2976
        %3331 = vmatprep.subr.mxu0 0.0
        %3332 = vmatpush1.msra.mxu0 %v2977
        %3333 = vmatprep.subr.mxu0 0.0
        %3334 = vmatpush1.msra.mxu0 %v2978
        %3335 = vmatprep.subr.mxu0 0.0
        %3336 = vmatpush1.msra.mxu0 %v2979
        %3337 = vmatprep.subr.mxu0 0.0
        %3338 = vmatpush1.msra.mxu0 %v2980
        %3339 = vmatprep.subr.mxu0 0.0
        %3340 = vmatpush1.msra.mxu0 %v2981
        %3341 = vmatprep.subr.mxu0 0.0
        %3342 = vmatpush1.msra.mxu0 %v2982
        %3343 = vmatprep.subr.mxu0 0.0
        %3344 = vmatpush1.msra.mxu0 %v2983
        %3345 = vmatprep.subr.mxu0 0.0
        %3346 = vmatpush1.msra.mxu0 %v2984
        %3347 = vmatprep.subr.mxu0 0.0
        %3348 = vmatpush1.msra.mxu0 %v2985
        %3349 = vmatprep.subr.mxu0 0.0
        %3350 = vmatpush1.msra.mxu0 %v2986
        %3351 = vmatprep.subr.mxu0 0.0
        %3352 = vmatpush1.msra.mxu0 %v2987
        %3353 = vmatprep.subr.mxu0 0.0
        %3354 = vmatpush1.msra.mxu0 %v2988
        %3355 = vmatprep.subr.mxu0 0.0
        %3356 = vmatpush1.msra.mxu0 %v2989
        %3357 = vmatprep.subr.mxu0 0.0
        %3358 = vmatpush1.msra.mxu0 %v2990
        %3359 = vmatprep.subr.mxu0 0.0
        %3360 = vmatpush1.msra.mxu0 %v2991
        %3361 = vmatprep.mubr.f32.mxu0 %v2640
        %3362 = vmatmul.mubr.f32.gmra.mrb[0].mxu0 %v688
        %v3363 = vpop.f32.mrb[0].mxu0
        %v3364 = vadd.f32 %v3139, %v3363
        %v3365 = vpop.f32.mrb[0].mxu0
        %3366 = vmatprep.mubr.f32.mxu0 %v2546
        %3367 = vmatmul.mubr.f32.gmra.mrb[0].mxu0 %v690
        %v3368 = vpop.f32.mrb[0].mxu0
        %v3369 = vadd.f32 %v3144, %v3368
        %v3370 = vpop.f32.mrb[0].mxu0
        %3371 = vmatprep.mubr.f32.mxu0 %v2641
        %3372 = vmatmul.mubr.f32.gmra.mrb[0].mxu0 %v2809
        %v3373 = vpop.f32.mrb[0].mxu0
        %v3374 = vadd.f32 %v3149, %v3373
        %v3375 = vpop.f32.mrb[0].mxu0
        %3376 = vmatprep.mubr.f32.mxu0 %v2549
        %3377 = vmatmul.mubr.f32.gmra.mrb[0].mxu0 %v2811
        %v3378 = vpop.f32.mrb[0].mxu0
        %v3379 = vadd.f32 %v3154, %v3378
        %v3380 = vpop.f32.mrb[0].mxu0
        %3381 = vmatprep.mubr.f32.mxu0 %v2642
        %3382 = vmatmul.mubr.f32.gmra.mrb[0].mxu0 %v2814
        %v3383 = vpop.f32.mrb[0].mxu0
        %v3384 = vadd.f32 %v3159, %v3383
        %v3385 = vpop.f32.mrb[0].mxu0
        %3386 = vmatprep.mubr.f32.mxu0 %v2552
        %3387 = vmatmul.mubr.f32.gmra.mrb[0].mxu0 %v2816
        %v3388 = vpop.f32.mrb[0].mxu0
        %v3389 = vadd.f32 %v3164, %v3388
        %v3390 = vpop.f32.mrb[0].mxu0
        %3391 = vmatprep.mubr.f32.mxu0 %v2643
        %3392 = vmatmul.mubr.f32.gmra.mrb[0].mxu0 %v2819
        %v3393 = vpop.f32.mrb[0].mxu0
        %v3394 = vadd.f32 %v3169, %v3393
        %v3395 = vpop.f32.mrb[0].mxu0
        %3396 = vmatprep.mubr.f32.mxu0 %v2555
        %3397 = vmatmul.mubr.f32.gmra.mrb[0].mxu0 %v2821
        %v3398 = vpop.f32.mrb[0].mxu0
        %v3399 = vadd.f32 %v3174, %v3398
        %v3400 = vpop.f32.mrb[0].mxu0
        %3401 = vmatprep.mubr.f32.mxu0 %v2644
        %3402 = vmatmul.mubr.f32.gmra.mrb[0].mxu0 %v2824
        %v3403 = vpop.f32.mrb[0].mxu0
        %v3404 = vadd.f32 %v3179, %v3403
        %v3405 = vpop.f32.mrb[0].mxu0
        %3406 = vmatprep.mubr.f32.mxu0 %v2558
        %3407 = vmatmul.mubr.f32.gmra.mrb[0].mxu0 %v2826
        %v3408 = vpop.f32.mrb[0].mxu0
        %v3409 = vadd.f32 %v3184, %v3408
        %v3410 = vpop.f32.mrb[0].mxu0
        %3411 = vmatprep.mubr.f32.mxu0 %v2645
        %3412 = vmatmul.mubr.f32.gmra.mrb[0].mxu0 %v2829
        %v3413 = vpop.f32.mrb[0].mxu0
        %v3414 = vadd.f32 %v3189, %v3413
        %v3415 = vpop.f32.mrb[0].mxu0
        %3416 = vmatprep.mubr.f32.mxu0 %v2561
        %3417 = vmatmul.mubr.f32.gmra.mrb[0].mxu0 %v2831
        %v3418 = vpop.f32.mrb[0].mxu0
        %v3419 = vadd.f32 %v3194, %v3418
        %v3420 = vpop.f32.mrb[0].mxu0
        %3421 = vmatprep.mubr.f32.mxu0 %v2646
        %3422 = vmatmul.mubr.f32.gmra.mrb[0].mxu0 %v2834
        %v3423 = vpop.f32.mrb[0].mxu0
        %v3424 = vadd.f32 %v3199, %v3423
        %v3425 = vpop.f32.mrb[0].mxu0
        %3426 = vmatprep.mubr.f32.mxu0 %v2564
        %3427 = vmatmul.mubr.f32.gmra.mrb[0].mxu0 %v2836
        %v3428 = vpop.f32.mrb[0].mxu0
        %v3429 = vadd.f32 %v3204, %v3428
        %v3430 = vpop.f32.mrb[0].mxu0
        %3431 = vmatprep.mubr.f32.mxu0 %v2647
        %3432 = vmatmul.mubr.f32.gmra.mrb[0].mxu0 %v2839
        %v3433 = vpop.f32.mrb[0].mxu0
        %v3434 = vadd.f32 %v3209, %v3433
        %v3435 = vpop.f32.mrb[0].mxu0
        %3436 = vmatprep.mubr.f32.mxu0 %v2567
        %3437 = vmatmul.mubr.f32.gmra.mrb[0].mxu0 %v2841
        %v3438 = vpop.f32.mrb[0].mxu0
        %v3439 = vadd.f32 %v3214, %v3438
        %v3440 = vpop.f32.mrb[0].mxu0
        %3441 = vmatprep.mubr.f32.mxu0 %v2648
        %3442 = vmatmul.mubr.f32.gmra.mrb[0].mxu0 %v2844
        %v3443 = vpop.f32.mrb[0].mxu0
        %v3444 = vadd.f32 %v3219, %v3443
        %v3445 = vpop.f32.mrb[0].mxu0
        %3446 = vmatprep.mubr.f32.mxu0 %v2570
        %3447 = vmatmul.mubr.f32.gmra.mrb[0].mxu0 %v2846
        %v3448 = vpop.f32.mrb[0].mxu0
        %v3449 = vadd.f32 %v3224, %v3448
        %v3450 = vpop.f32.mrb[0].mxu0
        %3451 = vmatprep.mubr.f32.mxu0 %v2649
        %3452 = vmatmul.mubr.f32.gmra.mrb[0].mxu0 %v2849
        %v3453 = vpop.f32.mrb[0].mxu0
        %v3454 = vadd.f32 %v3229, %v3453
        %v3455 = vpop.f32.mrb[0].mxu0
        %3456 = vmatprep.mubr.f32.mxu0 %v2573
        %3457 = vmatmul.mubr.f32.gmra.mrb[0].mxu0 %v2851
        %v3458 = vpop.f32.mrb[0].mxu0
        %v3459 = vadd.f32 %v3234, %v3458
        %v3460 = vpop.f32.mrb[0].mxu0
        %3461 = vmatprep.mubr.f32.mxu0 %v2650
        %3462 = vmatmul.mubr.f32.gmra.mrb[0].mxu0 %v2854
        %v3463 = vpop.f32.mrb[0].mxu0
        %v3464 = vadd.f32 %v3239, %v3463
        %v3465 = vpop.f32.mrb[0].mxu0
        %3466 = vmatprep.mubr.f32.mxu0 %v2576
        %3467 = vmatmul.mubr.f32.gmra.mrb[0].mxu0 %v2856
        %v3468 = vpop.f32.mrb[0].mxu0
        %v3469 = vadd.f32 %v3244, %v3468
        %v3470 = vpop.f32.mrb[0].mxu0
        %3471 = vmatprep.mubr.f32.mxu0 %v2651
        %3472 = vmatmul.mubr.f32.gmra.mrb[0].mxu0 %v2859
        %v3473 = vpop.f32.mrb[0].mxu0
        %v3474 = vadd.f32 %v3249, %v3473
        %v3475 = vpop.f32.mrb[0].mxu0
        %3476 = vmatprep.mubr.f32.mxu0 %v2579
        %3477 = vmatmul.mubr.f32.gmra.mrb[0].mxu0 %v2861
        %v3478 = vpop.f32.mrb[0].mxu0
        %v3479 = vadd.f32 %v3254, %v3478
        %v3480 = vpop.f32.mrb[0].mxu0
        %3481 = vmatprep.mubr.f32.mxu0 %v2652
        %3482 = vmatmul.mubr.f32.gmra.mrb[0].mxu0 %v2864
        %v3483 = vpop.f32.mrb[0].mxu0
        %v3484 = vadd.f32 %v3259, %v3483
        %v3485 = vpop.f32.mrb[0].mxu0
        %3486 = vmatprep.mubr.f32.mxu0 %v2582
        %3487 = vmatmul.mubr.f32.gmra.mrb[0].mxu0 %v2866
        %v3488 = vpop.f32.mrb[0].mxu0
        %v3489 = vadd.f32 %v3264, %v3488
        %v3490 = vpop.f32.mrb[0].mxu0
        %3491 = vmatprep.mubr.f32.mxu0 %v2653
        %3492 = vmatmul.mubr.f32.gmra.mrb[0].mxu0 %v2869
        %v3493 = vpop.f32.mrb[0].mxu0
        %v3494 = vadd.f32 %v3269, %v3493
        %v3495 = vpop.f32.mrb[0].mxu0
        %3496 = vmatprep.mubr.f32.mxu0 %v2585
        %3497 = vmatmul.mubr.f32.gmra.mrb[0].mxu0 %v2871
        %v3498 = vpop.f32.mrb[0].mxu0
        %v3499 = vadd.f32 %v3274, %v3498
        %v3500 = vpop.f32.mrb[0].mxu0
        %3501 = vmatprep.mubr.f32.mxu0 %v2654
        %3502 = vmatmul.mubr.f32.gmra.mrb[0].mxu0 %v2874
        %v3503 = vpop.f32.mrb[0].mxu0
        %v3504 = vadd.f32 %v3279, %v3503
        %v3505 = vpop.f32.mrb[0].mxu0
        %3506 = vmatprep.mubr.f32.mxu0 %v2588
        %3507 = vmatmul.mubr.f32.gmra.mrb[0].mxu0 %v2876
        %v3508 = vpop.f32.mrb[0].mxu0
        %v3509 = vadd.f32 %v3284, %v3508
        %v3510 = vpop.f32.mrb[0].mxu0
        %3511 = vmatprep.mubr.f32.mxu0 %v2655
        %3512 = vmatmul.mubr.f32.gmra.mrb[0].mxu0 %v2879
        %v3513 = vpop.f32.mrb[0].mxu0
        %v3514 = vadd.f32 %v3289, %v3513
        %v3515 = vpop.f32.mrb[0].mxu0
        %3516 = vmatprep.mubr.f32.mxu0 %v2591
        %3517 = vmatmul.mubr.f32.gmra.mrb[0].mxu0 %v2881
        %v3518 = vpop.f32.mrb[0].mxu0
        %v3519 = vadd.f32 %v3294, %v3518
        %v3520 = vpop.f32.mrb[0].mxu0
        %3521 = vdwg.mxu0
        %3522 = vmatprep.subr.mxu0 0.0
        %3523 = vmatpush1.msra.mxu0 %v2992
        %3524 = vmatprep.subr.mxu0 0.0
        %3525 = vmatpush1.msra.mxu0 %v2993
        %3526 = vmatprep.subr.mxu0 0.0
        %3527 = vmatpush1.msra.mxu0 %v2994
        %3528 = vmatprep.subr.mxu0 0.0
        %3529 = vmatpush1.msra.mxu0 %v2995
        %3530 = vmatprep.subr.mxu0 0.0
        %3531 = vmatpush1.msra.mxu0 %v2996
        %3532 = vmatprep.subr.mxu0 0.0
        %3533 = vmatpush1.msra.mxu0 %v2997
        %3534 = vmatprep.subr.mxu0 0.0
        %3535 = vmatpush1.msra.mxu0 %v2998
        %3536 = vmatprep.subr.mxu0 0.0
        %3537 = vmatpush1.msra.mxu0 %v2999
        %3538 = vmatprep.subr.mxu0 0.0
        %3539 = vmatpush1.msra.mxu0 %v3000
        %3540 = vmatprep.subr.mxu0 0.0
        %3541 = vmatpush1.msra.mxu0 %v3001
        %3542 = vmatprep.subr.mxu0 0.0
        %3543 = vmatpush1.msra.mxu0 %v3002
        %3544 = vmatprep.subr.mxu0 0.0
        %3545 = vmatpush1.msra.mxu0 %v3003
        %3546 = vmatprep.subr.mxu0 0.0
        %3547 = vmatpush1.msra.mxu0 %v3004
        %3548 = vmatprep.subr.mxu0 0.0
        %3549 = vmatpush1.msra.mxu0 %v3005
        %3550 = vmatprep.subr.mxu0 0.0
        %3551 = vmatpush1.msra.mxu0 %v3006
        %3552 = vmatprep.subr.mxu0 0.0
        %3553 = vmatpush1.msra.mxu0 %v3007
        %3554 = vmatprep.subr.mxu0 0.0
        %3555 = vmatpush1.msra.mxu0 %v3008
        %3556 = vmatprep.subr.mxu0 0.0
        %3557 = vmatpush1.msra.mxu0 %v3009
        %3558 = vmatprep.subr.mxu0 0.0
        %3559 = vmatpush1.msra.mxu0 %v3010
        %3560 = vmatprep.subr.mxu0 0.0
        %3561 = vmatpush1.msra.mxu0 %v3011
        %3562 = vmatprep.subr.mxu0 0.0
        %3563 = vmatpush1.msra.mxu0 %v3012
        %3564 = vmatprep.subr.mxu0 0.0
        %3565 = vmatpush1.msra.mxu0 %v3013
        %3566 = vmatprep.subr.mxu0 0.0
        %3567 = vmatpush1.msra.mxu0 %v3014
        %3568 = vmatprep.subr.mxu0 0.0
        %3569 = vmatpush1.msra.mxu0 %v3015
        %3570 = vmatprep.subr.mxu0 0.0
        %3571 = vmatpush1.msra.mxu0 %v3016
        %3572 = vmatprep.subr.mxu0 0.0
        %3573 = vmatpush1.msra.mxu0 %v3017
        %3574 = vmatprep.subr.mxu0 0.0
        %3575 = vmatpush1.msra.mxu0 %v3018
        %3576 = vmatprep.subr.mxu0 0.0
        %3577 = vmatpush1.msra.mxu0 %v3019
        %3578 = vmatprep.subr.mxu0 0.0
        %3579 = vmatpush1.msra.mxu0 %v3020
        %3580 = vmatprep.subr.mxu0 0.0
        %3581 = vmatpush1.msra.mxu0 %v3021
        %3582 = vmatprep.subr.mxu0 0.0
        %3583 = vmatpush1.msra.mxu0 %v3022
        %3584 = vmatprep.subr.mxu0 0.0
        %3585 = vmatpush1.msra.mxu0 %v3023
        %3586 = vmatprep.mubr.f32.mxu0 %v2809
        %3587 = vmatmul.mubr.f32.gmra.mrb[0].mxu0 %v2704
        %v3588 = vpop.f32.mrb[0].mxu0
        %v3589 = vadd.f32 %v3364, %v3588
        %v3590 = vpop.f32.mrb[0].mxu0
        %3591 = vmatprep.mubr.f32.mxu0 %v2811
        %3592 = vmatmul.mubr.f32.gmra.mrb[0].mxu0 %v2706
        %v3593 = vpop.f32.mrb[0].mxu0
        %v3594 = vadd.f32 %v3369, %v3593
        %v3595 = vpop.f32.mrb[0].mxu0
        %3596 = vmatprep.mubr.f32.mxu0 %v2814
        %3597 = vmatmul.mubr.f32.gmra.mrb[0].mxu0 %v2709
        %v3598 = vpop.f32.mrb[0].mxu0
        %v3599 = vadd.f32 %v3374, %v3598
        %v3600 = vpop.f32.mrb[0].mxu0
        %3601 = vmatprep.mubr.f32.mxu0 %v2816
        %3602 = vmatmul.mubr.f32.gmra.mrb[0].mxu0 %v2711
        %v3603 = vpop.f32.mrb[0].mxu0
        %v3604 = vadd.f32 %v3379, %v3603
        %v3605 = vpop.f32.mrb[0].mxu0
        %3606 = vmatprep.mubr.f32.mxu0 %v2819
        %3607 = vmatmul.mubr.f32.gmra.mrb[0].mxu0 %v2714
        %v3608 = vpop.f32.mrb[0].mxu0
        %v3609 = vadd.f32 %v3384, %v3608
        %v3610 = vpop.f32.mrb[0].mxu0
        %3611 = vmatprep.mubr.f32.mxu0 %v2821
        %3612 = vmatmul.mubr.f32.gmra.mrb[0].mxu0 %v2716
        %v3613 = vpop.f32.mrb[0].mxu0
        %v3614 = vadd.f32 %v3389, %v3613
        %v3615 = vpop.f32.mrb[0].mxu0
        %3616 = vmatprep.mubr.f32.mxu0 %v2824
        %3617 = vmatmul.mubr.f32.gmra.mrb[0].mxu0 %v2719
        %v3618 = vpop.f32.mrb[0].mxu0
        %v3619 = vadd.f32 %v3394, %v3618
        %v3620 = vpop.f32.mrb[0].mxu0
        %3621 = vmatprep.mubr.f32.mxu0 %v2826
        %3622 = vmatmul.mubr.f32.gmra.mrb[0].mxu0 %v2721
        %v3623 = vpop.f32.mrb[0].mxu0
        %v3624 = vadd.f32 %v3399, %v3623
        %v3625 = vpop.f32.mrb[0].mxu0
        %3626 = vmatprep.mubr.f32.mxu0 %v2829
        %3627 = vmatmul.mubr.f32.gmra.mrb[0].mxu0 %v2724
        %v3628 = vpop.f32.mrb[0].mxu0
        %v3629 = vadd.f32 %v3404, %v3628
        %v3630 = vpop.f32.mrb[0].mxu0
        %3631 = vmatprep.mubr.f32.mxu0 %v2831
        %3632 = vmatmul.mubr.f32.gmra.mrb[0].mxu0 %v2726
        %v3633 = vpop.f32.mrb[0].mxu0
        %v3634 = vadd.f32 %v3409, %v3633
        %v3635 = vpop.f32.mrb[0].mxu0
        %3636 = vmatprep.mubr.f32.mxu0 %v2834
        %3637 = vmatmul.mubr.f32.gmra.mrb[0].mxu0 %v2729
        %v3638 = vpop.f32.mrb[0].mxu0
        %v3639 = vadd.f32 %v3414, %v3638
        %v3640 = vpop.f32.mrb[0].mxu0
        %3641 = vmatprep.mubr.f32.mxu0 %v2836
        %3642 = vmatmul.mubr.f32.gmra.mrb[0].mxu0 %v2731
        %v3643 = vpop.f32.mrb[0].mxu0
        %v3644 = vadd.f32 %v3419, %v3643
        %v3645 = vpop.f32.mrb[0].mxu0
        %3646 = vmatprep.mubr.f32.mxu0 %v2839
        %3647 = vmatmul.mubr.f32.gmra.mrb[0].mxu0 %v2734
        %v3648 = vpop.f32.mrb[0].mxu0
        %v3649 = vadd.f32 %v3424, %v3648
        %v3650 = vpop.f32.mrb[0].mxu0
        %3651 = vmatprep.mubr.f32.mxu0 %v2841
        %3652 = vmatmul.mubr.f32.gmra.mrb[0].mxu0 %v2736
        %v3653 = vpop.f32.mrb[0].mxu0
        %v3654 = vadd.f32 %v3429, %v3653
        %v3655 = vpop.f32.mrb[0].mxu0
        %3656 = vmatprep.mubr.f32.mxu0 %v2844
        %3657 = vmatmul.mubr.f32.gmra.mrb[0].mxu0 %v2739
        %v3658 = vpop.f32.mrb[0].mxu0
        %v3659 = vadd.f32 %v3434, %v3658
        %v3660 = vpop.f32.mrb[0].mxu0
        %3661 = vmatprep.mubr.f32.mxu0 %v2846
        %3662 = vmatmul.mubr.f32.gmra.mrb[0].mxu0 %v2741
        %v3663 = vpop.f32.mrb[0].mxu0
        %v3664 = vadd.f32 %v3439, %v3663
        %v3665 = vpop.f32.mrb[0].mxu0
        %3666 = vmatprep.mubr.f32.mxu0 %v2849
        %3667 = vmatmul.mubr.f32.gmra.mrb[0].mxu0 %v2744
        %v3668 = vpop.f32.mrb[0].mxu0
        %v3669 = vadd.f32 %v3444, %v3668
        %v3670 = vpop.f32.mrb[0].mxu0
        %3671 = vmatprep.mubr.f32.mxu0 %v2851
        %3672 = vmatmul.mubr.f32.gmra.mrb[0].mxu0 %v2746
        %v3673 = vpop.f32.mrb[0].mxu0
        %v3674 = vadd.f32 %v3449, %v3673
        %v3675 = vpop.f32.mrb[0].mxu0
        %3676 = vmatprep.mubr.f32.mxu0 %v2854
        %3677 = vmatmul.mubr.f32.gmra.mrb[0].mxu0 %v2749
        %v3678 = vpop.f32.mrb[0].mxu0
        %v3679 = vadd.f32 %v3454, %v3678
        %v3680 = vpop.f32.mrb[0].mxu0
        %3681 = vmatprep.mubr.f32.mxu0 %v2856
        %3682 = vmatmul.mubr.f32.gmra.mrb[0].mxu0 %v2751
        %v3683 = vpop.f32.mrb[0].mxu0
        %v3684 = vadd.f32 %v3459, %v3683
        %v3685 = vpop.f32.mrb[0].mxu0
        %3686 = vmatprep.mubr.f32.mxu0 %v2859
        %3687 = vmatmul.mubr.f32.gmra.mrb[0].mxu0 %v2754
        %v3688 = vpop.f32.mrb[0].mxu0
        %v3689 = vadd.f32 %v3464, %v3688
        %v3690 = vpop.f32.mrb[0].mxu0
        %3691 = vmatprep.mubr.f32.mxu0 %v2861
        %3692 = vmatmul.mubr.f32.gmra.mrb[0].mxu0 %v2756
        %v3693 = vpop.f32.mrb[0].mxu0
        %v3694 = vadd.f32 %v3469, %v3693
        %v3695 = vpop.f32.mrb[0].mxu0
        %3696 = vmatprep.mubr.f32.mxu0 %v2864
        %3697 = vmatmul.mubr.f32.gmra.mrb[0].mxu0 %v2759
        %v3698 = vpop.f32.mrb[0].mxu0
        %v3699 = vadd.f32 %v3474, %v3698
        %v3700 = vpop.f32.mrb[0].mxu0
        %3701 = vmatprep.mubr.f32.mxu0 %v2866
        %3702 = vmatmul.mubr.f32.gmra.mrb[0].mxu0 %v2761
        %v3703 = vpop.f32.mrb[0].mxu0
        %v3704 = vadd.f32 %v3479, %v3703
        %v3705 = vpop.f32.mrb[0].mxu0
        %3706 = vmatprep.mubr.f32.mxu0 %v2869
        %3707 = vmatmul.mubr.f32.gmra.mrb[0].mxu0 %v2764
        %v3708 = vpop.f32.mrb[0].mxu0
        %v3709 = vadd.f32 %v3484, %v3708
        %v3710 = vpop.f32.mrb[0].mxu0
        %3711 = vmatprep.mubr.f32.mxu0 %v2871
        %3712 = vmatmul.mubr.f32.gmra.mrb[0].mxu0 %v2766
        %v3713 = vpop.f32.mrb[0].mxu0
        %v3714 = vadd.f32 %v3489, %v3713
        %v3715 = vpop.f32.mrb[0].mxu0
        %3716 = vmatprep.mubr.f32.mxu0 %v2874
        %3717 = vmatmul.mubr.f32.gmra.mrb[0].mxu0 %v2769
        %v3718 = vpop.f32.mrb[0].mxu0
        %v3719 = vadd.f32 %v3494, %v3718
        %v3720 = vpop.f32.mrb[0].mxu0
        %3721 = vmatprep.mubr.f32.mxu0 %v2876
        %3722 = vmatmul.mubr.f32.gmra.mrb[0].mxu0 %v2771
        %v3723 = vpop.f32.mrb[0].mxu0
        %v3724 = vadd.f32 %v3499, %v3723
        %v3725 = vpop.f32.mrb[0].mxu0
        %3726 = vmatprep.mubr.f32.mxu0 %v2879
        %3727 = vmatmul.mubr.f32.gmra.mrb[0].mxu0 %v2774
        %v3728 = vpop.f32.mrb[0].mxu0
        %v3729 = vadd.f32 %v3504, %v3728
        %v3730 = vpop.f32.mrb[0].mxu0
        %3731 = vmatprep.mubr.f32.mxu0 %v2881
        %3732 = vmatmul.mubr.f32.gmra.mrb[0].mxu0 %v2776
        %v3733 = vpop.f32.mrb[0].mxu0
        %v3734 = vadd.f32 %v3509, %v3733
        %v3735 = vpop.f32.mrb[0].mxu0
        %3736 = vmatprep.mubr.f32.mxu0 %v2923
        %3737 = vmatmul.mubr.f32.gmra.mrb[0].mxu0 %v2916
        %v3738 = vpop.f32.mrb[0].mxu0
        %v3739 = vadd.f32 %v3514, %v3738
        %v3740 = vpop.f32.mrb[0].mxu0
        %3741 = vmatprep.mubr.f32.mxu0 %v2925
        %3742 = vmatmul.mubr.f32.gmra.mrb[0].mxu0 %v2918
        %v3743 = vpop.f32.mrb[0].mxu0
        %v3744 = vadd.f32 %v3519, %v3743
        %v3745 = vpop.f32.mrb[0].mxu0
        %3746 = vdwg.mxu0
        %3747 = vmatprep.subr.mxu0 0.0
        %3748 = vmatpush1.msra.mxu0 %v3024
        %3749 = vmatprep.subr.mxu0 0.0
        %3750 = vmatpush1.msra.mxu0 %v3025
        %3751 = vmatprep.subr.mxu0 0.0
        %3752 = vmatpush1.msra.mxu0 %v3026
        %3753 = vmatprep.subr.mxu0 0.0
        %3754 = vmatpush1.msra.mxu0 %v3027
        %3755 = vmatprep.subr.mxu0 0.0
        %3756 = vmatpush1.msra.mxu0 %v3028
        %3757 = vmatprep.subr.mxu0 0.0
        %3758 = vmatpush1.msra.mxu0 %v3029
        %3759 = vmatprep.subr.mxu0 0.0
        %3760 = vmatpush1.msra.mxu0 %v3030
        %3761 = vmatprep.subr.mxu0 0.0
        %3762 = vmatpush1.msra.mxu0 %v3031
        %3763 = vmatprep.subr.mxu0 0.0
        %3764 = vmatpush1.msra.mxu0 %v3032
        %3765 = vmatprep.subr.mxu0 0.0
        %3766 = vmatpush1.msra.mxu0 %v3033
        %3767 = vmatprep.subr.mxu0 0.0
        %3768 = vmatpush1.msra.mxu0 %v3034
        %3769 = vmatprep.subr.mxu0 0.0
        %3770 = vmatpush1.msra.mxu0 %v3035
        %3771 = vmatprep.subr.mxu0 0.0
        %3772 = vmatpush1.msra.mxu0 %v3036
        %3773 = vmatprep.subr.mxu0 0.0
        %3774 = vmatpush1.msra.mxu0 %v3037
        %3775 = vmatprep.subr.mxu0 0.0
        %3776 = vmatpush1.msra.mxu0 %v3038
        %3777 = vmatprep.subr.mxu0 0.0
        %3778 = vmatpush1.msra.mxu0 %v3039
        %3779 = vmatprep.subr.mxu0 0.0
        %3780 = vmatpush1.msra.mxu0 %v3040
        %3781 = vmatprep.subr.mxu0 0.0
        %3782 = vmatpush1.msra.mxu0 %v3041
        %3783 = vmatprep.subr.mxu0 0.0
        %3784 = vmatpush1.msra.mxu0 %v3042
        %3785 = vmatprep.subr.mxu0 0.0
        %3786 = vmatpush1.msra.mxu0 %v3043
        %3787 = vmatprep.subr.mxu0 0.0
        %3788 = vmatpush1.msra.mxu0 %v3044
        %3789 = vmatprep.subr.mxu0 0.0
        %3790 = vmatpush1.msra.mxu0 %v3045
        %3791 = vmatprep.subr.mxu0 0.0
        %3792 = vmatpush1.msra.mxu0 %v3046
        %3793 = vmatprep.subr.mxu0 0.0
        %3794 = vmatpush1.msra.mxu0 %v3047
        %3795 = vmatprep.subr.mxu0 0.0
        %3796 = vmatpush1.msra.mxu0 %v3048
        %3797 = vmatprep.subr.mxu0 0.0
        %3798 = vmatpush1.msra.mxu0 %v3049
        %3799 = vmatprep.subr.mxu0 0.0
        %3800 = vmatpush1.msra.mxu0 %v3050
        %3801 = vmatprep.subr.mxu0 0.0
        %3802 = vmatpush1.msra.mxu0 %v3051
        %3803 = vmatprep.subr.mxu0 0.0
        %3804 = vmatpush1.msra.mxu0 %v3052
        %3805 = vmatprep.subr.mxu0 0.0
        %3806 = vmatpush1.msra.mxu0 %v3053
        %3807 = vmatprep.subr.mxu0 0.0
        %3808 = vmatpush1.msra.mxu0 %v3054
        %3809 = vmatprep.subr.mxu0 0.0
        %3810 = vmatpush1.msra.mxu0 %v3055
        %3811 = vmatprep.mubr.f32.mxu0 %v2709
        %3812 = vmatmul.mubr.f32.gmra.mrb[0].mxu0 %v2641
        %v3813 = vpop.f32.mrb[0].mxu0
        %v3814 = vadd.f32 %v3589, %v3813
        %v3815 = vpop.f32.mrb[0].mxu0
        %3816 = vmatprep.mubr.f32.mxu0 %v2711
        %3817 = vmatmul.mubr.f32.gmra.mrb[0].mxu0 %v2549
        %v3818 = vpop.f32.mrb[0].mxu0
        %v3819 = vadd.f32 %v3594, %v3818
        %v3820 = vpop.f32.mrb[0].mxu0
        %3821 = vmatprep.mubr.f32.mxu0 %v2714
        %3822 = vmatmul.mubr.f32.gmra.mrb[0].mxu0 %v2642
        %v3823 = vpop.f32.mrb[0].mxu0
        %v3824 = vadd.f32 %v3599, %v3823
        %v3825 = vpop.f32.mrb[0].mxu0
        %3826 = vmatprep.mubr.f32.mxu0 %v2716
        %3827 = vmatmul.mubr.f32.gmra.mrb[0].mxu0 %v2552
        %v3828 = vpop.f32.mrb[0].mxu0
        %v3829 = vadd.f32 %v3604, %v3828
        %v3830 = vpop.f32.mrb[0].mxu0
        %3831 = vmatprep.mubr.f32.mxu0 %v2719
        %3832 = vmatmul.mubr.f32.gmra.mrb[0].mxu0 %v2643
        %v3833 = vpop.f32.mrb[0].mxu0
        %v3834 = vadd.f32 %v3609, %v3833
        %v3835 = vpop.f32.mrb[0].mxu0
        %3836 = vmatprep.mubr.f32.mxu0 %v2721
        %3837 = vmatmul.mubr.f32.gmra.mrb[0].mxu0 %v2555
        %v3838 = vpop.f32.mrb[0].mxu0
        %v3839 = vadd.f32 %v3614, %v3838
        %v3840 = vpop.f32.mrb[0].mxu0
        %3841 = vmatprep.mubr.f32.mxu0 %v2724
        %3842 = vmatmul.mubr.f32.gmra.mrb[0].mxu0 %v2644
        %v3843 = vpop.f32.mrb[0].mxu0
        %v3844 = vadd.f32 %v3619, %v3843
        %v3845 = vpop.f32.mrb[0].mxu0
        %3846 = vmatprep.mubr.f32.mxu0 %v2726
        %3847 = vmatmul.mubr.f32.gmra.mrb[0].mxu0 %v2558
        %v3848 = vpop.f32.mrb[0].mxu0
        %v3849 = vadd.f32 %v3624, %v3848
        %v3850 = vpop.f32.mrb[0].mxu0
        %3851 = vmatprep.mubr.f32.mxu0 %v2729
        %3852 = vmatmul.mubr.f32.gmra.mrb[0].mxu0 %v2645
        %v3853 = vpop.f32.mrb[0].mxu0
        %v3854 = vadd.f32 %v3629, %v3853
        %v3855 = vpop.f32.mrb[0].mxu0
        %3856 = vmatprep.mubr.f32.mxu0 %v2731
        %3857 = vmatmul.mubr.f32.gmra.mrb[0].mxu0 %v2561
        %v3858 = vpop.f32.mrb[0].mxu0
        %v3859 = vadd.f32 %v3634, %v3858
        %v3860 = vpop.f32.mrb[0].mxu0
        %3861 = vmatprep.mubr.f32.mxu0 %v2734
        %3862 = vmatmul.mubr.f32.gmra.mrb[0].mxu0 %v2646
        %v3863 = vpop.f32.mrb[0].mxu0
        %v3864 = vadd.f32 %v3639, %v3863
        %v3865 = vpop.f32.mrb[0].mxu0
        %3866 = vmatprep.mubr.f32.mxu0 %v2736
        %3867 = vmatmul.mubr.f32.gmra.mrb[0].mxu0 %v2564
        %v3868 = vpop.f32.mrb[0].mxu0
        %v3869 = vadd.f32 %v3644, %v3868
        %v3870 = vpop.f32.mrb[0].mxu0
        %3871 = vmatprep.mubr.f32.mxu0 %v2739
        %3872 = vmatmul.mubr.f32.gmra.mrb[0].mxu0 %v2647
        %v3873 = vpop.f32.mrb[0].mxu0
        %v3874 = vadd.f32 %v3649, %v3873
        %v3875 = vpop.f32.mrb[0].mxu0
        %3876 = vmatprep.mubr.f32.mxu0 %v2741
        %3877 = vmatmul.mubr.f32.gmra.mrb[0].mxu0 %v2567
        %v3878 = vpop.f32.mrb[0].mxu0
        %v3879 = vadd.f32 %v3654, %v3878
        %v3880 = vpop.f32.mrb[0].mxu0
        %3881 = vmatprep.mubr.f32.mxu0 %v2744
        %3882 = vmatmul.mubr.f32.gmra.mrb[0].mxu0 %v2648
        %v3883 = vpop.f32.mrb[0].mxu0
        %v3884 = vadd.f32 %v3659, %v3883
        %v3885 = vpop.f32.mrb[0].mxu0
        %3886 = vmatprep.mubr.f32.mxu0 %v2746
        %3887 = vmatmul.mubr.f32.gmra.mrb[0].mxu0 %v2570
        %v3888 = vpop.f32.mrb[0].mxu0
        %v3889 = vadd.f32 %v3664, %v3888
        %v3890 = vpop.f32.mrb[0].mxu0
        %3891 = vmatprep.mubr.f32.mxu0 %v2749
        %3892 = vmatmul.mubr.f32.gmra.mrb[0].mxu0 %v2649
        %v3893 = vpop.f32.mrb[0].mxu0
        %v3894 = vadd.f32 %v3669, %v3893
        %v3895 = vpop.f32.mrb[0].mxu0
        %3896 = vmatprep.mubr.f32.mxu0 %v2751
        %3897 = vmatmul.mubr.f32.gmra.mrb[0].mxu0 %v2573
        %v3898 = vpop.f32.mrb[0].mxu0
        %v3899 = vadd.f32 %v3674, %v3898
        %v3900 = vpop.f32.mrb[0].mxu0
        %3901 = vmatprep.mubr.f32.mxu0 %v2754
        %3902 = vmatmul.mubr.f32.gmra.mrb[0].mxu0 %v2650
        %v3903 = vpop.f32.mrb[0].mxu0
        %v3904 = vadd.f32 %v3679, %v3903
        %v3905 = vpop.f32.mrb[0].mxu0
        %3906 = vmatprep.mubr.f32.mxu0 %v2756
        %3907 = vmatmul.mubr.f32.gmra.mrb[0].mxu0 %v2576
        %v3908 = vpop.f32.mrb[0].mxu0
        %v3909 = vadd.f32 %v3684, %v3908
        %v3910 = vpop.f32.mrb[0].mxu0
        %3911 = vmatprep.mubr.f32.mxu0 %v2759
        %3912 = vmatmul.mubr.f32.gmra.mrb[0].mxu0 %v2651
        %v3913 = vpop.f32.mrb[0].mxu0
        %v3914 = vadd.f32 %v3689, %v3913
        %v3915 = vpop.f32.mrb[0].mxu0
        %3916 = vmatprep.mubr.f32.mxu0 %v2761
        %3917 = vmatmul.mubr.f32.gmra.mrb[0].mxu0 %v2579
        %v3918 = vpop.f32.mrb[0].mxu0
        %v3919 = vadd.f32 %v3694, %v3918
        %v3920 = vpop.f32.mrb[0].mxu0
        %3921 = vmatprep.mubr.f32.mxu0 %v2764
        %3922 = vmatmul.mubr.f32.gmra.mrb[0].mxu0 %v2652
        %v3923 = vpop.f32.mrb[0].mxu0
        %v3924 = vadd.f32 %v3699, %v3923
        %v3925 = vpop.f32.mrb[0].mxu0
        %3926 = vmatprep.mubr.f32.mxu0 %v2766
        %3927 = vmatmul.mubr.f32.gmra.mrb[0].mxu0 %v2582
        %v3928 = vpop.f32.mrb[0].mxu0
        %v3929 = vadd.f32 %v3704, %v3928
        %v3930 = vpop.f32.mrb[0].mxu0
        %3931 = vmatprep.mubr.f32.mxu0 %v2769
        %3932 = vmatmul.mubr.f32.gmra.mrb[0].mxu0 %v2653
        %v3933 = vpop.f32.mrb[0].mxu0
        %v3934 = vadd.f32 %v3709, %v3933
        %v3935 = vpop.f32.mrb[0].mxu0
        %3936 = vmatprep.mubr.f32.mxu0 %v2771
        %3937 = vmatmul.mubr.f32.gmra.mrb[0].mxu0 %v2585
        %v3938 = vpop.f32.mrb[0].mxu0
        %v3939 = vadd.f32 %v3714, %v3938
        %v3940 = vpop.f32.mrb[0].mxu0
        %3941 = vmatprep.mubr.f32.mxu0 %v2774
        %3942 = vmatmul.mubr.f32.gmra.mrb[0].mxu0 %v2654
        %v3943 = vpop.f32.mrb[0].mxu0
        %v3944 = vadd.f32 %v3719, %v3943
        %v3945 = vpop.f32.mrb[0].mxu0
        %3946 = vmatprep.mubr.f32.mxu0 %v2776
        %3947 = vmatmul.mubr.f32.gmra.mrb[0].mxu0 %v2588
        %v3948 = vpop.f32.mrb[0].mxu0
        %v3949 = vadd.f32 %v3724, %v3948
        %v3950 = vpop.f32.mrb[0].mxu0
        %3951 = vmatprep.mubr.f32.mxu0 %v2916
        %3952 = vmatmul.mubr.f32.gmra.mrb[0].mxu0 %v2655
        %v3953 = vpop.f32.mrb[0].mxu0
        %v3954 = vadd.f32 %v3729, %v3953
        %v3955 = vpop.f32.mrb[0].mxu0
        %3956 = vmatprep.mubr.f32.mxu0 %v2918
        %3957 = vmatmul.mubr.f32.gmra.mrb[0].mxu0 %v2591
        %v3958 = vpop.f32.mrb[0].mxu0
        %v3959 = vadd.f32 %v3734, %v3958
        %v3960 = vpop.f32.mrb[0].mxu0
        %3961 = vmatprep.mubr.f32.mxu0 %v575
        %3962 = vmatmul.mubr.f32.gmra.mrb[0].mxu0 %v506
        %v3963 = vpop.f32.mrb[0].mxu0
        %v3964 = vadd.f32 %v3739, %v3963
        %v3965 = vpop.f32.mrb[0].mxu0
        %3966 = vmatprep.mubr.f32.mxu0 %v577
        %3967 = vmatmul.mubr.f32.gmra.mrb[0].mxu0 %v407
        %v3968 = vpop.f32.mrb[0].mxu0
        %v3969 = vadd.f32 %v3744, %v3968
        %v3970 = vpop.f32.mrb[0].mxu0
        %3971 = vdwg.mxu0
        %3972 = vmatprep.subr.mxu0 0.0
        %3973 = vmatpush1.msra.mxu0 %v3056
        %3974 = vmatprep.subr.mxu0 0.0
        %3975 = vmatpush1.msra.mxu0 %v3057
        %3976 = vmatprep.subr.mxu0 0.0
        %3977 = vmatpush1.msra.mxu0 %v3058
        %3978 = vmatprep.subr.mxu0 0.0
        %3979 = vmatpush1.msra.mxu0 %v3059
        %3980 = vmatprep.subr.mxu0 0.0
        %3981 = vmatpush1.msra.mxu0 %v3060
        %3982 = vmatprep.subr.mxu0 0.0
        %3983 = vmatpush1.msra.mxu0 %v3061
        %3984 = vmatprep.subr.mxu0 0.0
        %3985 = vmatpush1.msra.mxu0 %v3062
        %3986 = vmatprep.subr.mxu0 0.0
        %3987 = vmatpush1.msra.mxu0 %v3063
        %3988 = vmatprep.subr.mxu0 0.0
        %3989 = vmatpush1.msra.mxu0 %v3064
        %3990 = vmatprep.subr.mxu0 0.0
        %3991 = vmatpush1.msra.mxu0 %v3065
        %3992 = vmatprep.subr.mxu0 0.0
        %3993 = vmatpush1.msra.mxu0 %v3066
        %3994 = vmatprep.subr.mxu0 0.0
        %3995 = vmatpush1.msra.mxu0 %v3067
        %3996 = vmatprep.subr.mxu0 0.0
        %3997 = vmatpush1.msra.mxu0 %v3068
        %3998 = vmatprep.subr.mxu0 0.0
        %3999 = vmatpush1.msra.mxu0 %v3069
        %4000 = vmatprep.subr.mxu0 0.0
        %4001 = vmatpush1.msra.mxu0 %v3070
        %4002 = vmatprep.subr.mxu0 0.0
        %4003 = vmatpush1.msra.mxu0 %v3071
        %4004 = vmatprep.subr.mxu0 0.0
        %4005 = vmatpush1.msra.mxu0 0.0
        %4006 = vmatprep.subr.mxu0 0.0
        %4007 = vmatpush1.msra.mxu0 0.0
        %4008 = vmatprep.subr.mxu0 0.0
        %4009 = vmatpush1.msra.mxu0 0.0
        %4010 = vmatprep.subr.mxu0 0.0
        %4011 = vmatpush1.msra.mxu0 0.0
        %4012 = vmatprep.subr.mxu0 0.0
        %4013 = vmatpush1.msra.mxu0 0.0
        %4014 = vmatprep.subr.mxu0 0.0
        %4015 = vmatpush1.msra.mxu0 0.0
        %4016 = vmatprep.subr.mxu0 0.0
        %4017 = vmatpush1.msra.mxu0 0.0
        %4018 = vmatprep.subr.mxu0 0.0
        %4019 = vmatpush1.msra.mxu0 0.0
        %4020 = vmatprep.subr.mxu0 0.0
        %4021 = vmatpush1.msra.mxu0 0.0
        %4022 = vmatprep.subr.mxu0 0.0
        %4023 = vmatpush1.msra.mxu0 0.0
        %4024 = vmatprep.subr.mxu0 0.0
        %4025 = vmatpush1.msra.mxu0 0.0
        %4026 = vmatprep.subr.mxu0 0.0
        %4027 = vmatpush1.msra.mxu0 0.0
        %4028 = vmatprep.subr.mxu0 0.0
        %4029 = vmatpush1.msra.mxu0 0.0
        %4030 = vmatprep.subr.mxu0 0.0
        %4031 = vmatpush1.msra.mxu0 0.0
        %4032 = vmatprep.subr.mxu0 0.0
        %4033 = vmatpush1.msra.mxu0 0.0
        %4034 = vmatprep.subr.mxu0 0.0
        %4035 = vmatpush1.msra.mxu0 0.0
        %4036 = vmatprep.mubr.f32.mxu0 0.0
        %4037 = vmatmul.mubr.f32.gmra.mrb[0].mxu0 %v2814
        %v4038 = vpop.f32.mrb[0].mxu0
        %v4039 = vadd.f32 %v3814, %v4038
        %v4040 = vpop.f32.mrb[0].mxu0
        %4041 = vmatprep.mubr.f32.mxu0 0.0
        %4042 = vmatmul.mubr.f32.gmra.mrb[0].mxu0 %v2816
        %v4043 = vpop.f32.mrb[0].mxu0
        %v4044 = vadd.f32 %v3819, %v4043
        %v4045 = vpop.f32.mrb[0].mxu0
        %4046 = vmatprep.mubr.f32.mxu0 0.0
        %4047 = vmatmul.mubr.f32.gmra.mrb[0].mxu0 %v2819
        %v4048 = vpop.f32.mrb[0].mxu0
        %v4049 = vadd.f32 %v3824, %v4048
        %v4050 = vpop.f32.mrb[0].mxu0
        %4051 = vmatprep.mubr.f32.mxu0 0.0
        %4052 = vmatmul.mubr.f32.gmra.mrb[0].mxu0 %v2821
        %v4053 = vpop.f32.mrb[0].mxu0
        %v4054 = vadd.f32 %v3829, %v4053
        %v4055 = vpop.f32.mrb[0].mxu0
        %4056 = vmatprep.mubr.f32.mxu0 0.0
        %4057 = vmatmul.mubr.f32.gmra.mrb[0].mxu0 %v2824
        %v4058 = vpop.f32.mrb[0].mxu0
        %v4059 = vadd.f32 %v3834, %v4058
        %v4060 = vpop.f32.mrb[0].mxu0
        %4061 = vmatprep.mubr.f32.mxu0 0.0
        %4062 = vmatmul.mubr.f32.gmra.mrb[0].mxu0 %v2826
        %v4063 = vpop.f32.mrb[0].mxu0
        %v4064 = vadd.f32 %v3839, %v4063
        %v4065 = vpop.f32.mrb[0].mxu0
        %4066 = vmatprep.mubr.f32.mxu0 0.0
        %4067 = vmatmul.mubr.f32.gmra.mrb[0].mxu0 %v2829
        %v4068 = vpop.f32.mrb[0].mxu0
        %v4069 = vadd.f32 %v3844, %v4068
        %v4070 = vpop.f32.mrb[0].mxu0
        %4071 = vmatprep.mubr.f32.mxu0 0.0
        %4072 = vmatmul.mubr.f32.gmra.mrb[0].mxu0 %v2831
        %v4073 = vpop.f32.mrb[0].mxu0
        %v4074 = vadd.f32 %v3849, %v4073
        %v4075 = vpop.f32.mrb[0].mxu0
        %4076 = vmatprep.mubr.f32.mxu0 0.0
        %4077 = vmatmul.mubr.f32.gmra.mrb[0].mxu0 %v2834
        %v4078 = vpop.f32.mrb[0].mxu0
        %v4079 = vadd.f32 %v3854, %v4078
        %v4080 = vpop.f32.mrb[0].mxu0
        %4081 = vmatprep.mubr.f32.mxu0 0.0
        %4082 = vmatmul.mubr.f32.gmra.mrb[0].mxu0 %v2836
        %v4083 = vpop.f32.mrb[0].mxu0
        %v4084 = vadd.f32 %v3859, %v4083
        %v4085 = vpop.f32.mrb[0].mxu0
        %4086 = vmatprep.mubr.f32.mxu0 0.0
        %4087 = vmatmul.mubr.f32.gmra.mrb[0].mxu0 %v2839
        %v4088 = vpop.f32.mrb[0].mxu0
        %v4089 = vadd.f32 %v3864, %v4088
        %v4090 = vpop.f32.mrb[0].mxu0
        %4091 = vmatprep.mubr.f32.mxu0 0.0
        %4092 = vmatmul.mubr.f32.gmra.mrb[0].mxu0 %v2841
        %v4093 = vpop.f32.mrb[0].mxu0
        %v4094 = vadd.f32 %v3869, %v4093
        %v4095 = vpop.f32.mrb[0].mxu0
        %4096 = vmatprep.mubr.f32.mxu0 0.0
        %4097 = vmatmul.mubr.f32.gmra.mrb[0].mxu0 %v2844
        %v4098 = vpop.f32.mrb[0].mxu0
        %v4099 = vadd.f32 %v3874, %v4098
        %v4100 = vpop.f32.mrb[0].mxu0
        %4101 = vmatprep.mubr.f32.mxu0 0.0
        %4102 = vmatmul.mubr.f32.gmra.mrb[0].mxu0 %v2846
        %v4103 = vpop.f32.mrb[0].mxu0
        %v4104 = vadd.f32 %v3879, %v4103
        %v4105 = vpop.f32.mrb[0].mxu0
        %4106 = vmatprep.mubr.f32.mxu0 0.0
        %4107 = vmatmul.mubr.f32.gmra.mrb[0].mxu0 %v2849
        %v4108 = vpop.f32.mrb[0].mxu0
        %v4109 = vadd.f32 %v3884, %v4108
        %v4110 = vpop.f32.mrb[0].mxu0
        %4111 = vmatprep.mubr.f32.mxu0 0.0
        %4112 = vmatmul.mubr.f32.gmra.mrb[0].mxu0 %v2851
        %v4113 = vpop.f32.mrb[0].mxu0
        %v4114 = vadd.f32 %v3889, %v4113
        %v4115 = vpop.f32.mrb[0].mxu0
        %4116 = vmatprep.mubr.f32.mxu0 0.0
        %4117 = vmatmul.mubr.f32.gmra.mrb[0].mxu0 %v2854
        %v4118 = vpop.f32.mrb[0].mxu0
        %v4119 = vadd.f32 %v3894, %v4118
        %v4120 = vpop.f32.mrb[0].mxu0
        %4121 = vmatprep.mubr.f32.mxu0 0.0
        %4122 = vmatmul.mubr.f32.gmra.mrb[0].mxu0 %v2856
        %v4123 = vpop.f32.mrb[0].mxu0
        %v4124 = vadd.f32 %v3899, %v4123
        %v4125 = vpop.f32.mrb[0].mxu0
        %4126 = vmatprep.mubr.f32.mxu0 0.0
        %4127 = vmatmul.mubr.f32.gmra.mrb[0].mxu0 %v2859
        %v4128 = vpop.f32.mrb[0].mxu0
        %v4129 = vadd.f32 %v3904, %v4128
        %v4130 = vpop.f32.mrb[0].mxu0
        %4131 = vmatprep.mubr.f32.mxu0 0.0
        %4132 = vmatmul.mubr.f32.gmra.mrb[0].mxu0 %v2861
        %v4133 = vpop.f32.mrb[0].mxu0
        %v4134 = vadd.f32 %v3909, %v4133
        %v4135 = vpop.f32.mrb[0].mxu0
        %4136 = vmatprep.mubr.f32.mxu0 0.0
        %4137 = vmatmul.mubr.f32.gmra.mrb[0].mxu0 %v2864
        %v4138 = vpop.f32.mrb[0].mxu0
        %v4139 = vadd.f32 %v3914, %v4138
        %v4140 = vpop.f32.mrb[0].mxu0
        %4141 = vmatprep.mubr.f32.mxu0 0.0
        %4142 = vmatmul.mubr.f32.gmra.mrb[0].mxu0 %v2866
        %v4143 = vpop.f32.mrb[0].mxu0
        %v4144 = vadd.f32 %v3919, %v4143
        %v4145 = vpop.f32.mrb[0].mxu0
        %4146 = vmatprep.mubr.f32.mxu0 0.0
        %4147 = vmatmul.mubr.f32.gmra.mrb[0].mxu0 %v2869
        %v4148 = vpop.f32.mrb[0].mxu0
        %v4149 = vadd.f32 %v3924, %v4148
        %v4150 = vpop.f32.mrb[0].mxu0
        %4151 = vmatprep.mubr.f32.mxu0 0.0
        %4152 = vmatmul.mubr.f32.gmra.mrb[0].mxu0 %v2871
        %v4153 = vpop.f32.mrb[0].mxu0
        %v4154 = vadd.f32 %v3929, %v4153
        %v4155 = vpop.f32.mrb[0].mxu0
        %4156 = vmatprep.mubr.f32.mxu0 0.0
        %4157 = vmatmul.mubr.f32.gmra.mrb[0].mxu0 %v2874
        %v4158 = vpop.f32.mrb[0].mxu0
        %v4159 = vadd.f32 %v3934, %v4158
        %v4160 = vpop.f32.mrb[0].mxu0
        %4161 = vmatprep.mubr.f32.mxu0 0.0
        %4162 = vmatmul.mubr.f32.gmra.mrb[0].mxu0 %v2876
        %v4163 = vpop.f32.mrb[0].mxu0
        %v4164 = vadd.f32 %v3939, %v4163
        %v4165 = vpop.f32.mrb[0].mxu0
        %4166 = vmatprep.mubr.f32.mxu0 0.0
        %4167 = vmatmul.mubr.f32.gmra.mrb[0].mxu0 %v2879
        %v4168 = vpop.f32.mrb[0].mxu0
        %v4169 = vadd.f32 %v3944, %v4168
        %v4170 = vpop.f32.mrb[0].mxu0
        %4171 = vmatprep.mubr.f32.mxu0 0.0
        %4172 = vmatmul.mubr.f32.gmra.mrb[0].mxu0 %v2881
        %v4173 = vpop.f32.mrb[0].mxu0
        %v4174 = vadd.f32 %v3949, %v4173
        %v4175 = vpop.f32.mrb[0].mxu0
        %4176 = vmatprep.mubr.f32.mxu0 0.0
        %4177 = vmatmul.mubr.f32.gmra.mrb[0].mxu0 %v2923
        %v4178 = vpop.f32.mrb[0].mxu0
        %v4179 = vadd.f32 %v3954, %v4178
        %v4180 = vpop.f32.mrb[0].mxu0
        %4181 = vmatprep.mubr.f32.mxu0 0.0
        %4182 = vmatmul.mubr.f32.gmra.mrb[0].mxu0 %v2925
        %v4183 = vpop.f32.mrb[0].mxu0
        %v4184 = vadd.f32 %v3959, %v4183
        %v4185 = vpop.f32.mrb[0].mxu0
        %4186 = vmatprep.mubr.f32.mxu0 0.0
        %4187 = vmatmul.mubr.f32.gmra.mrb[0].mxu0 %v688
        %v4188 = vpop.f32.mrb[0].mxu0
        %v4189 = vadd.f32 %v3964, %v4188
        %v4190 = vpop.f32.mrb[0].mxu0
        %4191 = vmatprep.mubr.f32.mxu0 0.0
        %4192 = vmatmul.mubr.f32.gmra.mrb[0].mxu0 %v690
        %v4193 = vpop.f32.mrb[0].mxu0
        %v4194 = vadd.f32 %v3969, %v4193
        %v4195 = vpop.f32.mrb[0].mxu0
        %4196 = vdwg.mxu0
        %v4197 = vadd.f32 %v4039, %v4044
        %v4198 = vadd.f32 %v4197, %v4049
        %v4199 = vadd.f32 %v4198, %v4054
        %v4200 = vadd.f32 %v4199, %v4059
        %v4201 = vadd.f32 %v4200, %v4064
        %v4202 = vadd.f32 %v4201, %v4069
        %v4203 = vadd.f32 %v4202, %v4074
        %v4204 = vadd.f32 %v4203, %v4079
        %v4205 = vadd.f32 %v4204, %v4084
        %v4206 = vadd.f32 %v4205, %v4089
        %v4207 = vadd.f32 %v4206, %v4094
        %v4208 = vadd.f32 %v4207, %v4099
        %v4209 = vadd.f32 %v4208, %v4104
        %v4210 = vadd.f32 %v4209, %v4109
        %v4211 = vadd.f32 %v4210, %v4114
        %v4212 = vadd.f32 %v4211, %v4119
        %v4213 = vadd.f32 %v4212, %v4124
        %v4214 = vadd.f32 %v4213, %v4129
        %v4215 = vadd.f32 %v4214, %v4134
        %v4216 = vadd.f32 %v4215, %v4139
        %v4217 = vadd.f32 %v4216, %v4144
        %v4218 = vadd.f32 %v4217, %v4149
        %v4219 = vadd.f32 %v4218, %v4154
        %v4220 = vadd.f32 %v4219, %v4159
        %v4221 = vadd.f32 %v4220, %v4164
        %v4222 = vadd.f32 %v4221, %v4169
        %v4223 = vadd.f32 %v4222, %v4174
        %v4224 = vadd.f32 %v4223, %v4179
        %v4225 = vadd.f32 %v4224, %v4184
        %v4226 = vadd.f32 %v4225, %v4189
        %v4227 = vadd.f32 %v4226, %v4194
        %4228 = vadd.xlane.f32.xlu0 %v4227
        %v4229 = vpop.xlane.xlu0 %4228
        %v4230 = vrot.slane %v4229, 4
        %v4231 = vadd.f32 %v4229, %v4230
        %v4232 = vrot.slane %v4231, 2
        %v4233 = vadd.f32 %v4231, %v4232
        %v4234 = vrot.slane %v4233, 1
        %v4235 = vadd.f32 %v4233, %v4234
        %s4236 = vtos %v4235
        %v4237 = vmul.f32 %v4039, %v4039
        %v4238 = vmul.f32 %v4044, %v4044
        %v4239 = vmul.f32 %v4049, %v4049
        %v4240 = vmul.f32 %v4054, %v4054
        %v4241 = vmul.f32 %v4059, %v4059
        %v4242 = vmul.f32 %v4064, %v4064
        %v4243 = vmul.f32 %v4069, %v4069
        %v4244 = vmul.f32 %v4074, %v4074
        %v4245 = vmul.f32 %v4079, %v4079
        %v4246 = vmul.f32 %v4084, %v4084
        %v4247 = vmul.f32 %v4089, %v4089
        %v4248 = vmul.f32 %v4094, %v4094
        %v4249 = vmul.f32 %v4099, %v4099
        %v4250 = vmul.f32 %v4104, %v4104
        %v4251 = vmul.f32 %v4109, %v4109
        %v4252 = vmul.f32 %v4114, %v4114
        %v4253 = vmul.f32 %v4119, %v4119
        %v4254 = vmul.f32 %v4124, %v4124
        %v4255 = vmul.f32 %v4129, %v4129
        %v4256 = vmul.f32 %v4134, %v4134
        %v4257 = vmul.f32 %v4139, %v4139
        %v4258 = vmul.f32 %v4144, %v4144
        %v4259 = vmul.f32 %v4149, %v4149
        %v4260 = vmul.f32 %v4154, %v4154
        %v4261 = vmul.f32 %v4159, %v4159
        %v4262 = vmul.f32 %v4164, %v4164
        %v4263 = vmul.f32 %v4169, %v4169
        %v4264 = vmul.f32 %v4174, %v4174
        %v4265 = vmul.f32 %v4179, %v4179
        %v4266 = vmul.f32 %v4184, %v4184
        %v4267 = vmul.f32 %v4189, %v4189
        %v4268 = vmul.f32 %v4194, %v4194
        %v4269 = vadd.f32 %v4237, %v4238
        %v4270 = vadd.f32 %v4269, %v4239
        %v4271 = vadd.f32 %v4270, %v4240
        %v4272 = vadd.f32 %v4271, %v4241
        %v4273 = vadd.f32 %v4272, %v4242
        %v4274 = vadd.f32 %v4273, %v4243
        %v4275 = vadd.f32 %v4274, %v4244
        %v4276 = vadd.f32 %v4275, %v4245
        %v4277 = vadd.f32 %v4276, %v4246
        %v4278 = vadd.f32 %v4277, %v4247
        %v4279 = vadd.f32 %v4278, %v4248
        %v4280 = vadd.f32 %v4279, %v4249
        %v4281 = vadd.f32 %v4280, %v4250
        %v4282 = vadd.f32 %v4281, %v4251
        %v4283 = vadd.f32 %v4282, %v4252
        %v4284 = vadd.f32 %v4283, %v4253
        %v4285 = vadd.f32 %v4284, %v4254
        %v4286 = vadd.f32 %v4285, %v4255
        %v4287 = vadd.f32 %v4286, %v4256
        %v4288 = vadd.f32 %v4287, %v4257
        %v4289 = vadd.f32 %v4288, %v4258
        %v4290 = vadd.f32 %v4289, %v4259
        %v4291 = vadd.f32 %v4290, %v4260
        %v4292 = vadd.f32 %v4291, %v4261
        %v4293 = vadd.f32 %v4292, %v4262
        %v4294 = vadd.f32 %v4293, %v4263
        %v4295 = vadd.f32 %v4294, %v4264
        %v4296 = vadd.f32 %v4295, %v4265
        %v4297 = vadd.f32 %v4296, %v4266
        %v4298 = vadd.f32 %v4297, %v4267
        %v4299 = vadd.f32 %v4298, %v4268
        %4300 = vadd.xlane.f32.xlu0 %v4299
        %v4301 = vpop.xlane.xlu0 %4300
        %v4302 = vrot.slane %v4301, 4
        %v4303 = vadd.f32 %v4301, %v4302
        %v4304 = vrot.slane %v4303, 2
        %v4305 = vadd.f32 %v4303, %v4304
        %v4306 = vrot.slane %v4305, 1
        %v4307 = vadd.f32 %v4305, %v4306
        %s4308 = vtos %v4307
        %v4309 = vrcp.pop 1024.0
        %s4310 = vtos %v4309
        %s4311 = smul.f32 %s4236, %s4310
        %v4312 = vrcp.pop 1024.0
        %s4313 = vtos %v4312
        %s4314 = smul.f32 %s4308, %s4313
        %s4315 = smul.f32 %s4311, %s4311
        %s4316 = ssub.f32 %s4314, %s4315
        %s4317 = smax.f32 %s4316, 0.0
        %s4318 = sadd.f32 %s4317, 1e-05
        %v4319 = vstv %s4318
        %v4320 = vrsqrt.pop %v4319
        %s4321 = vtos %v4320
        %v4322 = vstv %s4311
        %v4323 = vsub.f32 %v4039, %v4322
        %v4324 = vsub.f32 %v4044, %v4322
        %v4325 = vsub.f32 %v4049, %v4322
        %v4326 = vsub.f32 %v4054, %v4322
        %v4327 = vsub.f32 %v4059, %v4322
        %v4328 = vsub.f32 %v4064, %v4322
        %v4329 = vsub.f32 %v4069, %v4322
        %v4330 = vsub.f32 %v4074, %v4322
        %v4331 = vsub.f32 %v4079, %v4322
        %v4332 = vsub.f32 %v4084, %v4322
        %v4333 = vsub.f32 %v4089, %v4322
        %v4334 = vsub.f32 %v4094, %v4322
        %v4335 = vsub.f32 %v4099, %v4322
        %v4336 = vsub.f32 %v4104, %v4322
        %v4337 = vsub.f32 %v4109, %v4322
        %v4338 = vsub.f32 %v4114, %v4322
        %v4339 = vsub.f32 %v4119, %v4322
        %v4340 = vsub.f32 %v4124, %v4322
        %v4341 = vsub.f32 %v4129, %v4322
        %v4342 = vsub.f32 %v4134, %v4322
        %v4343 = vsub.f32 %v4139, %v4322
        %v4344 = vsub.f32 %v4144, %v4322
        %v4345 = vsub.f32 %v4149, %v4322
        %v4346 = vsub.f32 %v4154, %v4322
        %v4347 = vsub.f32 %v4159, %v4322
        %v4348 = vsub.f32 %v4164, %v4322
        %v4349 = vsub.f32 %v4169, %v4322
        %v4350 = vsub.f32 %v4174, %v4322
        %v4351 = vsub.f32 %v4179, %v4322
        %v4352 = vsub.f32 %v4184, %v4322
        %v4353 = vsub.f32 %v4189, %v4322
        %v4354 = vsub.f32 %v4194, %v4322
        %v4355 = vstv %s4321
        %v4356 = vmul.f32 %v4323, %v4355
        %v4357 = vmul.f32 %v4324, %v4355
        %v4358 = vmul.f32 %v4325, %v4355
        %v4359 = vmul.f32 %v4326, %v4355
        %v4360 = vmul.f32 %v4327, %v4355
        %v4361 = vmul.f32 %v4328, %v4355
        %v4362 = vmul.f32 %v4329, %v4355
        %v4363 = vmul.f32 %v4330, %v4355
        %v4364 = vmul.f32 %v4331, %v4355
        %v4365 = vmul.f32 %v4332, %v4355
        %v4366 = vmul.f32 %v4333, %v4355
        %v4367 = vmul.f32 %v4334, %v4355
        %v4368 = vmul.f32 %v4335, %v4355
        %v4369 = vmul.f32 %v4336, %v4355
        %v4370 = vmul.f32 %v4337, %v4355
        %v4371 = vmul.f32 %v4338, %v4355
        %v4372 = vmul.f32 %v4339, %v4355
        %v4373 = vmul.f32 %v4340, %v4355
        %v4374 = vmul.f32 %v4341, %v4355
        %v4375 = vmul.f32 %v4342, %v4355
        %v4376 = vmul.f32 %v4343, %v4355
        %v4377 = vmul.f32 %v4344, %v4355
        %v4378 = vmul.f32 %v4345, %v4355
        %v4379 = vmul.f32 %v4346, %v4355
        %v4380 = vmul.f32 %v4347, %v4355
        %v4381 = vmul.f32 %v4348, %v4355
        %v4382 = vmul.f32 %v4349, %v4355
        %v4383 = vmul.f32 %v4350, %v4355
        %v4384 = vmul.f32 %v4351, %v4355
        %v4385 = vmul.f32 %v4352, %v4355
        %v4386 = vmul.f32 %v4353, %v4355
        %v4387 = vmul.f32 %v4354, %v4355
        %v4388 = vld [vmem:[%s5] sm:$0x1]
        %v4390 = vlaneseq
        %v4391 = vshrl.u32 %v4390, 7
        %v4392 = vsub.s32 0, %v4391
        %v4393 = vrot.slane %v4388, %v4392
        %v4395 = vmul.f32 %v4356, %v4393
        %v4396 = vmul.f32 %v4357, %v4393
        %v4397 = vmul.f32 %v4358, %v4393
        %v4398 = vmul.f32 %v4359, %v4393
        %v4399 = vmul.f32 %v4360, %v4393
        %v4400 = vmul.f32 %v4361, %v4393
        %v4401 = vmul.f32 %v4362, %v4393
        %v4402 = vmul.f32 %v4363, %v4393
        %v4403 = vmul.f32 %v4364, %v4393
        %v4404 = vmul.f32 %v4365, %v4393
        %v4405 = vmul.f32 %v4366, %v4393
        %v4406 = vmul.f32 %v4367, %v4393
        %v4407 = vmul.f32 %v4368, %v4393
        %v4408 = vmul.f32 %v4369, %v4393
        %v4409 = vmul.f32 %v4370, %v4393
        %v4410 = vmul.f32 %v4371, %v4393
        %v4411 = vmul.f32 %v4372, %v4393
        %v4412 = vmul.f32 %v4373, %v4393
        %v4413 = vmul.f32 %v4374, %v4393
        %v4414 = vmul.f32 %v4375, %v4393
        %v4415 = vmul.f32 %v4376, %v4393
        %v4416 = vmul.f32 %v4377, %v4393
        %v4417 = vmul.f32 %v4378, %v4393
        %v4418 = vmul.f32 %v4379, %v4393
        %v4419 = vmul.f32 %v4380, %v4393
        %v4420 = vmul.f32 %v4381, %v4393
        %v4421 = vmul.f32 %v4382, %v4393
        %v4422 = vmul.f32 %v4383, %v4393
        %v4423 = vmul.f32 %v4384, %v4393
        %v4424 = vmul.f32 %v4385, %v4393
        %v4425 = vmul.f32 %v4386, %v4393
        %v4426 = vmul.f32 %v4387, %v4393
        %v4427 = vld [vmem:[%s6] sm:$0x1]
        %v4429 = vlaneseq
        %v4430 = vshrl.u32 %v4429, 7
        %v4431 = vsub.s32 0, %v4430
        %v4432 = vrot.slane %v4427, %v4431
        %v4434 = vadd.f32 %v4395, %v4432
        %v4435 = vadd.f32 %v4396, %v4432
        %v4436 = vadd.f32 %v4397, %v4432
        %v4437 = vadd.f32 %v4398, %v4432
        %v4438 = vadd.f32 %v4399, %v4432
        %v4439 = vadd.f32 %v4400, %v4432
        %v4440 = vadd.f32 %v4401, %v4432
        %v4441 = vadd.f32 %v4402, %v4432
        %v4442 = vadd.f32 %v4403, %v4432
        %v4443 = vadd.f32 %v4404, %v4432
        %v4444 = vadd.f32 %v4405, %v4432
        %v4445 = vadd.f32 %v4406, %v4432
        %v4446 = vadd.f32 %v4407, %v4432
        %v4447 = vadd.f32 %v4408, %v4432
        %v4448 = vadd.f32 %v4409, %v4432
        %v4449 = vadd.f32 %v4410, %v4432
        %v4450 = vadd.f32 %v4411, %v4432
        %v4451 = vadd.f32 %v4412, %v4432
        %v4452 = vadd.f32 %v4413, %v4432
        %v4453 = vadd.f32 %v4414, %v4432
        %v4454 = vadd.f32 %v4415, %v4432
        %v4455 = vadd.f32 %v4416, %v4432
        %v4456 = vadd.f32 %v4417, %v4432
        %v4457 = vadd.f32 %v4418, %v4432
        %v4458 = vadd.f32 %v4419, %v4432
        %v4459 = vadd.f32 %v4420, %v4432
        %v4460 = vadd.f32 %v4421, %v4432
        %v4461 = vadd.f32 %v4422, %v4432
        %v4462 = vadd.f32 %v4423, %v4432
        %v4463 = vadd.f32 %v4424, %v4432
        %v4464 = vadd.f32 %v4425, %v4432
        %v4465 = vadd.f32 %v4426, %v4432
        %4466 = vst [vmem:[%s301] sm:$0xff] %v4434
        %4467 = vst [vmem:[%s301 + $0x8] sm:$0xff] %v4435
        %4468 = vst [vmem:[%s301 + $0x10] sm:$0xff] %v4436
        %4469 = vst [vmem:[%s301 + $0x18] sm:$0xff] %v4437
        %4470 = vst [vmem:[%s301 + $0x20] sm:$0xff] %v4438
        %4471 = vst [vmem:[%s301 + $0x28] sm:$0xff] %v4439
        %4472 = vst [vmem:[%s301 + $0x30] sm:$0xff] %v4440
        %4473 = vst [vmem:[%s301 + $0x38] sm:$0xff] %v4441
        %4474 = vst [vmem:[%s301 + $0x40] sm:$0xff] %v4442
        %4475 = vst [vmem:[%s301 + $0x48] sm:$0xff] %v4443
        %4476 = vst [vmem:[%s301 + $0x50] sm:$0xff] %v4444
        %4477 = vst [vmem:[%s301 + $0x58] sm:$0xff] %v4445
        %4478 = vst [vmem:[%s301 + $0x60] sm:$0xff] %v4446
        %4479 = vst [vmem:[%s301 + $0x68] sm:$0xff] %v4447
        %4480 = vst [vmem:[%s301 + $0x70] sm:$0xff] %v4448
        %4481 = vst [vmem:[%s301 + $0x78] sm:$0xff] %v4449
        %4482 = vst [vmem:[%s301 + $0x80] sm:$0xff] %v4450
        %4483 = vst [vmem:[%s301 + $0x88] sm:$0xff] %v4451
        %4484 = vst [vmem:[%s301 + $0x90] sm:$0xff] %v4452
        %4485 = vst [vmem:[%s301 + $0x98] sm:$0xff] %v4453
        %4486 = vst [vmem:[%s301 + $0xa0] sm:$0xff] %v4454
        %4487 = vst [vmem:[%s301 + $0xa8] sm:$0xff] %v4455
        %4488 = vst [vmem:[%s301 + $0xb0] sm:$0xff] %v4456
        %4489 = vst [vmem:[%s301 + $0xb8] sm:$0xff] %v4457
        %4490 = vst [vmem:[%s301 + $0xc0] sm:$0xff] %v4458
        %4491 = vst [vmem:[%s301 + $0xc8] sm:$0xff] %v4459
        %4492 = vst [vmem:[%s301 + $0xd0] sm:$0xff] %v4460
        %4493 = vst [vmem:[%s301 + $0xd8] sm:$0xff] %v4461
        %4494 = vst [vmem:[%s301 + $0xe0] sm:$0xff] %v4462
        %4495 = vst [vmem:[%s301 + $0xe8] sm:$0xff] %v4463
        %4496 = vst [vmem:[%s301 + $0xf0] sm:$0xff] %v4464
        %4497 = vst [vmem:[%s301 + $0xf8] sm:$0xff] %v4465
        %s4498 = sand.u32 %s183, 1
        %s4499 = scalar_lea.sflag [#allocation4], %s4498
        %s4500 = sand.u32 %s183, 1
        %s4501 = smul.addr %s4500, 256
        %s4502 = scalar_lea.vmem [#allocation7], %s4501
        // Predicated region
        $region57: #{tpu_custom_call.1} parent=47 // pred_check
          %p4503 = pneg %p193
        $region58: #{tpu_custom_call.1} parent=47 // pred_check_branch
          %4505 = sbr.rel (%p4503) target = $region60
        $region59: #{tpu_custom_call.1} parent=47 // pred_region
          %s4507 = ssub.s32 4096, 4096
          %4508 = vsyncadd %s4499, %s4507
          %s4509 = smul.addr %s23, 32
          %s4510 = smul.addr %s4509, 128
          %s4511 = scalar_lea.hbm %s7, %s4510
          %s4512 = sshll.u32 %s4502, 4
          %s4513 = int_to_ptr.vmem [resolvable:$true] %s4512
          %4518 = dma.vmem_to_hbm [thread:$0]  %s4513, 4096, %s4511, %s4499, 128, 128, 8
        $region60: #{tpu_custom_call.1} parent=47 // pred_fallthru
          _
      $region48: #{tpu_custom_call.1} parent=5 // pred_fallthru
        _
      %p4519 = scmp.le.s32.totalorder 2, %s18
      // Predicated region
      $region61: #{tpu_custom_call.1} parent=5 // pred_check
        %p4520 = pneg %p4519
      $region62: #{tpu_custom_call.1} parent=5 // pred_check_branch
        %4522 = sbr.rel (%p4520) target = $region64
      $region63: #{tpu_custom_call.1} parent=5 // pred_region
        %s4523 = ssub.s32 %s18, 2
        // Predicated region
        $region65: #{tpu_custom_call.1} parent=63 // pred_check
          %p4524 = pneg %p199
        $region66: #{tpu_custom_call.1} parent=63 // pred_check_branch
          %4526 = sbr.rel (%p4524) target = $region68
        $region67: #{tpu_custom_call.1} parent=63 // pred_region
          %s4527 = sand.u32 %s184, 1
          %s4528 = scalar_lea.sflag [#allocation4], %s4527
          %s4529 = sand.u32 %s184, 1
          %s4530 = smul.addr %s4529, 256
          %s4531 = scalar_lea.vmem [#allocation7], %s4530
          %4532 = dma.done %s4528, 4096
        $region68: #{tpu_custom_call.1} parent=63 // pred_fallthru
          _
      $region64: #{tpu_custom_call.1} parent=5 // pred_fallthru
        _
    $region6: #{tpu_custom_call.1} parent=1 // loop_footer
      %s22 = sadd.s32 1, %s18
    $region7: #{tpu_custom_call.1} parent=1 // loop_footer_branch
      %17 = sbr.rel target = $region3
    $region8: #{tpu_custom_call.1} parent=1 // loop_exit
      _
    %4533 = vsyncpa [#allocation3], 1
    %s4534 = scalar_lea.sflag [#allocation3], 1
    %4535 = vsyncpa %s4534, 1
    %4536 = vsyncpa [#allocation6], 1
    %4537 = vsyncpa [#allocation4], 1
    %s4538 = scalar_lea.sflag [#allocation4], 1
    %4539 = vsyncpa %s4538, 1

</llo_original>
